<compile_context>
chip_gen: v7x
topology: tpu7x:2x2x1
jax: 0.10.0
libtpu: 0.0.40
codegen_flags: <defaults>
</compile_context>

<pallas_src>
import jax
import jax.numpy as jnp
from jax.experimental import pallas as pl
from jax.experimental.pallas import tpu as pltpu


# ---------------------------------------------------------------------------
# helpers
# ---------------------------------------------------------------------------

def _round_up(x, m):
    return ((x + m - 1) // m) * m


def _pick_block_rows(n, target=256):
    """Fixed, VMEM-budgeted row tile: multiple of 16 (bf16-friendly), capped at
    `target`.  Small inputs are split into two blocks so both v7x TensorCores
    get work under "parallel" grid semantics."""
    n16 = _round_up(n, 16)
    if n16 <= target:
        if n16 >= 32:
            return _round_up((n16 + 1) // 2, 16)
        return n16
    return target


# ---------------------------------------------------------------------------
# Pallas kernels
# ---------------------------------------------------------------------------

def _conv_relu_pool_kernel(a_ref, w_ref, b_ref, o_ref):
    """Fused conv (quadrant-packed im2col matmul) + 2x2 maxpool + bias + ReLU.

    a_ref : (bm, 4*K)      bf16  patches: the 4 pool-window pixels of each output
                                 location concatenated along the contraction dim
    w_ref : (4*K, 4*Cout)  bf16  block-diag(w, w, w, w)
    b_ref : (1, Cout)      f32
    o_ref : (bm, Cout)     bf16  pooled activation (one row per 2x2 window)
    """
    c = o_ref.shape[-1]
    # One MXU matmul produces all 4 quadrant conv outputs side by side (f32 acc).
    y = jnp.dot(a_ref[...], w_ref[...], preferred_element_type=jnp.float32)
    # Max over the 4 quadrants; bias + ReLU commute with the max (bias is
    # quadrant-independent, ReLU is monotone) so they run once on 1/4 the data.
    p = jnp.maximum(jnp.maximum(y[:, 0 * c:1 * c], y[:, 1 * c:2 * c]),
                    jnp.maximum(y[:, 2 * c:3 * c], y[:, 3 * c:4 * c]))
    o_ref[...] = jnp.maximum(p + b_ref[...], 0.0).astype(o_ref.dtype)


def _matmul_bias_kernel(a_ref, w_ref, b_ref, o_ref):
    """o = a @ w + b (f32 accumulation)."""
    acc = jnp.dot(a_ref[...], w_ref[...], preferred_element_type=jnp.float32)
    o_ref[...] = (acc + b_ref[...]).astype(o_ref.dtype)


# ---------------------------------------------------------------------------
# Fused conv layer: Conv2d(k=5, s=1, p=2) + ReLU + MaxPool2d(2)  — one pallas_call
# ---------------------------------------------------------------------------

def conv5x5_relu_pool(x_nhwc, conv_w, conv_b, *, compute_dtype=jnp.bfloat16):
    """x_nhwc: (B,H,W,Cin);  conv_w: PyTorch layout (Cout,Cin,5,5);  conv_b: (Cout,).
    Returns the pooled activation (B, H//2, W//2, Cout) in `compute_dtype`."""
    B, H, W, Cin = x_nhwc.shape
    Cout = conv_w.shape[0]
    KH = KW = 5
    assert H % 2 == 0 and W % 2 == 0, "MaxPool2d(2) requires even spatial dims"
    Hh, Wh = H // 2, W // 2
    K = KH * KW * Cin
    N = B * Hh * Wh                      # number of pool windows

    # ---- glue (pure indexing, fused by XLA): quadrant-packed im2col (N, 4K).
    # TODO(synk): im2col is still materialized in HBM; fully in-kernel patch
    # gathering needs element-offset BlockSpecs, kept out for lowering robustness.
    xp = jnp.pad(x_nhwc, ((0, 0), (2, 2), (2, 2), (0, 0)))
    cols = [xp[:, kh:kh + H, kw:kw + W, :] for kh in range(KH) for kw in range(KW)]
    patches = jnp.stack(cols, axis=3).reshape(B, H, W, K)          # (B,H,W,25*Cin)
    patches = patches.reshape(B, Hh, 2, Wh, 2, K).transpose(0, 1, 3, 2, 4, 5)
    a = patches.reshape(N, 4 * K).astype(compute_dtype)            # (N, 4K)

    # Weight matrix matching the (kh, kw, cin) patch ordering, replicated as a
    # block-diagonal so a single matmul emits the 4 quadrant conv outputs.
    w_mat = jnp.transpose(conv_w, (2, 3, 1, 0)).reshape(K, Cout).astype(jnp.float32)
    w_bd = jnp.kron(jnp.eye(4, dtype=jnp.float32), w_mat).astype(compute_dtype)
    b2 = conv_b.reshape(1, Cout).astype(jnp.float32)

    bm = _pick_block_rows(N)
    grid = pl.cdiv(N, bm)
    n_pad = grid * bm
    if n_pad != N:
        a = jnp.pad(a, ((0, n_pad - N), (0, 0)))

    out = pl.pallas_call(
        _conv_relu_pool_kernel,
        out_shape=jax.ShapeDtypeStruct((n_pad, Cout), compute_dtype),
        grid_spec=pltpu.PrefetchScalarGridSpec(
            num_scalar_prefetch=0,
            grid=(grid,),
            in_specs=[
                pl.BlockSpec((bm, 4 * K), lambda i: (i, 0)),
                pl.BlockSpec((4 * K, 4 * Cout), lambda i: (0, 0)),
                pl.BlockSpec((1, Cout), lambda i: (0, 0)),
            ],
            out_specs=pl.BlockSpec((bm, Cout), lambda i: (i, 0)),
        ),
        compiler_params=pltpu.CompilerParams(
            dimension_semantics=("parallel",)),
    )(a, w_bd, b2)

    # rows are ordered (b, ph, pw) with channels in lanes -> pure-view reshape.
    return out[:N].reshape(B, Hh, Wh, Cout)


# ---------------------------------------------------------------------------
# Linear layer (matmul + bias), M-tiled
# ---------------------------------------------------------------------------

def linear(x, w, b, *, compute_dtype=jnp.bfloat16):
    M, K = x.shape
    K2, N = w.shape
    assert K == K2, (K, K2)
    a = x.astype(compute_dtype)
    wt = w.astype(compute_dtype)
    b2 = b.reshape(1, N).astype(jnp.float32)

    bm = _pick_block_rows(M)
    grid = pl.cdiv(M, bm)
    m_pad = grid * bm
    if m_pad != M:
        a = jnp.pad(a, ((0, m_pad - M), (0, 0)))

    out = pl.pallas_call(
        _matmul_bias_kernel,
        out_shape=jax.ShapeDtypeStruct((m_pad, N), jnp.float32),
        grid_spec=pltpu.PrefetchScalarGridSpec(
            num_scalar_prefetch=0,
            grid=(grid,),
            in_specs=[
                pl.BlockSpec((bm, K), lambda i: (i, 0)),
                pl.BlockSpec((K, N), lambda i: (0, 0)),
                pl.BlockSpec((1, N), lambda i: (0, 0)),
            ],
            out_specs=pl.BlockSpec((bm, N), lambda i: (i, 0)),
        ),
        compiler_params=pltpu.CompilerParams(
            dimension_semantics=("parallel",)),
    )(a, wt, b2)
    return out[:M]


# ---------------------------------------------------------------------------
# Full model
# ---------------------------------------------------------------------------

def init_params(key, dtype=jnp.float32):
    k1, k2, k3, k4, k5, k6 = jax.random.split(key, 6)
    return {
        "conv1_w": 0.05 * jax.random.normal(k1, (16, 1, 5, 5), dtype),
        "conv1_b": 0.05 * jax.random.normal(k2, (16,), dtype),
        "conv2_w": 0.05 * jax.random.normal(k3, (32, 16, 5, 5), dtype),
        "conv2_b": 0.05 * jax.random.normal(k4, (32,), dtype),
        "out_w":   0.05 * jax.random.normal(k5, (10, 32 * 7 * 7), dtype),
        "out_b":   0.05 * jax.random.normal(k6, (10,), dtype),
    }


def cnn_forward(params, x_nchw):
    """Forward pass matching the PyTorch CNN.forward.  Input x: NCHW (B,1,28,28)."""
    B = x_nchw.shape[0]
    x = jnp.transpose(x_nchw, (0, 2, 3, 1))                          # NCHW -> NHWC

    # conv1: Conv2d(1,16,5,1,2) + ReLU + MaxPool2d(2)   -> (B,14,14,16)
    x = conv5x5_relu_pool(x, params["conv1_w"], params["conv1_b"])
    # conv2: Conv2d(16,32,5,1,2) + ReLU + MaxPool2d(2)  -> (B,7,7,32)
    x = conv5x5_relu_pool(x, params["conv2_w"], params["conv2_b"])

    # Flatten in NHWC order (pure view) and fold PyTorch's NCHW x.view(B,-1)
    # permutation into the Linear weight (constant, reordered at trace time).
    x_flat = x.reshape(B, 7 * 7 * 32)
    w_lin = (params["out_w"].reshape(10, 32, 7, 7)
             .transpose(2, 3, 1, 0).reshape(7 * 7 * 32, 10))
    logits = linear(x_flat, w_lin, params["out_b"])
    return logits                                                    # (B, 10)


if __name__ == "__main__":
    key = jax.random.PRNGKey(0)
    pkey, xkey = jax.random.split(key)
    params = init_params(pkey)

    # MNIST-sized input implied by Linear(32*7*7, 10): (B, 1, 28, 28), small batch.
    x = jax.random.normal(xkey, (2, 1, 28, 28), jnp.float32)

    logits = jax.jit(cnn_forward)(params, x)
    jax.block_until_ready(logits)
    assert logits.shape == (2, 10) and logits.dtype == jnp.float32
    print("KERNEL_OK")
</pallas_src>

<mosaic_0001>
module attributes {stable_mosaic.version = 11 : i64} {
  func.func @_conv_relu_pool_kernel(%arg0: i32, %arg1: memref<256x100xbf16, #tpu.memory_space<vmem>>, %arg2: memref<100x64xbf16, #tpu.memory_space<vmem>>, %arg3: memref<1x16xf32, #tpu.memory_space<vmem>>, %arg4: memref<256x16xbf16, #tpu.memory_space<vmem>>) attributes {dimension_semantics = [#tpu.dimension_semantics<parallel>], iteration_bounds = array<i64: 2>, scalar_prefetch = 0 : i64, scratch_operands = 0 : i64, tpu.core_type = #tpu.core_type<tc>, window_params = [{transform_indices = @transform_0, window_bounds = array<i64: 256, 100>}, {pipeline_mode = #tpu.pipeline_mode<synchronous>, transform_indices = @transform_1, window_bounds = array<i64: 100, 64>}, {pipeline_mode = #tpu.pipeline_mode<synchronous>, transform_indices = @transform_2, window_bounds = array<i64: 1, 16>}, {transform_indices = @transform_3, window_bounds = array<i64: 256, 16>}]} {
    %c0 = arith.constant 0 : index
    %c0_0 = arith.constant 0 : index
    %0 = vector.load %arg1[%c0, %c0_0] : memref<256x100xbf16, #tpu.memory_space<vmem>>, vector<256x100xbf16>
    %c0_1 = arith.constant 0 : index
    %c0_2 = arith.constant 0 : index
    %1 = vector.load %arg2[%c0_1, %c0_2] : memref<100x64xbf16, #tpu.memory_space<vmem>>, vector<100x64xbf16>
    %cst = arith.constant dense<0.000000e+00> : vector<256x64xf32>
    %2 = tpu.matmul %0, %1, %cst {dimension_numbers = #tpu.dot_dimension_numbers<[1], [0], [0], [1], [0, 0, 1, 1], [], []>} : vector<256x100xbf16>, vector<100x64xbf16>, vector<256x64xf32> -> vector<256x64xf32>
    %3 = vector.extract_strided_slice %2 {offsets = [0, 0], sizes = [256, 16], strides = [1, 1]} : vector<256x64xf32> to vector<256x16xf32>
    %4 = vector.extract_strided_slice %2 {offsets = [0, 16], sizes = [256, 16], strides = [1, 1]} : vector<256x64xf32> to vector<256x16xf32>
    %5 = arith.maximumf %3, %4 : vector<256x16xf32>
    %6 = vector.extract_strided_slice %2 {offsets = [0, 32], sizes = [256, 16], strides = [1, 1]} : vector<256x64xf32> to vector<256x16xf32>
    %7 = vector.extract_strided_slice %2 {offsets = [0, 48], sizes = [256, 16], strides = [1, 1]} : vector<256x64xf32> to vector<256x16xf32>
    %8 = arith.maximumf %6, %7 : vector<256x16xf32>
    %9 = arith.maximumf %5, %8 : vector<256x16xf32>
    %c0_3 = arith.constant 0 : index
    %c0_4 = arith.constant 0 : index
    %10 = vector.load %arg3[%c0_3, %c0_4] : memref<1x16xf32, #tpu.memory_space<vmem>>, vector<1x16xf32>
    %11 = vector.broadcast %10 : vector<1x16xf32> to vector<256x16xf32>
    %12 = arith.addf %9, %11 : vector<256x16xf32>
    %cst_5 = arith.constant 0.000000e+00 : f32
    %13 = vector.broadcast %cst_5 : f32 to vector<256x16xf32>
    %14 = arith.maximumf %12, %13 : vector<256x16xf32>
    %15 = arith.truncf %14 : vector<256x16xf32> to vector<256x16xbf16>
    %c0_6 = arith.constant 0 : index
    %c0_7 = arith.constant 0 : index
    %16 = vector.load %arg4[%c0_6, %c0_7] : memref<256x16xbf16, #tpu.memory_space<vmem>>, vector<256x16xbf16>
    tpu.vector_store %arg4[%c0_6, %c0_7], %15 {strides = array<i32>} : memref<256x16xbf16, #tpu.memory_space<vmem>>, vector<256x16xbf16>,
    return
  }
  func.func @transform_0(%arg0: i32) -> (i32, i32) {
    %c0_i32 = arith.constant 0 : i32
    %c0_i32_0 = arith.constant 0 : i32
    return %arg0, %c0_i32 : i32, i32
  }
  func.func @transform_1(%arg0: i32) -> (i32, i32) {
    %c0_i32 = arith.constant 0 : i32
    %c0_i32_0 = arith.constant 0 : i32
    %c0_i32_1 = arith.constant 0 : i32
    return %c0_i32, %c0_i32_0 : i32, i32
  }
  func.func @transform_2(%arg0: i32) -> (i32, i32) {
    %c0_i32 = arith.constant 0 : i32
    %c0_i32_0 = arith.constant 0 : i32
    %c0_i32_1 = arith.constant 0 : i32
    return %c0_i32, %c0_i32_0 : i32, i32
  }
  func.func @transform_3(%arg0: i32) -> (i32, i32) {
    %c0_i32 = arith.constant 0 : i32
    %c0_i32_0 = arith.constant 0 : i32
    return %arg0, %c0_i32 : i32, i32
  }
}

module attributes {stable_mosaic.version = 11 : i64} {
  func.func @_conv_relu_pool_kernel(%arg0: i32, %arg1: memref<64x1600xbf16, #tpu.memory_space<vmem>>, %arg2: memref<1600x128xbf16, #tpu.memory_space<vmem>>, %arg3: memref<1x32xf32, #tpu.memory_space<vmem>>, %arg4: memref<64x32xbf16, #tpu.memory_space<vmem>>) attributes {dimension_semantics = [#tpu.dimension_semantics<parallel>], iteration_bounds = array<i64: 2>, scalar_prefetch = 0 : i64, scratch_operands = 0 : i64, tpu.core_type = #tpu.core_type<tc>, window_params = [{transform_indices = @transform_0, window_bounds = array<i64: 64, 1600>}, {pipeline_mode = #tpu.pipeline_mode<synchronous>, transform_indices = @transform_1, window_bounds = array<i64: 1600, 128>}, {pipeline_mode = #tpu.pipeline_mode<synchronous>, transform_indices = @transform_2, window_bounds = array<i64: 1, 32>}, {transform_indices = @transform_3, window_bounds = array<i64: 64, 32>}]} {
    %c0 = arith.constant 0 : index
    %c0_0 = arith.constant 0 : index
    %0 = vector.load %arg1[%c0, %c0_0] : memref<64x1600xbf16, #tpu.memory_space<vmem>>, vector<64x1600xbf16>
    %c0_1 = arith.constant 0 : index
    %c0_2 = arith.constant 0 : index
    %1 = vector.load %arg2[%c0_1, %c0_2] : memref<1600x128xbf16, #tpu.memory_space<vmem>>, vector<1600x128xbf16>
    %cst = arith.constant dense<0.000000e+00> : vector<64x128xf32>
    %2 = tpu.matmul %0, %1, %cst {dimension_numbers = #tpu.dot_dimension_numbers<[1], [0], [0], [1], [0, 0, 1, 1], [], []>} : vector<64x1600xbf16>, vector<1600x128xbf16>, vector<64x128xf32> -> vector<64x128xf32>
    %3 = vector.extract_strided_slice %2 {offsets = [0, 0], sizes = [64, 32], strides = [1, 1]} : vector<64x128xf32> to vector<64x32xf32>
    %4 = vector.extract_strided_slice %2 {offsets = [0, 32], sizes = [64, 32], strides = [1, 1]} : vector<64x128xf32> to vector<64x32xf32>
    %5 = arith.maximumf %3, %4 : vector<64x32xf32>
    %6 = vector.extract_strided_slice %2 {offsets = [0, 64], sizes = [64, 32], strides = [1, 1]} : vector<64x128xf32> to vector<64x32xf32>
    %7 = vector.extract_strided_slice %2 {offsets = [0, 96], sizes = [64, 32], strides = [1, 1]} : vector<64x128xf32> to vector<64x32xf32>
    %8 = arith.maximumf %6, %7 : vector<64x32xf32>
    %9 = arith.maximumf %5, %8 : vector<64x32xf32>
    %c0_3 = arith.constant 0 : index
    %c0_4 = arith.constant 0 : index
    %10 = vector.load %arg3[%c0_3, %c0_4] : memref<1x32xf32, #tpu.memory_space<vmem>>, vector<1x32xf32>
    %11 = vector.broadcast %10 : vector<1x32xf32> to vector<64x32xf32>
    %12 = arith.addf %9, %11 : vector<64x32xf32>
    %cst_5 = arith.constant 0.000000e+00 : f32
    %13 = vector.broadcast %cst_5 : f32 to vector<64x32xf32>
    %14 = arith.maximumf %12, %13 : vector<64x32xf32>
    %15 = arith.truncf %14 : vector<64x32xf32> to vector<64x32xbf16>
    %c0_6 = arith.constant 0 : index
    %c0_7 = arith.constant 0 : index
    %16 = vector.load %arg4[%c0_6, %c0_7] : memref<64x32xbf16, #tpu.memory_space<vmem>>, vector<64x32xbf16>
    tpu.vector_store %arg4[%c0_6, %c0_7], %15 {strides = array<i32>} : memref<64x32xbf16, #tpu.memory_space<vmem>>, vector<64x32xbf16>,
    return
  }
  func.func @transform_0(%arg0: i32) -> (i32, i32) {
    %c0_i32 = arith.constant 0 : i32
    %c0_i32_0 = arith.constant 0 : i32
    return %arg0, %c0_i32 : i32, i32
  }
  func.func @transform_1(%arg0: i32) -> (i32, i32) {
    %c0_i32 = arith.constant 0 : i32
    %c0_i32_0 = arith.constant 0 : i32
    %c0_i32_1 = arith.constant 0 : i32
    return %c0_i32, %c0_i32_0 : i32, i32
  }
  func.func @transform_2(%arg0: i32) -> (i32, i32) {
    %c0_i32 = arith.constant 0 : i32
    %c0_i32_0 = arith.constant 0 : i32
    %c0_i32_1 = arith.constant 0 : i32
    return %c0_i32, %c0_i32_0 : i32, i32
  }
  func.func @transform_3(%arg0: i32) -> (i32, i32) {
    %c0_i32 = arith.constant 0 : i32
    %c0_i32_0 = arith.constant 0 : i32
    return %arg0, %c0_i32 : i32, i32
  }
}

module attributes {stable_mosaic.version = 11 : i64} {
  func.func @_matmul_bias_kernel(%arg0: i32, %arg1: memref<16x1568xbf16, #tpu.memory_space<vmem>>, %arg2: memref<1568x10xbf16, #tpu.memory_space<vmem>>, %arg3: memref<1x10xf32, #tpu.memory_space<vmem>>, %arg4: memref<16x10xf32, #tpu.memory_space<vmem>>) attributes {dimension_semantics = [#tpu.dimension_semantics<parallel>], iteration_bounds = array<i64: 1>, scalar_prefetch = 0 : i64, scratch_operands = 0 : i64, tpu.core_type = #tpu.core_type<tc>, window_params = [{transform_indices = @transform_0, window_bounds = array<i64: 16, 1568>}, {pipeline_mode = #tpu.pipeline_mode<synchronous>, transform_indices = @transform_1, window_bounds = array<i64: 1568, 10>}, {pipeline_mode = #tpu.pipeline_mode<synchronous>, transform_indices = @transform_2, window_bounds = array<i64: 1, 10>}, {transform_indices = @transform_3, window_bounds = array<i64: 16, 10>}]} {
    %c0 = arith.constant 0 : index
    %c0_0 = arith.constant 0 : index
    %0 = vector.load %arg1[%c0, %c0_0] : memref<16x1568xbf16, #tpu.memory_space<vmem>>, vector<16x1568xbf16>
    %c0_1 = arith.constant 0 : index
    %c0_2 = arith.constant 0 : index
    %1 = vector.load %arg2[%c0_1, %c0_2] : memref<1568x10xbf16, #tpu.memory_space<vmem>>, vector<1568x10xbf16>
    %cst = arith.constant dense<0.000000e+00> : vector<16x10xf32>
    %2 = tpu.matmul %0, %1, %cst {dimension_numbers = #tpu.dot_dimension_numbers<[1], [0], [0], [1], [0, 0, 1, 1], [], []>} : vector<16x1568xbf16>, vector<1568x10xbf16>, vector<16x10xf32> -> vector<16x10xf32>
    %c0_3 = arith.constant 0 : index
    %c0_4 = arith.constant 0 : index
    %3 = vector.load %arg3[%c0_3, %c0_4] : memref<1x10xf32, #tpu.memory_space<vmem>>, vector<1x10xf32>
    %4 = vector.broadcast %3 : vector<1x10xf32> to vector<16x10xf32>
    %5 = arith.addf %2, %4 : vector<16x10xf32>
    %c0_5 = arith.constant 0 : index
    %c0_6 = arith.constant 0 : index
    %6 = vector.load %arg4[%c0_5, %c0_6] : memref<16x10xf32, #tpu.memory_space<vmem>>, vector<16x10xf32>
    tpu.vector_store %arg4[%c0_5, %c0_6], %5 {strides = array<i32>} : memref<16x10xf32, #tpu.memory_space<vmem>>, vector<16x10xf32>,
    return
  }
  func.func @transform_0(%arg0: i32) -> (i32, i32) {
    %c0_i32 = arith.constant 0 : i32
    %c0_i32_0 = arith.constant 0 : i32
    return %arg0, %c0_i32 : i32, i32
  }
  func.func @transform_1(%arg0: i32) -> (i32, i32) {
    %c0_i32 = arith.constant 0 : i32
    %c0_i32_0 = arith.constant 0 : i32
    %c0_i32_1 = arith.constant 0 : i32
    return %c0_i32, %c0_i32_0 : i32, i32
  }
  func.func @transform_2(%arg0: i32) -> (i32, i32) {
    %c0_i32 = arith.constant 0 : i32
    %c0_i32_0 = arith.constant 0 : i32
    %c0_i32_1 = arith.constant 0 : i32
    return %c0_i32, %c0_i32_0 : i32, i32
  }
  func.func @transform_3(%arg0: i32) -> (i32, i32) {
    %c0_i32 = arith.constant 0 : i32
    %c0_i32_0 = arith.constant 0 : i32
    return %arg0, %c0_i32 : i32, i32
  }
}

</mosaic_0001>

<llo_original>
// kernel: mul.4
$region0: #{mul.4}
  %s0 = inlined_call_operand.vmem [shape: f32[5,5,16], index: 0, kind: input, shape index: {}]
  %s1 = inlined_call_operand.vmem [shape: f32[25,16], index: 1, kind: output, shape index: {}]
  %v2 = vld [vmem:[%s0] sm:$0x1f]
  %vm3 = vcmask 130048
  %4 = vst.msk [vmem:[%s1] sm:$0x1f] %vm3, %v2
  %s5 = scalar_lea.vmem %s0, 8
  %v6 = vld [vmem:[%s5] sm:$0x1f]
  %vm7 = vcmask 130048
  %s8 = scalar_lea.vmem %s1, 5
  %9 = vst.msk [vmem:[%s8] sm:$0x1f] %vm7, %v6
  %s10 = scalar_lea.vmem %s0, 16
  %v11 = vld [vmem:[%s10] sm:$0x1f]
  %vm12 = vcmask 130048
  %s13 = scalar_lea.vmem %s1, 10
  %14 = vst.msk [vmem:[%s13] sm:$0x1f] %vm12, %v11
  %s15 = scalar_lea.vmem %s0, 24
  %v16 = vld [vmem:[%s15] sm:$0x1f]
  %vm17 = vcmask 130048
  %s18 = scalar_lea.vmem %s1, 15
  %19 = vst.msk [vmem:[%s18] sm:$0x1f] %vm17, %v16
  %s20 = scalar_lea.vmem %s0, 32
  %v21 = vld [vmem:[%s20] sm:$0x1f]
  %vm22 = vcmask 130048
  %s23 = scalar_lea.vmem %s1, 20
  %24 = vst.msk [vmem:[%s23] sm:$0x1f] %vm22, %v21

// kernel: cnn_forward.3
$region0: #{cnn_forward.3}
  #allocation0 [shape = 'u32[]', space=smem, size = 0x4, offset = 0x4, fixed_abs, tag = 'smem constant byte address 0x4 - core index']
  #allocation1 [shape = 'u32[144,128]{1,0:T(1,128)}', space=vmem, size = 0x12000, scoped, tag = 'internal scratch']
  %s0 = inlined_call_operand.vmem [shape: bf16[512,100], index: 0, kind: input, shape index: {}]
  %s1 = inlined_call_operand.vmem [shape: bf16[100,64], index: 1, kind: input, shape index: {}]
  %s2 = inlined_call_operand.vmem [shape: f32[1,16], index: 2, kind: input, shape index: {}]
  %s3 = inlined_call_operand.vmem [shape: bf16[512,16], index: 3, kind: output, shape index: {}]
  %s4 = sld [smem:[#allocation0]]
  $region45: #{cnn_forward.3} parent=0
    _
  %s6 = ssub.s32 1, %s4
  %s7 = scalar_select 0, %s6, %s4
  loop: start=0, step=1, limit=4
  $region2: #{cnn_forward.3} parent=0 // loop_pre_header
    _
  $region3: #{cnn_forward.3} parent=0 // loop_header
    %s9 = sphi 0, %s13
    %p10 = scmp.ge.s32.totalorder %s9, 4
    %s19 = sphi 0, %s21
    %s22 = sphi 0, %s19
    %s23 = sphi 0, %s22
    %s39 = sphi 0, %s23
    %s43 = sphi 0, %s43
    %s45 = sphi 0, %s43
    %s46 = sphi 0, %s45
    %s60 = sphi 0, %s46
    %s64 = sphi 0, %s64
    %s66 = sphi 0, %s64
    %s67 = sphi 0, %s66
    %s81 = sphi 0, %s67
    %s87 = sphi 0, %s89
    %s90 = sphi 0, %s87
    %s91 = sphi 0, %s90
    %s107 = sphi 0, %s91
  $region4: #{cnn_forward.3} parent=0 // loop_header_branch
    %12 = sbr.rel (%p10) target = $region8
  $region5: #{cnn_forward.3} parent=0 // loop_body
    %s14 = ssub.s32 %s9, 1
    %s15 = ssub.s32 %s9, 2
    %s16 = sadd.s32 %s9, 1
    %s17 = ssub.s32 %s9, %s16
    %p18 = scmp.eq.s32.totalorder %s17, 0
    %s20 = sadd.s32 %s19, 1
    %s21 = scalar_select %p18, %s19, %s20
    %p24 = pneg %p18
    %p25 = scmp.eq.s32.totalorder %s9, 1
    %p26 = por %p24, %p25
    %p27 = scmp.ne.s32.totalorder %s19, %s22
    %p28 = scmp.eq.s32.totalorder %s9, 0
    %p29 = por %p27, %p28
    %p30 = scmp.ne.s32.totalorder %s19, %s22
    %p31 = scmp.eq.s32.totalorder %s14, 1
    %p32 = por %p30, %p31
    %p33 = scmp.ne.s32.totalorder %s22, %s23
    %p34 = scmp.eq.s32.totalorder %s14, 0
    %p35 = por %p33, %p34
    %p36 = scmp.ne.s32.totalorder %s22, %s23
    %p37 = scmp.eq.s32.totalorder %s15, 1
    %p38 = por %p36, %p37
    %p40 = scmp.ne.s32.totalorder %s23, %s39
    %p41 = scmp.eq.s32.totalorder %s15, 0
    %p42 = por %p40, %p41
    %s44 = sadd.s32 %s43, 1
    %p47 = scmp.eq.s32.totalorder %s9, 1
    %p48 = scmp.ne.s32.totalorder %s43, %s45
    %p49 = scmp.eq.s32.totalorder %s9, 0
    %p50 = por %p48, %p49
    %p51 = scmp.ne.s32.totalorder %s43, %s45
    %p52 = scmp.eq.s32.totalorder %s14, 1
    %p53 = por %p51, %p52
    %p54 = scmp.ne.s32.totalorder %s45, %s46
    %p55 = scmp.eq.s32.totalorder %s14, 0
    %p56 = por %p54, %p55
    %p57 = scmp.ne.s32.totalorder %s45, %s46
    %p58 = scmp.eq.s32.totalorder %s15, 1
    %p59 = por %p57, %p58
    %p61 = scmp.ne.s32.totalorder %s46, %s60
    %p62 = scmp.eq.s32.totalorder %s15, 0
    %p63 = por %p61, %p62
    %s65 = sadd.s32 %s64, 1
    %p68 = scmp.eq.s32.totalorder %s9, 1
    %p69 = scmp.ne.s32.totalorder %s64, %s66
    %p70 = scmp.eq.s32.totalorder %s9, 0
    %p71 = por %p69, %p70
    %p72 = scmp.ne.s32.totalorder %s64, %s66
    %p73 = scmp.eq.s32.totalorder %s14, 1
    %p74 = por %p72, %p73
    %p75 = scmp.ne.s32.totalorder %s66, %s67
    %p76 = scmp.eq.s32.totalorder %s14, 0
    %p77 = por %p75, %p76
    %p78 = scmp.ne.s32.totalorder %s66, %s67
    %p79 = scmp.eq.s32.totalorder %s15, 1
    %p80 = por %p78, %p79
    %p82 = scmp.ne.s32.totalorder %s67, %s81
    %p83 = scmp.eq.s32.totalorder %s15, 0
    %p84 = por %p82, %p83
    %s85 = ssub.s32 %s9, %s16
    %p86 = scmp.eq.s32.totalorder %s85, 0
    %s88 = sadd.s32 %s87, 1
    %s89 = scalar_select %p86, %s87, %s88
    %p92 = pneg %p86
    %p93 = scmp.eq.s32.totalorder %s9, 1
    %p94 = por %p92, %p93
    %p95 = scmp.ne.s32.totalorder %s87, %s90
    %p96 = scmp.eq.s32.totalorder %s9, 0
    %p97 = por %p95, %p96
    %p98 = scmp.ne.s32.totalorder %s87, %s90
    %p99 = scmp.eq.s32.totalorder %s14, 1
    %p100 = por %p98, %p99
    %p101 = scmp.ne.s32.totalorder %s90, %s91
    %p102 = scmp.eq.s32.totalorder %s14, 0
    %p103 = por %p101, %p102
    %p104 = scmp.ne.s32.totalorder %s90, %s91
    %p105 = scmp.eq.s32.totalorder %s15, 1
    %p106 = por %p104, %p105
    %p108 = scmp.ne.s32.totalorder %s91, %s107
    %p109 = scmp.eq.s32.totalorder %s15, 0
    %p110 = por %p108, %p109
    %p111 = scmp.le.s32.totalorder 1, %s9
    %p112 = scmp.lt.s32.totalorder %s9, 3
    %p113 = pnand %p111, %p112
    %p114 = pneg %p113
    // Predicated region
    $region9: #{cnn_forward.3} parent=5 // pred_check
      _
    $region10: #{cnn_forward.3} parent=5 // pred_check_branch
      %116 = sbr.rel (%p113) target = $region12
    $region11: #{cnn_forward.3} parent=5 // pred_region
      %s117 = ssub.s32 %s9, 1
      // Predicated region
      $region13: #{cnn_forward.3} parent=11 // pred_check
        %p118 = pneg %p56
      $region14: #{cnn_forward.3} parent=11 // pred_check_branch
        %120 = sbr.rel (%p118) target = $region16
      $region15: #{cnn_forward.3} parent=11 // pred_region
        _
      $region16: #{cnn_forward.3} parent=11 // pred_fallthru
        _
      // Predicated region
      $region17: #{cnn_forward.3} parent=11 // pred_check
        %p121 = pneg %p77
      $region18: #{cnn_forward.3} parent=11 // pred_check_branch
        %123 = sbr.rel (%p121) target = $region20
      $region19: #{cnn_forward.3} parent=11 // pred_region
        _
      $region20: #{cnn_forward.3} parent=11 // pred_fallthru
        _
    $region12: #{cnn_forward.3} parent=5 // pred_fallthru
      _
    %p124 = scmp.lt.s32.totalorder %s9, 2
    // Predicated region
    $region21: #{cnn_forward.3} parent=5 // pred_check
      %p125 = pneg %p124
    $region22: #{cnn_forward.3} parent=5 // pred_check_branch
      %127 = sbr.rel (%p125) target = $region24
    $region23: #{cnn_forward.3} parent=5 // pred_region
      // Predicated region
      $region25: #{cnn_forward.3} parent=23 // pred_check
        %p128 = pneg %p29
      $region26: #{cnn_forward.3} parent=23 // pred_check_branch
        %130 = sbr.rel (%p128) target = $region28
      $region27: #{cnn_forward.3} parent=23 // pred_region
        %s131 = smul.u32 32, %s9
        %p132 = scmp.lt.s32.totalorder %s131, 63
        %s133 = scalar_select %p132, %s131, 63
        %s134 = smul.addr %s133, 4
        %s135 = scalar_lea.vmem %s0, %s134
        %s136 = smul.u32 32, %s9
      $region28: #{cnn_forward.3} parent=23 // pred_fallthru
        _
    $region24: #{cnn_forward.3} parent=5 // pred_fallthru
      _
    %p137 = scmp.le.s32.totalorder 1, %s9
    %p138 = scmp.lt.s32.totalorder %s9, 3
    %p139 = pnand %p137, %p138
    %p140 = pneg %p139
    // Predicated region
    $region29: #{cnn_forward.3} parent=5 // pred_check
      _
    $region30: #{cnn_forward.3} parent=5 // pred_check_branch
      %142 = sbr.rel (%p139) target = $region32
    $region31: #{cnn_forward.3} parent=5 // pred_region
      %s143 = ssub.s32 %s9, 1
      %s144 = smul.u32 32, %s14
      %p145 = scmp.lt.s32.totalorder %s144, 63
      %s146 = scalar_select %p145, %s144, 63
      %s147 = smul.addr %s146, 4
      %s148 = scalar_lea.vmem %s0, %s147
      %p149 = pneg %p35
      %p150 = pneg %p32
      %p151 = pneg %p56
      %p152 = pneg %p53
      %p153 = pneg %p77
      %p154 = pneg %p74
      %p155 = pneg %p103
      %p156 = pneg %p100
      %s157 = smul.u32 32, %s14
      %p158 = scmp.lt.s32.totalorder %s157, 63
      %s159 = scalar_select %p158, %s157, 63
      %s160 = smul.addr %s159, 4
      %s161 = scalar_lea.vmem %s3, %s160
      %s162 = smul.u32 32, %s14
      %p163 = scmp.lt.s32.totalorder %s162, 63
      %s164 = scalar_select %p163, %s162, 63
      %s165 = smul.addr %s164, 4
      %s166 = scalar_lea.vmem %s0, %s165
      %s167 = smul.u32 32, %s14
      %s168 = smul.u32 32, %s14
      %p169 = scmp.lt.s32.totalorder %s168, 63
      %s170 = scalar_select %p169, %s168, 63
      %s171 = smul.addr %s170, 4
      %s172 = scalar_lea.vmem %s3, %s171
      %s173 = smul.u32 32, %s14
      %v175 = vld [vmem:[%s166] sm:$0xf]
      %v176 = vld [vmem:[%s166 + $0x4] sm:$0xf]
      %v177 = vld [vmem:[%s166 + $0x8] sm:$0xf]
      %v178 = vld [vmem:[%s166 + $0xc] sm:$0xf]
      %v179 = vld [vmem:[%s166 + $0x10] sm:$0xf]
      %v180 = vld [vmem:[%s166 + $0x14] sm:$0xf]
      %v181 = vld [vmem:[%s166 + $0x18] sm:$0xf]
      %v182 = vld [vmem:[%s166 + $0x1c] sm:$0xf]
      %v183 = vld [vmem:[%s166 + $0x20] sm:$0xf]
      %v184 = vld [vmem:[%s166 + $0x24] sm:$0xf]
      %v185 = vld [vmem:[%s166 + $0x28] sm:$0xf]
      %v186 = vld [vmem:[%s166 + $0x2c] sm:$0xf]
      %v187 = vld [vmem:[%s166 + $0x30] sm:$0xf]
      %v188 = vld [vmem:[%s166 + $0x34] sm:$0xf]
      %v189 = vld [vmem:[%s166 + $0x38] sm:$0xf]
      %v190 = vld [vmem:[%s166 + $0x3c] sm:$0xf]
      %v191 = vld [vmem:[%s166 + $0x40] sm:$0xf]
      %v192 = vld [vmem:[%s166 + $0x44] sm:$0xf]
      %v193 = vld [vmem:[%s166 + $0x48] sm:$0xf]
      %v194 = vld [vmem:[%s166 + $0x4c] sm:$0xf]
      %v195 = vld [vmem:[%s166 + $0x50] sm:$0xf]
      %v196 = vld [vmem:[%s166 + $0x54] sm:$0xf]
      %v197 = vld [vmem:[%s166 + $0x58] sm:$0xf]
      %v198 = vld [vmem:[%s166 + $0x5c] sm:$0xf]
      %v199 = vld [vmem:[%s166 + $0x60] sm:$0xf]
      %v200 = vld [vmem:[%s166 + $0x64] sm:$0xf]
      %v201 = vld [vmem:[%s166 + $0x68] sm:$0xf]
      %v202 = vld [vmem:[%s166 + $0x6c] sm:$0xf]
      %v203 = vld [vmem:[%s166 + $0x70] sm:$0xf]
      %v204 = vld [vmem:[%s166 + $0x74] sm:$0xf]
      %v205 = vld [vmem:[%s166 + $0x78] sm:$0xf]
      %v206 = vld [vmem:[%s166 + $0x7c] sm:$0xf]
      %v207 = vld [vmem:[%s1] sm:$0xf]
      %v208 = vld [vmem:[%s1 + $0x4] sm:$0xf]
      %v209 = vld [vmem:[%s1 + $0x8] sm:$0xf]
      %v210 = vld [vmem:[%s1 + $0xc] sm:$0xf]
      %v211 = vld [vmem:[%s1 + $0x10] sm:$0xf]
      %v212 = vld [vmem:[%s1 + $0x14] sm:$0xf]
      %v213 = vld [vmem:[%s1 + $0x18] sm:$0xf]
      %v214 = vld [vmem:[%s1 + $0x1c] sm:$0xf]
      %v215 = vld [vmem:[%s1 + $0x20] sm:$0xf]
      %v216 = vld [vmem:[%s1 + $0x24] sm:$0xf]
      %v217 = vld [vmem:[%s1 + $0x28] sm:$0xf]
      %v218 = vld [vmem:[%s1 + $0x2c] sm:$0xf]
      %v219 = vld [vmem:[%s1 + $0x30] sm:$0x3]
      %v252 = vunpack.c.l.b16 %v175
      %v253 = vunpack.c.l.b16 %v176
      %v254 = vunpack.c.l.b16 %v177
      %v255 = vunpack.c.l.b16 %v178
      %v256 = vunpack.c.l.b16 %v179
      %v257 = vunpack.c.l.b16 %v180
      %v258 = vunpack.c.l.b16 %v181
      %v259 = vunpack.c.l.b16 %v182
      %v260 = vunpack.c.l.b16 %v183
      %v261 = vunpack.c.l.b16 %v184
      %v262 = vunpack.c.l.b16 %v185
      %v263 = vunpack.c.l.b16 %v186
      %v264 = vunpack.c.l.b16 %v187
      %v265 = vunpack.c.l.b16 %v188
      %v266 = vunpack.c.l.b16 %v189
      %v267 = vunpack.c.l.b16 %v190
      %v268 = vunpack.c.l.b16 %v191
      %v269 = vunpack.c.l.b16 %v192
      %v270 = vunpack.c.l.b16 %v193
      %v271 = vunpack.c.l.b16 %v194
      %v272 = vunpack.c.l.b16 %v195
      %v273 = vunpack.c.l.b16 %v196
      %v274 = vunpack.c.l.b16 %v197
      %v275 = vunpack.c.l.b16 %v198
      %v276 = vunpack.c.l.b16 %v199
      %v277 = vunpack.c.l.b16 %v200
      %v278 = vunpack.c.l.b16 %v201
      %v279 = vunpack.c.l.b16 %v202
      %v280 = vunpack.c.l.b16 %v203
      %v281 = vunpack.c.l.b16 %v204
      %v282 = vunpack.c.l.b16 %v205
      %v283 = vunpack.c.l.b16 %v206
      %v284 = vpack.c.b16 %v253, %v252
      %v285 = vpack.c.b16 %v255, %v254
      %v286 = vpack.c.b16 %v257, %v256
      %v287 = vpack.c.b16 %v259, %v258
      %v288 = vpack.c.b16 %v261, %v260
      %v289 = vpack.c.b16 %v263, %v262
      %v290 = vpack.c.b16 %v265, %v264
      %v291 = vpack.c.b16 %v267, %v266
      %v292 = vpack.c.b16 %v269, %v268
      %v293 = vpack.c.b16 %v271, %v270
      %v294 = vpack.c.b16 %v273, %v272
      %v295 = vpack.c.b16 %v275, %v274
      %v296 = vpack.c.b16 %v277, %v276
      %v297 = vpack.c.b16 %v279, %v278
      %v298 = vpack.c.b16 %v281, %v280
      %v299 = vpack.c.b16 %v283, %v282
      %v313 = vunpack.c.l.b16 %v207
      %v314 = vunpack.c.l.b16 %v208
      %v315 = vunpack.c.l.b16 %v209
      %v316 = vunpack.c.l.b16 %v210
      %v317 = vunpack.c.l.b16 %v211
      %v318 = vunpack.c.l.b16 %v212
      %v319 = vunpack.c.l.b16 %v213
      %v320 = vunpack.c.l.b16 %v214
      %v321 = vunpack.c.l.b16 %v215
      %v322 = vunpack.c.l.b16 %v216
      %v323 = vunpack.c.l.b16 %v217
      %v324 = vunpack.c.l.b16 %v218
      %v325 = vunpack.c.l.b16 %v219
      %v326 = vpack.c.b16 %v314, %v313
      %v327 = vpack.c.b16 %v316, %v315
      %v328 = vpack.c.b16 %v318, %v317
      %v329 = vpack.c.b16 %v320, %v319
      %v330 = vpack.c.b16 %v322, %v321
      %v331 = vpack.c.b16 %v324, %v323
      %v332 = vpack.c.b16 %v325, %v325
      %vm339 = vcmask 818176
      %v341 = vsel %vm339, %v284, 0
      %v344 = vsel %vm339, %v285, 0
      %v347 = vsel %vm339, %v286, 0
      %v350 = vsel %vm339, %v287, 0
      %v353 = vsel %vm339, %v288, 0
      %v356 = vsel %vm339, %v289, 0
      %v359 = vsel %vm339, %v290, 0
      %v362 = vsel %vm339, %v291, 0
      %v365 = vsel %vm339, %v292, 0
      %v368 = vsel %vm339, %v293, 0
      %v371 = vsel %vm339, %v294, 0
      %v374 = vsel %vm339, %v295, 0
      %v377 = vsel %vm339, %v296, 0
      %v380 = vsel %vm339, %v297, 0
      %v383 = vsel %vm339, %v298, 0
      %v386 = vsel %vm339, %v299, 0
      %vm388 = vcmask 1041408
      %v390 = vsel %vm388, %v332, 0
      %392 = vmatprep.subr.bf16.mxu0 0
      %393 = vmatpush1.bf16.msra.mxu0 %v326
      %394 = vmatprep.subr.bf16.mxu0 0
      %395 = vmatpush1.bf16.msra.mxu0 %v327
      %396 = vmatprep.subr.bf16.mxu0 0
      %397 = vmatpush1.bf16.msra.mxu0 %v328
      %398 = vmatprep.subr.bf16.mxu0 0
      %399 = vmatpush1.bf16.msra.mxu0 %v329
      %400 = vmatprep.subr.bf16.mxu0 0
      %401 = vmatpush1.bf16.msra.mxu0 %v330
      %402 = vmatprep.subr.bf16.mxu0 0
      %403 = vmatpush1.bf16.msra.mxu0 %v331
      %404 = vmatprep.subr.bf16.mxu0 0
      %405 = vmatpush1.bf16.msra.mxu0 %v390
      %406 = vmatprep.subr.bf16.mxu0 0
      %407 = vmatpush1.bf16.msra.mxu0 0
      %408 = vmatprep.subr.bf16.mxu0 0
      %409 = vmatpush1.bf16.msra.mxu0 0
      %410 = vmatprep.subr.bf16.mxu0 0
      %411 = vmatpush1.bf16.msra.mxu0 0
      %412 = vmatprep.subr.bf16.mxu0 0
      %413 = vmatpush1.bf16.msra.mxu0 0
      %414 = vmatprep.subr.bf16.mxu0 0
      %415 = vmatpush1.bf16.msra.mxu0 0
      %416 = vmatprep.subr.bf16.mxu0 0
      %417 = vmatpush1.bf16.msra.mxu0 0
      %418 = vmatprep.subr.bf16.mxu0 0
      %419 = vmatpush1.bf16.msra.mxu0 0
      %420 = vmatprep.subr.bf16.mxu0 0
      %421 = vmatpush1.bf16.msra.mxu0 0
      %422 = vmatprep.subr.bf16.mxu0 0
      %423 = vmatpush1.bf16.msra.mxu0 0
      %424 = vmatprep.mubr.bf16.mxu0 0
      %425 = vmatmul.mubr.bf16.gmra.mrb[0].mxu0 %v341
      %v426 = vpop.f32.mrb[0].mxu0
      %v427 = vadd.f32 0.0, %v426
      %v428 = vpop.f32.mrb[0].mxu0
      %v429 = vpop.f32.mrb[0].mxu0
      %v430 = vadd.f32 0.0, %v429
      %v431 = vpop.f32.mrb[0].mxu0
      %432 = vmatprep.mubr.bf16.mxu0 0
      %433 = vmatmul.mubr.bf16.gmra.mrb[0].mxu0 %v344
      %v434 = vpop.f32.mrb[0].mxu0
      %v435 = vadd.f32 0.0, %v434
      %v436 = vpop.f32.mrb[0].mxu0
      %v437 = vpop.f32.mrb[0].mxu0
      %v438 = vadd.f32 0.0, %v437
      %v439 = vpop.f32.mrb[0].mxu0
      %440 = vmatprep.mubr.bf16.mxu0 0
      %441 = vmatmul.mubr.bf16.gmra.mrb[0].mxu0 %v347
      %v442 = vpop.f32.mrb[0].mxu0
      %v443 = vadd.f32 0.0, %v442
      %v444 = vpop.f32.mrb[0].mxu0
      %v445 = vpop.f32.mrb[0].mxu0
      %v446 = vadd.f32 0.0, %v445
      %v447 = vpop.f32.mrb[0].mxu0
      %448 = vmatprep.mubr.bf16.mxu0 0
      %449 = vmatmul.mubr.bf16.gmra.mrb[0].mxu0 %v350
      %v450 = vpop.f32.mrb[0].mxu0
      %v451 = vadd.f32 0.0, %v450
      %v452 = vpop.f32.mrb[0].mxu0
      %v453 = vpop.f32.mrb[0].mxu0
      %v454 = vadd.f32 0.0, %v453
      %v455 = vpop.f32.mrb[0].mxu0
      %456 = vmatprep.mubr.bf16.mxu0 0
      %457 = vmatmul.mubr.bf16.gmra.mrb[0].mxu0 %v353
      %v458 = vpop.f32.mrb[0].mxu0
      %v459 = vadd.f32 0.0, %v458
      %v460 = vpop.f32.mrb[0].mxu0
      %v461 = vpop.f32.mrb[0].mxu0
      %v462 = vadd.f32 0.0, %v461
      %v463 = vpop.f32.mrb[0].mxu0
      %464 = vmatprep.mubr.bf16.mxu0 0
      %465 = vmatmul.mubr.bf16.gmra.mrb[0].mxu0 %v356
      %v466 = vpop.f32.mrb[0].mxu0
      %v467 = vadd.f32 0.0, %v466
      %v468 = vpop.f32.mrb[0].mxu0
      %v469 = vpop.f32.mrb[0].mxu0
      %v470 = vadd.f32 0.0, %v469
      %v471 = vpop.f32.mrb[0].mxu0
      %472 = vmatprep.mubr.bf16.mxu0 0
      %473 = vmatmul.mubr.bf16.gmra.mrb[0].mxu0 %v359
      %v474 = vpop.f32.mrb[0].mxu0
      %v475 = vadd.f32 0.0, %v474
      %v476 = vpop.f32.mrb[0].mxu0
      %v477 = vpop.f32.mrb[0].mxu0
      %v478 = vadd.f32 0.0, %v477
      %v479 = vpop.f32.mrb[0].mxu0
      %480 = vmatprep.mubr.bf16.mxu0 0
      %481 = vmatmul.mubr.bf16.gmra.mrb[0].mxu0 %v362
      %v482 = vpop.f32.mrb[0].mxu0
      %v483 = vadd.f32 0.0, %v482
      %v484 = vpop.f32.mrb[0].mxu0
      %v485 = vpop.f32.mrb[0].mxu0
      %v486 = vadd.f32 0.0, %v485
      %v487 = vpop.f32.mrb[0].mxu0
      %488 = vmatprep.mubr.bf16.mxu0 0
      %489 = vmatmul.mubr.bf16.gmra.mrb[0].mxu0 %v365
      %v490 = vpop.f32.mrb[0].mxu0
      %v491 = vadd.f32 0.0, %v490
      %v492 = vpop.f32.mrb[0].mxu0
      %v493 = vpop.f32.mrb[0].mxu0
      %v494 = vadd.f32 0.0, %v493
      %v495 = vpop.f32.mrb[0].mxu0
      %496 = vmatprep.mubr.bf16.mxu0 0
      %497 = vmatmul.mubr.bf16.gmra.mrb[0].mxu0 %v368
      %v498 = vpop.f32.mrb[0].mxu0
      %v499 = vadd.f32 0.0, %v498
      %v500 = vpop.f32.mrb[0].mxu0
      %v501 = vpop.f32.mrb[0].mxu0
      %v502 = vadd.f32 0.0, %v501
      %v503 = vpop.f32.mrb[0].mxu0
      %504 = vmatprep.mubr.bf16.mxu0 0
      %505 = vmatmul.mubr.bf16.gmra.mrb[0].mxu0 %v371
      %v506 = vpop.f32.mrb[0].mxu0
      %v507 = vadd.f32 0.0, %v506
      %v508 = vpop.f32.mrb[0].mxu0
      %v509 = vpop.f32.mrb[0].mxu0
      %v510 = vadd.f32 0.0, %v509
      %v511 = vpop.f32.mrb[0].mxu0
      %512 = vmatprep.mubr.bf16.mxu0 0
      %513 = vmatmul.mubr.bf16.gmra.mrb[0].mxu0 %v374
      %v514 = vpop.f32.mrb[0].mxu0
      %v515 = vadd.f32 0.0, %v514
      %v516 = vpop.f32.mrb[0].mxu0
      %v517 = vpop.f32.mrb[0].mxu0
      %v518 = vadd.f32 0.0, %v517
      %v519 = vpop.f32.mrb[0].mxu0
      %520 = vmatprep.mubr.bf16.mxu0 0
      %521 = vmatmul.mubr.bf16.gmra.mrb[0].mxu0 %v377
      %v522 = vpop.f32.mrb[0].mxu0
      %v523 = vadd.f32 0.0, %v522
      %v524 = vpop.f32.mrb[0].mxu0
      %v525 = vpop.f32.mrb[0].mxu0
      %v526 = vadd.f32 0.0, %v525
      %v527 = vpop.f32.mrb[0].mxu0
      %528 = vmatprep.mubr.bf16.mxu0 0
      %529 = vmatmul.mubr.bf16.gmra.mrb[0].mxu0 %v380
      %v530 = vpop.f32.mrb[0].mxu0
      %v531 = vadd.f32 0.0, %v530
      %v532 = vpop.f32.mrb[0].mxu0
      %v533 = vpop.f32.mrb[0].mxu0
      %v534 = vadd.f32 0.0, %v533
      %v535 = vpop.f32.mrb[0].mxu0
      %536 = vmatprep.mubr.bf16.mxu0 0
      %537 = vmatmul.mubr.bf16.gmra.mrb[0].mxu0 %v383
      %v538 = vpop.f32.mrb[0].mxu0
      %v539 = vadd.f32 0.0, %v538
      %v540 = vpop.f32.mrb[0].mxu0
      %v541 = vpop.f32.mrb[0].mxu0
      %v542 = vadd.f32 0.0, %v541
      %v543 = vpop.f32.mrb[0].mxu0
      %544 = vmatprep.mubr.bf16.mxu0 0
      %545 = vmatmul.mubr.bf16.gmra.mrb[0].mxu0 %v386
      %v546 = vpop.f32.mrb[0].mxu0
      %v547 = vadd.f32 0.0, %v546
      %v548 = vpop.f32.mrb[0].mxu0
      %v549 = vpop.f32.mrb[0].mxu0
      %v550 = vadd.f32 0.0, %v549
      %v551 = vpop.f32.mrb[0].mxu0
      %552 = vdwg.mxu0
      %585 = vrot.lane.b32.xlu0 %v427, 112
      %v586 = vpop.permute.xlu0 %585
      %587 = vrot.lane.b32.xlu0 %v430, 112
      %v588 = vpop.permute.xlu0 %587
      %589 = vrot.lane.b32.xlu0 %v435, 112
      %v590 = vpop.permute.xlu0 %589
      %591 = vrot.lane.b32.xlu0 %v438, 112
      %v592 = vpop.permute.xlu0 %591
      %593 = vrot.lane.b32.xlu0 %v443, 112
      %v594 = vpop.permute.xlu0 %593
      %595 = vrot.lane.b32.xlu0 %v446, 112
      %v596 = vpop.permute.xlu0 %595
      %597 = vrot.lane.b32.xlu0 %v451, 112
      %v598 = vpop.permute.xlu0 %597
      %599 = vrot.lane.b32.xlu0 %v454, 112
      %v600 = vpop.permute.xlu0 %599
      %601 = vrot.lane.b32.xlu0 %v459, 112
      %v602 = vpop.permute.xlu0 %601
      %603 = vrot.lane.b32.xlu0 %v462, 112
      %v604 = vpop.permute.xlu0 %603
      %605 = vrot.lane.b32.xlu0 %v467, 112
      %v606 = vpop.permute.xlu0 %605
      %607 = vrot.lane.b32.xlu0 %v470, 112
      %v608 = vpop.permute.xlu0 %607
      %609 = vrot.lane.b32.xlu0 %v475, 112
      %v610 = vpop.permute.xlu0 %609
      %611 = vrot.lane.b32.xlu0 %v478, 112
      %v612 = vpop.permute.xlu0 %611
      %613 = vrot.lane.b32.xlu0 %v483, 112
      %v614 = vpop.permute.xlu0 %613
      %615 = vrot.lane.b32.xlu0 %v486, 112
      %v616 = vpop.permute.xlu0 %615
      %617 = vrot.lane.b32.xlu0 %v491, 112
      %v618 = vpop.permute.xlu0 %617
      %619 = vrot.lane.b32.xlu0 %v494, 112
      %v620 = vpop.permute.xlu0 %619
      %621 = vrot.lane.b32.xlu0 %v499, 112
      %v622 = vpop.permute.xlu0 %621
      %623 = vrot.lane.b32.xlu0 %v502, 112
      %v624 = vpop.permute.xlu0 %623
      %625 = vrot.lane.b32.xlu0 %v507, 112
      %v626 = vpop.permute.xlu0 %625
      %627 = vrot.lane.b32.xlu0 %v510, 112
      %v628 = vpop.permute.xlu0 %627
      %629 = vrot.lane.b32.xlu0 %v515, 112
      %v630 = vpop.permute.xlu0 %629
      %631 = vrot.lane.b32.xlu0 %v518, 112
      %v632 = vpop.permute.xlu0 %631
      %633 = vrot.lane.b32.xlu0 %v523, 112
      %v634 = vpop.permute.xlu0 %633
      %635 = vrot.lane.b32.xlu0 %v526, 112
      %v636 = vpop.permute.xlu0 %635
      %637 = vrot.lane.b32.xlu0 %v531, 112
      %v638 = vpop.permute.xlu0 %637
      %639 = vrot.lane.b32.xlu0 %v534, 112
      %v640 = vpop.permute.xlu0 %639
      %641 = vrot.lane.b32.xlu0 %v539, 112
      %v642 = vpop.permute.xlu0 %641
      %643 = vrot.lane.b32.xlu0 %v542, 112
      %v644 = vpop.permute.xlu0 %643
      %645 = vrot.lane.b32.xlu0 %v547, 112
      %v646 = vpop.permute.xlu0 %645
      %647 = vrot.lane.b32.xlu0 %v550, 112
      %v648 = vpop.permute.xlu0 %647
      %v681 = vmax.f32 %v427, %v586
      %v682 = vmax.f32 %v430, %v588
      %v683 = vmax.f32 %v435, %v590
      %v684 = vmax.f32 %v438, %v592
      %v685 = vmax.f32 %v443, %v594
      %v686 = vmax.f32 %v446, %v596
      %v687 = vmax.f32 %v451, %v598
      %v688 = vmax.f32 %v454, %v600
      %v689 = vmax.f32 %v459, %v602
      %v690 = vmax.f32 %v462, %v604
      %v691 = vmax.f32 %v467, %v606
      %v692 = vmax.f32 %v470, %v608
      %v693 = vmax.f32 %v475, %v610
      %v694 = vmax.f32 %v478, %v612
      %v695 = vmax.f32 %v483, %v614
      %v696 = vmax.f32 %v486, %v616
      %v697 = vmax.f32 %v491, %v618
      %v698 = vmax.f32 %v494, %v620
      %v699 = vmax.f32 %v499, %v622
      %v700 = vmax.f32 %v502, %v624
      %v701 = vmax.f32 %v507, %v626
      %v702 = vmax.f32 %v510, %v628
      %v703 = vmax.f32 %v515, %v630
      %v704 = vmax.f32 %v518, %v632
      %v705 = vmax.f32 %v523, %v634
      %v706 = vmax.f32 %v526, %v636
      %v707 = vmax.f32 %v531, %v638
      %v708 = vmax.f32 %v534, %v640
      %v709 = vmax.f32 %v539, %v642
      %v710 = vmax.f32 %v542, %v644
      %v711 = vmax.f32 %v547, %v646
      %v712 = vmax.f32 %v550, %v648
      %745 = vrot.lane.b32.xlu0 %v681, 96
      %v746 = vpop.permute.xlu0 %745
      %747 = vrot.lane.b32.xlu0 %v682, 96
      %v748 = vpop.permute.xlu0 %747
      %749 = vrot.lane.b32.xlu0 %v683, 96
      %v750 = vpop.permute.xlu0 %749
      %751 = vrot.lane.b32.xlu0 %v684, 96
      %v752 = vpop.permute.xlu0 %751
      %753 = vrot.lane.b32.xlu0 %v685, 96
      %v754 = vpop.permute.xlu0 %753
      %755 = vrot.lane.b32.xlu0 %v686, 96
      %v756 = vpop.permute.xlu0 %755
      %757 = vrot.lane.b32.xlu0 %v687, 96
      %v758 = vpop.permute.xlu0 %757
      %759 = vrot.lane.b32.xlu0 %v688, 96
      %v760 = vpop.permute.xlu0 %759
      %761 = vrot.lane.b32.xlu0 %v689, 96
      %v762 = vpop.permute.xlu0 %761
      %763 = vrot.lane.b32.xlu0 %v690, 96
      %v764 = vpop.permute.xlu0 %763
      %765 = vrot.lane.b32.xlu0 %v691, 96
      %v766 = vpop.permute.xlu0 %765
      %767 = vrot.lane.b32.xlu0 %v692, 96
      %v768 = vpop.permute.xlu0 %767
      %769 = vrot.lane.b32.xlu0 %v693, 96
      %v770 = vpop.permute.xlu0 %769
      %771 = vrot.lane.b32.xlu0 %v694, 96
      %v772 = vpop.permute.xlu0 %771
      %773 = vrot.lane.b32.xlu0 %v695, 96
      %v774 = vpop.permute.xlu0 %773
      %775 = vrot.lane.b32.xlu0 %v696, 96
      %v776 = vpop.permute.xlu0 %775
      %777 = vrot.lane.b32.xlu0 %v697, 96
      %v778 = vpop.permute.xlu0 %777
      %779 = vrot.lane.b32.xlu0 %v698, 96
      %v780 = vpop.permute.xlu0 %779
      %781 = vrot.lane.b32.xlu0 %v699, 96
      %v782 = vpop.permute.xlu0 %781
      %783 = vrot.lane.b32.xlu0 %v700, 96
      %v784 = vpop.permute.xlu0 %783
      %785 = vrot.lane.b32.xlu0 %v701, 96
      %v786 = vpop.permute.xlu0 %785
      %787 = vrot.lane.b32.xlu0 %v702, 96
      %v788 = vpop.permute.xlu0 %787
      %789 = vrot.lane.b32.xlu0 %v703, 96
      %v790 = vpop.permute.xlu0 %789
      %791 = vrot.lane.b32.xlu0 %v704, 96
      %v792 = vpop.permute.xlu0 %791
      %793 = vrot.lane.b32.xlu0 %v705, 96
      %v794 = vpop.permute.xlu0 %793
      %795 = vrot.lane.b32.xlu0 %v706, 96
      %v796 = vpop.permute.xlu0 %795
      %797 = vrot.lane.b32.xlu0 %v707, 96
      %v798 = vpop.permute.xlu0 %797
      %799 = vrot.lane.b32.xlu0 %v708, 96
      %v800 = vpop.permute.xlu0 %799
      %801 = vrot.lane.b32.xlu0 %v709, 96
      %v802 = vpop.permute.xlu0 %801
      %803 = vrot.lane.b32.xlu0 %v710, 96
      %v804 = vpop.permute.xlu0 %803
      %805 = vrot.lane.b32.xlu0 %v711, 96
      %v806 = vpop.permute.xlu0 %805
      %807 = vrot.lane.b32.xlu0 %v712, 96
      %v808 = vpop.permute.xlu0 %807
      %v841 = vmax.f32 %v681, %v746
      %v842 = vmax.f32 %v682, %v748
      %v843 = vmax.f32 %v683, %v750
      %v844 = vmax.f32 %v684, %v752
      %v845 = vmax.f32 %v685, %v754
      %v846 = vmax.f32 %v686, %v756
      %v847 = vmax.f32 %v687, %v758
      %v848 = vmax.f32 %v688, %v760
      %v849 = vmax.f32 %v689, %v762
      %v850 = vmax.f32 %v690, %v764
      %v851 = vmax.f32 %v691, %v766
      %v852 = vmax.f32 %v692, %v768
      %v853 = vmax.f32 %v693, %v770
      %v854 = vmax.f32 %v694, %v772
      %v855 = vmax.f32 %v695, %v774
      %v856 = vmax.f32 %v696, %v776
      %v857 = vmax.f32 %v697, %v778
      %v858 = vmax.f32 %v698, %v780
      %v859 = vmax.f32 %v699, %v782
      %v860 = vmax.f32 %v700, %v784
      %v861 = vmax.f32 %v701, %v786
      %v862 = vmax.f32 %v702, %v788
      %v863 = vmax.f32 %v703, %v790
      %v864 = vmax.f32 %v704, %v792
      %v865 = vmax.f32 %v705, %v794
      %v866 = vmax.f32 %v706, %v796
      %v867 = vmax.f32 %v707, %v798
      %v868 = vmax.f32 %v708, %v800
      %v869 = vmax.f32 %v709, %v802
      %v870 = vmax.f32 %v710, %v804
      %v871 = vmax.f32 %v711, %v806
      %v872 = vmax.f32 %v712, %v808
      %v873 = vld [vmem:[%s2] sm:$0x1]
      %v875 = vlaneseq
      %v876 = vshrl.u32 %v875, 7
      %v877 = vsub.s32 0, %v876
      %v878 = vrot.slane %v873, %v877
      %v880 = vadd.f32 %v841, %v878
      %v881 = vadd.f32 %v842, %v878
      %v882 = vadd.f32 %v843, %v878
      %v883 = vadd.f32 %v844, %v878
      %v884 = vadd.f32 %v845, %v878
      %v885 = vadd.f32 %v846, %v878
      %v886 = vadd.f32 %v847, %v878
      %v887 = vadd.f32 %v848, %v878
      %v888 = vadd.f32 %v849, %v878
      %v889 = vadd.f32 %v850, %v878
      %v890 = vadd.f32 %v851, %v878
      %v891 = vadd.f32 %v852, %v878
      %v892 = vadd.f32 %v853, %v878
      %v893 = vadd.f32 %v854, %v878
      %v894 = vadd.f32 %v855, %v878
      %v895 = vadd.f32 %v856, %v878
      %v896 = vadd.f32 %v857, %v878
      %v897 = vadd.f32 %v858, %v878
      %v898 = vadd.f32 %v859, %v878
      %v899 = vadd.f32 %v860, %v878
      %v900 = vadd.f32 %v861, %v878
      %v901 = vadd.f32 %v862, %v878
      %v902 = vadd.f32 %v863, %v878
      %v903 = vadd.f32 %v864, %v878
      %v904 = vadd.f32 %v865, %v878
      %v905 = vadd.f32 %v866, %v878
      %v906 = vadd.f32 %v867, %v878
      %v907 = vadd.f32 %v868, %v878
      %v908 = vadd.f32 %v869, %v878
      %v909 = vadd.f32 %v870, %v878
      %v910 = vadd.f32 %v871, %v878
      %v911 = vadd.f32 %v872, %v878
      %v912 = vmax.f32 %v880, 0.0
      %v913 = vmax.f32 %v881, 0.0
      %v914 = vmax.f32 %v882, 0.0
      %v915 = vmax.f32 %v883, 0.0
      %v916 = vmax.f32 %v884, 0.0
      %v917 = vmax.f32 %v885, 0.0
      %v918 = vmax.f32 %v886, 0.0
      %v919 = vmax.f32 %v887, 0.0
      %v920 = vmax.f32 %v888, 0.0
      %v921 = vmax.f32 %v889, 0.0
      %v922 = vmax.f32 %v890, 0.0
      %v923 = vmax.f32 %v891, 0.0
      %v924 = vmax.f32 %v892, 0.0
      %v925 = vmax.f32 %v893, 0.0
      %v926 = vmax.f32 %v894, 0.0
      %v927 = vmax.f32 %v895, 0.0
      %v928 = vmax.f32 %v896, 0.0
      %v929 = vmax.f32 %v897, 0.0
      %v930 = vmax.f32 %v898, 0.0
      %v931 = vmax.f32 %v899, 0.0
      %v932 = vmax.f32 %v900, 0.0
      %v933 = vmax.f32 %v901, 0.0
      %v934 = vmax.f32 %v902, 0.0
      %v935 = vmax.f32 %v903, 0.0
      %v936 = vmax.f32 %v904, 0.0
      %v937 = vmax.f32 %v905, 0.0
      %v938 = vmax.f32 %v906, 0.0
      %v939 = vmax.f32 %v907, 0.0
      %v940 = vmax.f32 %v908, 0.0
      %v941 = vmax.f32 %v909, 0.0
      %v942 = vmax.f32 %v910, 0.0
      %v943 = vmax.f32 %v911, 0.0
      %v944 = vpack.c.bf16 %v913, %v912
      %v945 = vpack.c.bf16 %v915, %v914
      %v946 = vpack.c.bf16 %v917, %v916
      %v947 = vpack.c.bf16 %v919, %v918
      %v948 = vpack.c.bf16 %v921, %v920
      %v949 = vpack.c.bf16 %v923, %v922
      %v950 = vpack.c.bf16 %v925, %v924
      %v951 = vpack.c.bf16 %v927, %v926
      %v952 = vpack.c.bf16 %v929, %v928
      %v953 = vpack.c.bf16 %v931, %v930
      %v954 = vpack.c.bf16 %v933, %v932
      %v955 = vpack.c.bf16 %v935, %v934
      %v956 = vpack.c.bf16 %v937, %v936
      %v957 = vpack.c.bf16 %v939, %v938
      %v958 = vpack.c.bf16 %v941, %v940
      %v959 = vpack.c.bf16 %v943, %v942
      %v976 = vunpack.c.l.b16 %v944
      %v977 = vunpack.c.h.b16 %v944
      %v978 = vunpack.c.l.b16 %v945
      %v979 = vunpack.c.h.b16 %v945
      %v980 = vunpack.c.l.b16 %v946
      %v981 = vunpack.c.h.b16 %v946
      %v982 = vunpack.c.l.b16 %v947
      %v983 = vunpack.c.h.b16 %v947
      %v984 = vunpack.c.l.b16 %v948
      %v985 = vunpack.c.h.b16 %v948
      %v986 = vunpack.c.l.b16 %v949
      %v987 = vunpack.c.h.b16 %v949
      %v988 = vunpack.c.l.b16 %v950
      %v989 = vunpack.c.h.b16 %v950
      %v990 = vunpack.c.l.b16 %v951
      %v991 = vunpack.c.h.b16 %v951
      %v992 = vunpack.c.l.b16 %v952
      %v993 = vunpack.c.h.b16 %v952
      %v994 = vunpack.c.l.b16 %v953
      %v995 = vunpack.c.h.b16 %v953
      %v996 = vunpack.c.l.b16 %v954
      %v997 = vunpack.c.h.b16 %v954
      %v998 = vunpack.c.l.b16 %v955
      %v999 = vunpack.c.h.b16 %v955
      %v1000 = vunpack.c.l.b16 %v956
      %v1001 = vunpack.c.h.b16 %v956
      %v1002 = vunpack.c.l.b16 %v957
      %v1003 = vunpack.c.h.b16 %v957
      %v1004 = vunpack.c.l.b16 %v958
      %v1005 = vunpack.c.h.b16 %v958
      %v1006 = vunpack.c.l.b16 %v959
      %v1007 = vunpack.c.h.b16 %v959
      %v1008 = vpack.c.b16 %v976, %v976
      %v1009 = vpack.c.b16 %v977, %v977
      %v1010 = vpack.c.b16 %v978, %v978
      %v1011 = vpack.c.b16 %v979, %v979
      %v1012 = vpack.c.b16 %v980, %v980
      %v1013 = vpack.c.b16 %v981, %v981
      %v1014 = vpack.c.b16 %v982, %v982
      %v1015 = vpack.c.b16 %v983, %v983
      %v1016 = vpack.c.b16 %v984, %v984
      %v1017 = vpack.c.b16 %v985, %v985
      %v1018 = vpack.c.b16 %v986, %v986
      %v1019 = vpack.c.b16 %v987, %v987
      %v1020 = vpack.c.b16 %v988, %v988
      %v1021 = vpack.c.b16 %v989, %v989
      %v1022 = vpack.c.b16 %v990, %v990
      %v1023 = vpack.c.b16 %v991, %v991
      %v1024 = vpack.c.b16 %v992, %v992
      %v1025 = vpack.c.b16 %v993, %v993
      %v1026 = vpack.c.b16 %v994, %v994
      %v1027 = vpack.c.b16 %v995, %v995
      %v1028 = vpack.c.b16 %v996, %v996
      %v1029 = vpack.c.b16 %v997, %v997
      %v1030 = vpack.c.b16 %v998, %v998
      %v1031 = vpack.c.b16 %v999, %v999
      %v1032 = vpack.c.b16 %v1000, %v1000
      %v1033 = vpack.c.b16 %v1001, %v1001
      %v1034 = vpack.c.b16 %v1002, %v1002
      %v1035 = vpack.c.b16 %v1003, %v1003
      %v1036 = vpack.c.b16 %v1004, %v1004
      %v1037 = vpack.c.b16 %v1005, %v1005
      %v1038 = vpack.c.b16 %v1006, %v1006
      %v1039 = vpack.c.b16 %v1007, %v1007
      %vm1072 = vcmask 125952
      %1073 = vst.msk [vmem:[%s172] sm:$0xf] %vm1072, %v1008
      %1074 = vst.msk [vmem:[%s172 + $0x4] sm:$0xf] %vm1072, %v1009
      %1075 = vst.msk [vmem:[%s172 + $0x8] sm:$0xf] %vm1072, %v1010
      %1076 = vst.msk [vmem:[%s172 + $0xc] sm:$0xf] %vm1072, %v1011
      %1077 = vst.msk [vmem:[%s172 + $0x10] sm:$0xf] %vm1072, %v1012
      %1078 = vst.msk [vmem:[%s172 + $0x14] sm:$0xf] %vm1072, %v1013
      %1079 = vst.msk [vmem:[%s172 + $0x18] sm:$0xf] %vm1072, %v1014
      %1080 = vst.msk [vmem:[%s172 + $0x1c] sm:$0xf] %vm1072, %v1015
      %1081 = vst.msk [vmem:[%s172 + $0x20] sm:$0xf] %vm1072, %v1016
      %1082 = vst.msk [vmem:[%s172 + $0x24] sm:$0xf] %vm1072, %v1017
      %1083 = vst.msk [vmem:[%s172 + $0x28] sm:$0xf] %vm1072, %v1018
      %1084 = vst.msk [vmem:[%s172 + $0x2c] sm:$0xf] %vm1072, %v1019
      %1085 = vst.msk [vmem:[%s172 + $0x30] sm:$0xf] %vm1072, %v1020
      %1086 = vst.msk [vmem:[%s172 + $0x34] sm:$0xf] %vm1072, %v1021
      %1087 = vst.msk [vmem:[%s172 + $0x38] sm:$0xf] %vm1072, %v1022
      %1088 = vst.msk [vmem:[%s172 + $0x3c] sm:$0xf] %vm1072, %v1023
      %1089 = vst.msk [vmem:[%s172 + $0x40] sm:$0xf] %vm1072, %v1024
      %1090 = vst.msk [vmem:[%s172 + $0x44] sm:$0xf] %vm1072, %v1025
      %1091 = vst.msk [vmem:[%s172 + $0x48] sm:$0xf] %vm1072, %v1026
      %1092 = vst.msk [vmem:[%s172 + $0x4c] sm:$0xf] %vm1072, %v1027
      %1093 = vst.msk [vmem:[%s172 + $0x50] sm:$0xf] %vm1072, %v1028
      %1094 = vst.msk [vmem:[%s172 + $0x54] sm:$0xf] %vm1072, %v1029
      %1095 = vst.msk [vmem:[%s172 + $0x58] sm:$0xf] %vm1072, %v1030
      %1096 = vst.msk [vmem:[%s172 + $0x5c] sm:$0xf] %vm1072, %v1031
      %1097 = vst.msk [vmem:[%s172 + $0x60] sm:$0xf] %vm1072, %v1032
      %1098 = vst.msk [vmem:[%s172 + $0x64] sm:$0xf] %vm1072, %v1033
      %1099 = vst.msk [vmem:[%s172 + $0x68] sm:$0xf] %vm1072, %v1034
      %1100 = vst.msk [vmem:[%s172 + $0x6c] sm:$0xf] %vm1072, %v1035
      %1101 = vst.msk [vmem:[%s172 + $0x70] sm:$0xf] %vm1072, %v1036
      %1102 = vst.msk [vmem:[%s172 + $0x74] sm:$0xf] %vm1072, %v1037
      %1103 = vst.msk [vmem:[%s172 + $0x78] sm:$0xf] %vm1072, %v1038
      %1104 = vst.msk [vmem:[%s172 + $0x7c] sm:$0xf] %vm1072, %v1039
      %s1105 = smul.u32 32, %s14
      %p1106 = scmp.lt.s32.totalorder %s1105, 63
      %s1107 = scalar_select %p1106, %s1105, 63
      %s1108 = smul.addr %s1107, 4
      %s1109 = scalar_lea.vmem %s3, %s1108
      // Predicated region
      $region33: #{cnn_forward.3} parent=31 // pred_check
        %p1110 = pneg %p100
      $region34: #{cnn_forward.3} parent=31 // pred_check_branch
        %1112 = sbr.rel (%p1110) target = $region36
      $region35: #{cnn_forward.3} parent=31 // pred_region
        %s1113 = smul.u32 32, %s14
      $region36: #{cnn_forward.3} parent=31 // pred_fallthru
        _
    $region32: #{cnn_forward.3} parent=5 // pred_fallthru
      _
    %p1114 = scmp.le.s32.totalorder 2, %s9
    // Predicated region
    $region37: #{cnn_forward.3} parent=5 // pred_check
      %p1115 = pneg %p1114
    $region38: #{cnn_forward.3} parent=5 // pred_check_branch
      %1117 = sbr.rel (%p1115) target = $region40
    $region39: #{cnn_forward.3} parent=5 // pred_region
      %s1118 = ssub.s32 %s9, 2
      // Predicated region
      $region41: #{cnn_forward.3} parent=39 // pred_check
        %p1119 = pneg %p106
      $region42: #{cnn_forward.3} parent=39 // pred_check_branch
        %1121 = sbr.rel (%p1119) target = $region44
      $region43: #{cnn_forward.3} parent=39 // pred_region
        %s1122 = smul.u32 32, %s15
        %p1123 = scmp.lt.s32.totalorder %s1122, 63
        %s1124 = scalar_select %p1123, %s1122, 63
        %s1125 = smul.addr %s1124, 4
        %s1126 = scalar_lea.vmem %s3, %s1125
      $region44: #{cnn_forward.3} parent=39 // pred_fallthru
        _
    $region40: #{cnn_forward.3} parent=5 // pred_fallthru
      _
  $region6: #{cnn_forward.3} parent=0 // loop_footer
    %s13 = sadd.s32 1, %s9
  $region7: #{cnn_forward.3} parent=0 // loop_footer_branch
    %8 = sbr.rel target = $region3
  $region8: #{cnn_forward.3} parent=0 // loop_exit
    _

// kernel: cnn_forward.4
$region0: #{cnn_forward.4}
  #allocation0 [shape = 'u32[]', space=smem, size = 0x4, offset = 0x4, fixed_abs, tag = 'smem constant byte address 0x4 - core index']
  #allocation1 [shape = 'u32[144,128]{1,0:T(1,128)}', space=vmem, size = 0x12000, scoped, tag = 'internal scratch']
  %s0 = inlined_call_operand.vmem [shape: bf16[128,1600], index: 0, kind: input, shape index: {}]
  %s1 = inlined_call_operand.vmem [shape: bf16[1600,128], index: 1, kind: input, shape index: {}]
  %s2 = inlined_call_operand.vmem [shape: f32[1,32], index: 2, kind: input, shape index: {}]
  %s3 = inlined_call_operand.vmem [shape: bf16[128,32], index: 3, kind: output, shape index: {}]
  %s4 = sld [smem:[#allocation0]]
  $region45: #{cnn_forward.4} parent=0
    _
  %s6 = ssub.s32 1, %s4
  %s7 = scalar_select 0, %s6, %s4
  loop: start=0, step=1, limit=4
  $region2: #{cnn_forward.4} parent=0 // loop_pre_header
    _
  $region3: #{cnn_forward.4} parent=0 // loop_header
    %s9 = sphi 0, %s13
    %p10 = scmp.ge.s32.totalorder %s9, 4
    %s19 = sphi 0, %s21
    %s22 = sphi 0, %s19
    %s23 = sphi 0, %s22
    %s39 = sphi 0, %s23
    %s43 = sphi 0, %s43
    %s45 = sphi 0, %s43
    %s46 = sphi 0, %s45
    %s60 = sphi 0, %s46
    %s64 = sphi 0, %s64
    %s66 = sphi 0, %s64
    %s67 = sphi 0, %s66
    %s81 = sphi 0, %s67
    %s87 = sphi 0, %s89
    %s90 = sphi 0, %s87
    %s91 = sphi 0, %s90
    %s107 = sphi 0, %s91
  $region4: #{cnn_forward.4} parent=0 // loop_header_branch
    %12 = sbr.rel (%p10) target = $region8
  $region5: #{cnn_forward.4} parent=0 // loop_body
    %s14 = ssub.s32 %s9, 1
    %s15 = ssub.s32 %s9, 2
    %s16 = sadd.s32 %s9, 1
    %s17 = ssub.s32 %s9, %s16
    %p18 = scmp.eq.s32.totalorder %s17, 0
    %s20 = sadd.s32 %s19, 1
    %s21 = scalar_select %p18, %s19, %s20
    %p24 = pneg %p18
    %p25 = scmp.eq.s32.totalorder %s9, 1
    %p26 = por %p24, %p25
    %p27 = scmp.ne.s32.totalorder %s19, %s22
    %p28 = scmp.eq.s32.totalorder %s9, 0
    %p29 = por %p27, %p28
    %p30 = scmp.ne.s32.totalorder %s19, %s22
    %p31 = scmp.eq.s32.totalorder %s14, 1
    %p32 = por %p30, %p31
    %p33 = scmp.ne.s32.totalorder %s22, %s23
    %p34 = scmp.eq.s32.totalorder %s14, 0
    %p35 = por %p33, %p34
    %p36 = scmp.ne.s32.totalorder %s22, %s23
    %p37 = scmp.eq.s32.totalorder %s15, 1
    %p38 = por %p36, %p37
    %p40 = scmp.ne.s32.totalorder %s23, %s39
    %p41 = scmp.eq.s32.totalorder %s15, 0
    %p42 = por %p40, %p41
    %s44 = sadd.s32 %s43, 1
    %p47 = scmp.eq.s32.totalorder %s9, 1
    %p48 = scmp.ne.s32.totalorder %s43, %s45
    %p49 = scmp.eq.s32.totalorder %s9, 0
    %p50 = por %p48, %p49
    %p51 = scmp.ne.s32.totalorder %s43, %s45
    %p52 = scmp.eq.s32.totalorder %s14, 1
    %p53 = por %p51, %p52
    %p54 = scmp.ne.s32.totalorder %s45, %s46
    %p55 = scmp.eq.s32.totalorder %s14, 0
    %p56 = por %p54, %p55
    %p57 = scmp.ne.s32.totalorder %s45, %s46
    %p58 = scmp.eq.s32.totalorder %s15, 1
    %p59 = por %p57, %p58
    %p61 = scmp.ne.s32.totalorder %s46, %s60
    %p62 = scmp.eq.s32.totalorder %s15, 0
    %p63 = por %p61, %p62
    %s65 = sadd.s32 %s64, 1
    %p68 = scmp.eq.s32.totalorder %s9, 1
    %p69 = scmp.ne.s32.totalorder %s64, %s66
    %p70 = scmp.eq.s32.totalorder %s9, 0
    %p71 = por %p69, %p70
    %p72 = scmp.ne.s32.totalorder %s64, %s66
    %p73 = scmp.eq.s32.totalorder %s14, 1
    %p74 = por %p72, %p73
    %p75 = scmp.ne.s32.totalorder %s66, %s67
    %p76 = scmp.eq.s32.totalorder %s14, 0
    %p77 = por %p75, %p76
    %p78 = scmp.ne.s32.totalorder %s66, %s67
    %p79 = scmp.eq.s32.totalorder %s15, 1
    %p80 = por %p78, %p79
    %p82 = scmp.ne.s32.totalorder %s67, %s81
    %p83 = scmp.eq.s32.totalorder %s15, 0
    %p84 = por %p82, %p83
    %s85 = ssub.s32 %s9, %s16
    %p86 = scmp.eq.s32.totalorder %s85, 0
    %s88 = sadd.s32 %s87, 1
    %s89 = scalar_select %p86, %s87, %s88
    %p92 = pneg %p86
    %p93 = scmp.eq.s32.totalorder %s9, 1
    %p94 = por %p92, %p93
    %p95 = scmp.ne.s32.totalorder %s87, %s90
    %p96 = scmp.eq.s32.totalorder %s9, 0
    %p97 = por %p95, %p96
    %p98 = scmp.ne.s32.totalorder %s87, %s90
    %p99 = scmp.eq.s32.totalorder %s14, 1
    %p100 = por %p98, %p99
    %p101 = scmp.ne.s32.totalorder %s90, %s91
    %p102 = scmp.eq.s32.totalorder %s14, 0
    %p103 = por %p101, %p102
    %p104 = scmp.ne.s32.totalorder %s90, %s91
    %p105 = scmp.eq.s32.totalorder %s15, 1
    %p106 = por %p104, %p105
    %p108 = scmp.ne.s32.totalorder %s91, %s107
    %p109 = scmp.eq.s32.totalorder %s15, 0
    %p110 = por %p108, %p109
    %p111 = scmp.le.s32.totalorder 1, %s9
    %p112 = scmp.lt.s32.totalorder %s9, 3
    %p113 = pnand %p111, %p112
    %p114 = pneg %p113
    // Predicated region
    $region9: #{cnn_forward.4} parent=5 // pred_check
      _
    $region10: #{cnn_forward.4} parent=5 // pred_check_branch
      %116 = sbr.rel (%p113) target = $region12
    $region11: #{cnn_forward.4} parent=5 // pred_region
      %s117 = ssub.s32 %s9, 1
      // Predicated region
      $region13: #{cnn_forward.4} parent=11 // pred_check
        %p118 = pneg %p56
      $region14: #{cnn_forward.4} parent=11 // pred_check_branch
        %120 = sbr.rel (%p118) target = $region16
      $region15: #{cnn_forward.4} parent=11 // pred_region
        _
      $region16: #{cnn_forward.4} parent=11 // pred_fallthru
        _
      // Predicated region
      $region17: #{cnn_forward.4} parent=11 // pred_check
        %p121 = pneg %p77
      $region18: #{cnn_forward.4} parent=11 // pred_check_branch
        %123 = sbr.rel (%p121) target = $region20
      $region19: #{cnn_forward.4} parent=11 // pred_region
        _
      $region20: #{cnn_forward.4} parent=11 // pred_fallthru
        _
    $region12: #{cnn_forward.4} parent=5 // pred_fallthru
      _
    %p124 = scmp.lt.s32.totalorder %s9, 2
    // Predicated region
    $region21: #{cnn_forward.4} parent=5 // pred_check
      %p125 = pneg %p124
    $region22: #{cnn_forward.4} parent=5 // pred_check_branch
      %127 = sbr.rel (%p125) target = $region24
    $region23: #{cnn_forward.4} parent=5 // pred_region
      // Predicated region
      $region25: #{cnn_forward.4} parent=23 // pred_check
        %p128 = pneg %p29
      $region26: #{cnn_forward.4} parent=23 // pred_check_branch
        %130 = sbr.rel (%p128) target = $region28
      $region27: #{cnn_forward.4} parent=23 // pred_region
        %s131 = smul.u32 8, %s9
        %p132 = scmp.lt.s32.totalorder %s131, 15
        %s133 = scalar_select %p132, %s131, 15
        %s134 = smul.addr %s133, 13
        %s135 = smul.addr %s134, 4
        %s136 = scalar_lea.vmem %s0, %s135
        %s137 = smul.u32 8, %s9
      $region28: #{cnn_forward.4} parent=23 // pred_fallthru
        _
    $region24: #{cnn_forward.4} parent=5 // pred_fallthru
      _
    %p138 = scmp.le.s32.totalorder 1, %s9
    %p139 = scmp.lt.s32.totalorder %s9, 3
    %p140 = pnand %p138, %p139
    %p141 = pneg %p140
    // Predicated region
    $region29: #{cnn_forward.4} parent=5 // pred_check
      _
    $region30: #{cnn_forward.4} parent=5 // pred_check_branch
      %143 = sbr.rel (%p140) target = $region32
    $region31: #{cnn_forward.4} parent=5 // pred_region
      %s144 = ssub.s32 %s9, 1
      %s145 = smul.u32 8, %s14
      %p146 = scmp.lt.s32.totalorder %s145, 15
      %s147 = scalar_select %p146, %s145, 15
      %s148 = smul.addr %s147, 13
      %s149 = smul.addr %s148, 4
      %s150 = scalar_lea.vmem %s0, %s149
      %p151 = pneg %p35
      %p152 = pneg %p32
      %p153 = pneg %p56
      %p154 = pneg %p53
      %p155 = pneg %p77
      %p156 = pneg %p74
      %p157 = pneg %p103
      %p158 = pneg %p100
      %s159 = smul.u32 8, %s14
      %p160 = scmp.lt.s32.totalorder %s159, 15
      %s161 = scalar_select %p160, %s159, 15
      %s162 = smul.addr %s161, 4
      %s163 = scalar_lea.vmem %s3, %s162
      %s164 = smul.u32 8, %s14
      %p165 = scmp.lt.s32.totalorder %s164, 15
      %s166 = scalar_select %p165, %s164, 15
      %s167 = smul.addr %s166, 13
      %s168 = smul.addr %s167, 4
      %s169 = scalar_lea.vmem %s0, %s168
      %s170 = smul.u32 8, %s14
      %s171 = smul.u32 8, %s14
      %p172 = scmp.lt.s32.totalorder %s171, 15
      %s173 = scalar_select %p172, %s171, 15
      %s174 = smul.addr %s173, 4
      %s175 = scalar_lea.vmem %s3, %s174
      %s176 = smul.u32 8, %s14
      %v178 = vld [vmem:[%s169] sm:$0xff]
      %v179 = vld [vmem:[%s169 + $0x8] sm:$0xff]
      %v180 = vld [vmem:[%s169 + $0x10] sm:$0xff]
      %v181 = vld [vmem:[%s169 + $0x18] sm:$0xff]
      %v182 = vld [vmem:[%s169 + $0x20] sm:$0xff]
      %v183 = vld [vmem:[%s169 + $0x28] sm:$0xff]
      %v184 = vld [vmem:[%s169 + $0x30] sm:$0xf]
      %v185 = vld [vmem:[%s169 + $0x34] sm:$0xff]
      %v186 = vld [vmem:[%s169 + $0x3c] sm:$0xff]
      %v187 = vld [vmem:[%s169 + $0x44] sm:$0xff]
      %v188 = vld [vmem:[%s169 + $0x4c] sm:$0xff]
      %v189 = vld [vmem:[%s169 + $0x54] sm:$0xff]
      %v190 = vld [vmem:[%s169 + $0x5c] sm:$0xff]
      %v191 = vld [vmem:[%s169 + $0x64] sm:$0xf]
      %v192 = vld [vmem:[%s169 + $0x68] sm:$0xff]
      %v193 = vld [vmem:[%s169 + $0x70] sm:$0xff]
      %v194 = vld [vmem:[%s169 + $0x78] sm:$0xff]
      %v195 = vld [vmem:[%s169 + $0x80] sm:$0xff]
      %v196 = vld [vmem:[%s169 + $0x88] sm:$0xff]
      %v197 = vld [vmem:[%s169 + $0x90] sm:$0xff]
      %v198 = vld [vmem:[%s169 + $0x98] sm:$0xf]
      %v199 = vld [vmem:[%s169 + $0x9c] sm:$0xff]
      %v200 = vld [vmem:[%s169 + $0xa4] sm:$0xff]
      %v201 = vld [vmem:[%s169 + $0xac] sm:$0xff]
      %v202 = vld [vmem:[%s169 + $0xb4] sm:$0xff]
      %v203 = vld [vmem:[%s169 + $0xbc] sm:$0xff]
      %v204 = vld [vmem:[%s169 + $0xc4] sm:$0xff]
      %v205 = vld [vmem:[%s169 + $0xcc] sm:$0xf]
      %v206 = vld [vmem:[%s169 + $0xd0] sm:$0xff]
      %v207 = vld [vmem:[%s169 + $0xd8] sm:$0xff]
      %v208 = vld [vmem:[%s169 + $0xe0] sm:$0xff]
      %v209 = vld [vmem:[%s169 + $0xe8] sm:$0xff]
      %v210 = vld [vmem:[%s169 + $0xf0] sm:$0xff]
      %v211 = vld [vmem:[%s169 + $0xf8] sm:$0xff]
      %v212 = vld [vmem:[%s169 + $0x100] sm:$0xf]
      %v213 = vld [vmem:[%s169 + $0x104] sm:$0xff]
      %v214 = vld [vmem:[%s169 + $0x10c] sm:$0xff]
      %v215 = vld [vmem:[%s169 + $0x114] sm:$0xff]
      %v216 = vld [vmem:[%s169 + $0x11c] sm:$0xff]
      %v217 = vld [vmem:[%s169 + $0x124] sm:$0xff]
      %v218 = vld [vmem:[%s169 + $0x12c] sm:$0xff]
      %v219 = vld [vmem:[%s169 + $0x134] sm:$0xf]
      %v220 = vld [vmem:[%s169 + $0x138] sm:$0xff]
      %v221 = vld [vmem:[%s169 + $0x140] sm:$0xff]
      %v222 = vld [vmem:[%s169 + $0x148] sm:$0xff]
      %v223 = vld [vmem:[%s169 + $0x150] sm:$0xff]
      %v224 = vld [vmem:[%s169 + $0x158] sm:$0xff]
      %v225 = vld [vmem:[%s169 + $0x160] sm:$0xff]
      %v226 = vld [vmem:[%s169 + $0x168] sm:$0xf]
      %v227 = vld [vmem:[%s169 + $0x16c] sm:$0xff]
      %v228 = vld [vmem:[%s169 + $0x174] sm:$0xff]
      %v229 = vld [vmem:[%s169 + $0x17c] sm:$0xff]
      %v230 = vld [vmem:[%s169 + $0x184] sm:$0xff]
      %v231 = vld [vmem:[%s169 + $0x18c] sm:$0xff]
      %v232 = vld [vmem:[%s169 + $0x194] sm:$0xff]
      %v233 = vld [vmem:[%s169 + $0x19c] sm:$0xf]
      %v234 = vld [vmem:[%s1] sm:$0xf]
      %v235 = vld [vmem:[%s1 + $0x4] sm:$0xf]
      %v236 = vld [vmem:[%s1 + $0x8] sm:$0xf]
      %v237 = vld [vmem:[%s1 + $0xc] sm:$0xf]
      %v238 = vld [vmem:[%s1 + $0x10] sm:$0xf]
      %v239 = vld [vmem:[%s1 + $0x14] sm:$0xf]
      %v240 = vld [vmem:[%s1 + $0x18] sm:$0xf]
      %v241 = vld [vmem:[%s1 + $0x1c] sm:$0xf]
      %v242 = vld [vmem:[%s1 + $0x20] sm:$0xf]
      %v243 = vld [vmem:[%s1 + $0x24] sm:$0xf]
      %v244 = vld [vmem:[%s1 + $0x28] sm:$0xf]
      %v245 = vld [vmem:[%s1 + $0x2c] sm:$0xf]
      %v246 = vld [vmem:[%s1 + $0x30] sm:$0xf]
      %v247 = vld [vmem:[%s1 + $0x34] sm:$0xf]
      %v248 = vld [vmem:[%s1 + $0x38] sm:$0xf]
      %v249 = vld [vmem:[%s1 + $0x3c] sm:$0xf]
      %v250 = vld [vmem:[%s1 + $0x40] sm:$0xf]
      %v251 = vld [vmem:[%s1 + $0x44] sm:$0xf]
      %v252 = vld [vmem:[%s1 + $0x48] sm:$0xf]
      %v253 = vld [vmem:[%s1 + $0x4c] sm:$0xf]
      %v254 = vld [vmem:[%s1 + $0x50] sm:$0xf]
      %v255 = vld [vmem:[%s1 + $0x54] sm:$0xf]
      %v256 = vld [vmem:[%s1 + $0x58] sm:$0xf]
      %v257 = vld [vmem:[%s1 + $0x5c] sm:$0xf]
      %v258 = vld [vmem:[%s1 + $0x60] sm:$0xf]
      %v259 = vld [vmem:[%s1 + $0x64] sm:$0xf]
      %v260 = vld [vmem:[%s1 + $0x68] sm:$0xf]
      %v261 = vld [vmem:[%s1 + $0x6c] sm:$0xf]
      %v262 = vld [vmem:[%s1 + $0x70] sm:$0xf]
      %v263 = vld [vmem:[%s1 + $0x74] sm:$0xf]
      %v264 = vld [vmem:[%s1 + $0x78] sm:$0xf]
      %v265 = vld [vmem:[%s1 + $0x7c] sm:$0xf]
      %v266 = vld [vmem:[%s1 + $0x80] sm:$0xf]
      %v267 = vld [vmem:[%s1 + $0x84] sm:$0xf]
      %v268 = vld [vmem:[%s1 + $0x88] sm:$0xf]
      %v269 = vld [vmem:[%s1 + $0x8c] sm:$0xf]
      %v270 = vld [vmem:[%s1 + $0x90] sm:$0xf]
      %v271 = vld [vmem:[%s1 + $0x94] sm:$0xf]
      %v272 = vld [vmem:[%s1 + $0x98] sm:$0xf]
      %v273 = vld [vmem:[%s1 + $0x9c] sm:$0xf]
      %v274 = vld [vmem:[%s1 + $0xa0] sm:$0xf]
      %v275 = vld [vmem:[%s1 + $0xa4] sm:$0xf]
      %v276 = vld [vmem:[%s1 + $0xa8] sm:$0xf]
      %v277 = vld [vmem:[%s1 + $0xac] sm:$0xf]
      %v278 = vld [vmem:[%s1 + $0xb0] sm:$0xf]
      %v279 = vld [vmem:[%s1 + $0xb4] sm:$0xf]
      %v280 = vld [vmem:[%s1 + $0xb8] sm:$0xf]
      %v281 = vld [vmem:[%s1 + $0xbc] sm:$0xf]
      %v282 = vld [vmem:[%s1 + $0xc0] sm:$0xf]
      %v283 = vld [vmem:[%s1 + $0xc4] sm:$0xf]
      %v284 = vld [vmem:[%s1 + $0xc8] sm:$0xf]
      %v285 = vld [vmem:[%s1 + $0xcc] sm:$0xf]
      %v286 = vld [vmem:[%s1 + $0xd0] sm:$0xf]
      %v287 = vld [vmem:[%s1 + $0xd4] sm:$0xf]
      %v288 = vld [vmem:[%s1 + $0xd8] sm:$0xf]
      %v289 = vld [vmem:[%s1 + $0xdc] sm:$0xf]
      %v290 = vld [vmem:[%s1 + $0xe0] sm:$0xf]
      %v291 = vld [vmem:[%s1 + $0xe4] sm:$0xf]
      %v292 = vld [vmem:[%s1 + $0xe8] sm:$0xf]
      %v293 = vld [vmem:[%s1 + $0xec] sm:$0xf]
      %v294 = vld [vmem:[%s1 + $0xf0] sm:$0xf]
      %v295 = vld [vmem:[%s1 + $0xf4] sm:$0xf]
      %v296 = vld [vmem:[%s1 + $0xf8] sm:$0xf]
      %v297 = vld [vmem:[%s1 + $0xfc] sm:$0xf]
      %v298 = vld [vmem:[%s1 + $0x100] sm:$0xf]
      %v299 = vld [vmem:[%s1 + $0x104] sm:$0xf]
      %v300 = vld [vmem:[%s1 + $0x108] sm:$0xf]
      %v301 = vld [vmem:[%s1 + $0x10c] sm:$0xf]
      %v302 = vld [vmem:[%s1 + $0x110] sm:$0xf]
      %v303 = vld [vmem:[%s1 + $0x114] sm:$0xf]
      %v304 = vld [vmem:[%s1 + $0x118] sm:$0xf]
      %v305 = vld [vmem:[%s1 + $0x11c] sm:$0xf]
      %v306 = vld [vmem:[%s1 + $0x120] sm:$0xf]
      %v307 = vld [vmem:[%s1 + $0x124] sm:$0xf]
      %v308 = vld [vmem:[%s1 + $0x128] sm:$0xf]
      %v309 = vld [vmem:[%s1 + $0x12c] sm:$0xf]
      %v310 = vld [vmem:[%s1 + $0x130] sm:$0xf]
      %v311 = vld [vmem:[%s1 + $0x134] sm:$0xf]
      %v312 = vld [vmem:[%s1 + $0x138] sm:$0xf]
      %v313 = vld [vmem:[%s1 + $0x13c] sm:$0xf]
      %v314 = vld [vmem:[%s1 + $0x140] sm:$0xf]
      %v315 = vld [vmem:[%s1 + $0x144] sm:$0xf]
      %v316 = vld [vmem:[%s1 + $0x148] sm:$0xf]
      %v317 = vld [vmem:[%s1 + $0x14c] sm:$0xf]
      %v318 = vld [vmem:[%s1 + $0x150] sm:$0xf]
      %v319 = vld [vmem:[%s1 + $0x154] sm:$0xf]
      %v320 = vld [vmem:[%s1 + $0x158] sm:$0xf]
      %v321 = vld [vmem:[%s1 + $0x15c] sm:$0xf]
      %v322 = vld [vmem:[%s1 + $0x160] sm:$0xf]
      %v323 = vld [vmem:[%s1 + $0x164] sm:$0xf]
      %v324 = vld [vmem:[%s1 + $0x168] sm:$0xf]
      %v325 = vld [vmem:[%s1 + $0x16c] sm:$0xf]
      %v326 = vld [vmem:[%s1 + $0x170] sm:$0xf]
      %v327 = vld [vmem:[%s1 + $0x174] sm:$0xf]
      %v328 = vld [vmem:[%s1 + $0x178] sm:$0xf]
      %v329 = vld [vmem:[%s1 + $0x17c] sm:$0xf]
      %v330 = vld [vmem:[%s1 + $0x180] sm:$0xf]
      %v331 = vld [vmem:[%s1 + $0x184] sm:$0xf]
      %v332 = vld [vmem:[%s1 + $0x188] sm:$0xf]
      %v333 = vld [vmem:[%s1 + $0x18c] sm:$0xf]
      %v334 = vld [vmem:[%s1 + $0x190] sm:$0xf]
      %v335 = vld [vmem:[%s1 + $0x194] sm:$0xf]
      %v336 = vld [vmem:[%s1 + $0x198] sm:$0xf]
      %v337 = vld [vmem:[%s1 + $0x19c] sm:$0xf]
      %v338 = vld [vmem:[%s1 + $0x1a0] sm:$0xf]
      %v339 = vld [vmem:[%s1 + $0x1a4] sm:$0xf]
      %v340 = vld [vmem:[%s1 + $0x1a8] sm:$0xf]
      %v341 = vld [vmem:[%s1 + $0x1ac] sm:$0xf]
      %v342 = vld [vmem:[%s1 + $0x1b0] sm:$0xf]
      %v343 = vld [vmem:[%s1 + $0x1b4] sm:$0xf]
      %v344 = vld [vmem:[%s1 + $0x1b8] sm:$0xf]
      %v345 = vld [vmem:[%s1 + $0x1bc] sm:$0xf]
      %v346 = vld [vmem:[%s1 + $0x1c0] sm:$0xf]
      %v347 = vld [vmem:[%s1 + $0x1c4] sm:$0xf]
      %v348 = vld [vmem:[%s1 + $0x1c8] sm:$0xf]
      %v349 = vld [vmem:[%s1 + $0x1cc] sm:$0xf]
      %v350 = vld [vmem:[%s1 + $0x1d0] sm:$0xf]
      %v351 = vld [vmem:[%s1 + $0x1d4] sm:$0xf]
      %v352 = vld [vmem:[%s1 + $0x1d8] sm:$0xf]
      %v353 = vld [vmem:[%s1 + $0x1dc] sm:$0xf]
      %v354 = vld [vmem:[%s1 + $0x1e0] sm:$0xf]
      %v355 = vld [vmem:[%s1 + $0x1e4] sm:$0xf]
      %v356 = vld [vmem:[%s1 + $0x1e8] sm:$0xf]
      %v357 = vld [vmem:[%s1 + $0x1ec] sm:$0xf]
      %v358 = vld [vmem:[%s1 + $0x1f0] sm:$0xf]
      %v359 = vld [vmem:[%s1 + $0x1f4] sm:$0xf]
      %v360 = vld [vmem:[%s1 + $0x1f8] sm:$0xf]
      %v361 = vld [vmem:[%s1 + $0x1fc] sm:$0xf]
      %v362 = vld [vmem:[%s1 + $0x200] sm:$0xf]
      %v363 = vld [vmem:[%s1 + $0x204] sm:$0xf]
      %v364 = vld [vmem:[%s1 + $0x208] sm:$0xf]
      %v365 = vld [vmem:[%s1 + $0x20c] sm:$0xf]
      %v366 = vld [vmem:[%s1 + $0x210] sm:$0xf]
      %v367 = vld [vmem:[%s1 + $0x214] sm:$0xf]
      %v368 = vld [vmem:[%s1 + $0x218] sm:$0xf]
      %v369 = vld [vmem:[%s1 + $0x21c] sm:$0xf]
      %v370 = vld [vmem:[%s1 + $0x220] sm:$0xf]
      %v371 = vld [vmem:[%s1 + $0x224] sm:$0xf]
      %v372 = vld [vmem:[%s1 + $0x228] sm:$0xf]
      %v373 = vld [vmem:[%s1 + $0x22c] sm:$0xf]
      %v374 = vld [vmem:[%s1 + $0x230] sm:$0xf]
      %v375 = vld [vmem:[%s1 + $0x234] sm:$0xf]
      %v376 = vld [vmem:[%s1 + $0x238] sm:$0xf]
      %v377 = vld [vmem:[%s1 + $0x23c] sm:$0xf]
      %v378 = vld [vmem:[%s1 + $0x240] sm:$0xf]
      %v379 = vld [vmem:[%s1 + $0x244] sm:$0xf]
      %v380 = vld [vmem:[%s1 + $0x248] sm:$0xf]
      %v381 = vld [vmem:[%s1 + $0x24c] sm:$0xf]
      %v382 = vld [vmem:[%s1 + $0x250] sm:$0xf]
      %v383 = vld [vmem:[%s1 + $0x254] sm:$0xf]
      %v384 = vld [vmem:[%s1 + $0x258] sm:$0xf]
      %v385 = vld [vmem:[%s1 + $0x25c] sm:$0xf]
      %v386 = vld [vmem:[%s1 + $0x260] sm:$0xf]
      %v387 = vld [vmem:[%s1 + $0x264] sm:$0xf]
      %v388 = vld [vmem:[%s1 + $0x268] sm:$0xf]
      %v389 = vld [vmem:[%s1 + $0x26c] sm:$0xf]
      %v390 = vld [vmem:[%s1 + $0x270] sm:$0xf]
      %v391 = vld [vmem:[%s1 + $0x274] sm:$0xf]
      %v392 = vld [vmem:[%s1 + $0x278] sm:$0xf]
      %v393 = vld [vmem:[%s1 + $0x27c] sm:$0xf]
      %v394 = vld [vmem:[%s1 + $0x280] sm:$0xf]
      %v395 = vld [vmem:[%s1 + $0x284] sm:$0xf]
      %v396 = vld [vmem:[%s1 + $0x288] sm:$0xf]
      %v397 = vld [vmem:[%s1 + $0x28c] sm:$0xf]
      %v398 = vld [vmem:[%s1 + $0x290] sm:$0xf]
      %v399 = vld [vmem:[%s1 + $0x294] sm:$0xf]
      %v400 = vld [vmem:[%s1 + $0x298] sm:$0xf]
      %v401 = vld [vmem:[%s1 + $0x29c] sm:$0xf]
      %v402 = vld [vmem:[%s1 + $0x2a0] sm:$0xf]
      %v403 = vld [vmem:[%s1 + $0x2a4] sm:$0xf]
      %v404 = vld [vmem:[%s1 + $0x2a8] sm:$0xf]
      %v405 = vld [vmem:[%s1 + $0x2ac] sm:$0xf]
      %v406 = vld [vmem:[%s1 + $0x2b0] sm:$0xf]
      %v407 = vld [vmem:[%s1 + $0x2b4] sm:$0xf]
      %v408 = vld [vmem:[%s1 + $0x2b8] sm:$0xf]
      %v409 = vld [vmem:[%s1 + $0x2bc] sm:$0xf]
      %v410 = vld [vmem:[%s1 + $0x2c0] sm:$0xf]
      %v411 = vld [vmem:[%s1 + $0x2c4] sm:$0xf]
      %v412 = vld [vmem:[%s1 + $0x2c8] sm:$0xf]
      %v413 = vld [vmem:[%s1 + $0x2cc] sm:$0xf]
      %v414 = vld [vmem:[%s1 + $0x2d0] sm:$0xf]
      %v415 = vld [vmem:[%s1 + $0x2d4] sm:$0xf]
      %v416 = vld [vmem:[%s1 + $0x2d8] sm:$0xf]
      %v417 = vld [vmem:[%s1 + $0x2dc] sm:$0xf]
      %v418 = vld [vmem:[%s1 + $0x2e0] sm:$0xf]
      %v419 = vld [vmem:[%s1 + $0x2e4] sm:$0xf]
      %v420 = vld [vmem:[%s1 + $0x2e8] sm:$0xf]
      %v421 = vld [vmem:[%s1 + $0x2ec] sm:$0xf]
      %v422 = vld [vmem:[%s1 + $0x2f0] sm:$0xf]
      %v423 = vld [vmem:[%s1 + $0x2f4] sm:$0xf]
      %v424 = vld [vmem:[%s1 + $0x2f8] sm:$0xf]
      %v425 = vld [vmem:[%s1 + $0x2fc] sm:$0xf]
      %v426 = vld [vmem:[%s1 + $0x300] sm:$0xf]
      %v427 = vld [vmem:[%s1 + $0x304] sm:$0xf]
      %v428 = vld [vmem:[%s1 + $0x308] sm:$0xf]
      %v429 = vld [vmem:[%s1 + $0x30c] sm:$0xf]
      %v430 = vld [vmem:[%s1 + $0x310] sm:$0xf]
      %v431 = vld [vmem:[%s1 + $0x314] sm:$0xf]
      %v432 = vld [vmem:[%s1 + $0x318] sm:$0xf]
      %v433 = vld [vmem:[%s1 + $0x31c] sm:$0xf]
      %v490 = vunpack.c.l.b16 %v178
      %v491 = vunpack.c.h.b16 %v178
      %v492 = vunpack.c.l.b16 %v179
      %v493 = vunpack.c.h.b16 %v179
      %v494 = vunpack.c.l.b16 %v180
      %v495 = vunpack.c.h.b16 %v180
      %v496 = vunpack.c.l.b16 %v181
      %v497 = vunpack.c.h.b16 %v181
      %v498 = vunpack.c.l.b16 %v182
      %v499 = vunpack.c.h.b16 %v182
      %v500 = vunpack.c.l.b16 %v183
      %v501 = vunpack.c.h.b16 %v183
      %v502 = vunpack.c.l.b16 %v184
      %v503 = vunpack.c.l.b16 %v185
      %v504 = vunpack.c.h.b16 %v185
      %v505 = vunpack.c.l.b16 %v186
      %v506 = vunpack.c.h.b16 %v186
      %v507 = vunpack.c.l.b16 %v187
      %v508 = vunpack.c.h.b16 %v187
      %v509 = vunpack.c.l.b16 %v188
      %v510 = vunpack.c.h.b16 %v188
      %v511 = vunpack.c.l.b16 %v189
      %v512 = vunpack.c.h.b16 %v189
      %v513 = vunpack.c.l.b16 %v190
      %v514 = vunpack.c.h.b16 %v190
      %v515 = vunpack.c.l.b16 %v191
      %v516 = vunpack.c.l.b16 %v192
      %v517 = vunpack.c.h.b16 %v192
      %v518 = vunpack.c.l.b16 %v193
      %v519 = vunpack.c.h.b16 %v193
      %v520 = vunpack.c.l.b16 %v194
      %v521 = vunpack.c.h.b16 %v194
      %v522 = vunpack.c.l.b16 %v195
      %v523 = vunpack.c.h.b16 %v195
      %v524 = vunpack.c.l.b16 %v196
      %v525 = vunpack.c.h.b16 %v196
      %v526 = vunpack.c.l.b16 %v197
      %v527 = vunpack.c.h.b16 %v197
      %v528 = vunpack.c.l.b16 %v198
      %v529 = vunpack.c.l.b16 %v199
      %v530 = vunpack.c.h.b16 %v199
      %v531 = vunpack.c.l.b16 %v200
      %v532 = vunpack.c.h.b16 %v200
      %v533 = vunpack.c.l.b16 %v201
      %v534 = vunpack.c.h.b16 %v201
      %v535 = vunpack.c.l.b16 %v202
      %v536 = vunpack.c.h.b16 %v202
      %v537 = vunpack.c.l.b16 %v203
      %v538 = vunpack.c.h.b16 %v203
      %v539 = vunpack.c.l.b16 %v204
      %v540 = vunpack.c.h.b16 %v204
      %v541 = vunpack.c.l.b16 %v205
      %v542 = vunpack.c.l.b16 %v206
      %v543 = vunpack.c.h.b16 %v206
      %v544 = vunpack.c.l.b16 %v207
      %v545 = vunpack.c.h.b16 %v207
      %v546 = vunpack.c.l.b16 %v208
      %v547 = vunpack.c.h.b16 %v208
      %v548 = vunpack.c.l.b16 %v209
      %v549 = vunpack.c.h.b16 %v209
      %v550 = vunpack.c.l.b16 %v210
      %v551 = vunpack.c.h.b16 %v210
      %v552 = vunpack.c.l.b16 %v211
      %v553 = vunpack.c.h.b16 %v211
      %v554 = vunpack.c.l.b16 %v212
      %v555 = vunpack.c.l.b16 %v213
      %v556 = vunpack.c.h.b16 %v213
      %v557 = vunpack.c.l.b16 %v214
      %v558 = vunpack.c.h.b16 %v214
      %v559 = vunpack.c.l.b16 %v215
      %v560 = vunpack.c.h.b16 %v215
      %v561 = vunpack.c.l.b16 %v216
      %v562 = vunpack.c.h.b16 %v216
      %v563 = vunpack.c.l.b16 %v217
      %v564 = vunpack.c.h.b16 %v217
      %v565 = vunpack.c.l.b16 %v218
      %v566 = vunpack.c.h.b16 %v218
      %v567 = vunpack.c.l.b16 %v219
      %v568 = vunpack.c.l.b16 %v220
      %v569 = vunpack.c.h.b16 %v220
      %v570 = vunpack.c.l.b16 %v221
      %v571 = vunpack.c.h.b16 %v221
      %v572 = vunpack.c.l.b16 %v222
      %v573 = vunpack.c.h.b16 %v222
      %v574 = vunpack.c.l.b16 %v223
      %v575 = vunpack.c.h.b16 %v223
      %v576 = vunpack.c.l.b16 %v224
      %v577 = vunpack.c.h.b16 %v224
      %v578 = vunpack.c.l.b16 %v225
      %v579 = vunpack.c.h.b16 %v225
      %v580 = vunpack.c.l.b16 %v226
      %v581 = vunpack.c.l.b16 %v227
      %v582 = vunpack.c.h.b16 %v227
      %v583 = vunpack.c.l.b16 %v228
      %v584 = vunpack.c.h.b16 %v228
      %v585 = vunpack.c.l.b16 %v229
      %v586 = vunpack.c.h.b16 %v229
      %v587 = vunpack.c.l.b16 %v230
      %v588 = vunpack.c.h.b16 %v230
      %v589 = vunpack.c.l.b16 %v231
      %v590 = vunpack.c.h.b16 %v231
      %v591 = vunpack.c.l.b16 %v232
      %v592 = vunpack.c.h.b16 %v232
      %v593 = vunpack.c.l.b16 %v233
      %v594 = vpack.c.b16 %v503, %v490
      %v595 = vpack.c.b16 %v504, %v491
      %v596 = vpack.c.b16 %v505, %v492
      %v597 = vpack.c.b16 %v506, %v493
      %v598 = vpack.c.b16 %v507, %v494
      %v599 = vpack.c.b16 %v508, %v495
      %v600 = vpack.c.b16 %v509, %v496
      %v601 = vpack.c.b16 %v510, %v497
      %v602 = vpack.c.b16 %v511, %v498
      %v603 = vpack.c.b16 %v512, %v499
      %v604 = vpack.c.b16 %v513, %v500
      %v605 = vpack.c.b16 %v514, %v501
      %v606 = vpack.c.b16 %v515, %v502
      %v607 = vpack.c.b16 %v529, %v516
      %v608 = vpack.c.b16 %v530, %v517
      %v609 = vpack.c.b16 %v531, %v518
      %v610 = vpack.c.b16 %v532, %v519
      %v611 = vpack.c.b16 %v533, %v520
      %v612 = vpack.c.b16 %v534, %v521
      %v613 = vpack.c.b16 %v535, %v522
      %v614 = vpack.c.b16 %v536, %v523
      %v615 = vpack.c.b16 %v537, %v524
      %v616 = vpack.c.b16 %v538, %v525
      %v617 = vpack.c.b16 %v539, %v526
      %v618 = vpack.c.b16 %v540, %v527
      %v619 = vpack.c.b16 %v541, %v528
      %v620 = vpack.c.b16 %v555, %v542
      %v621 = vpack.c.b16 %v556, %v543
      %v622 = vpack.c.b16 %v557, %v544
      %v623 = vpack.c.b16 %v558, %v545
      %v624 = vpack.c.b16 %v559, %v546
      %v625 = vpack.c.b16 %v560, %v547
      %v626 = vpack.c.b16 %v561, %v548
      %v627 = vpack.c.b16 %v562, %v549
      %v628 = vpack.c.b16 %v563, %v550
      %v629 = vpack.c.b16 %v564, %v551
      %v630 = vpack.c.b16 %v565, %v552
      %v631 = vpack.c.b16 %v566, %v553
      %v632 = vpack.c.b16 %v567, %v554
      %v633 = vpack.c.b16 %v581, %v568
      %v634 = vpack.c.b16 %v582, %v569
      %v635 = vpack.c.b16 %v583, %v570
      %v636 = vpack.c.b16 %v584, %v571
      %v637 = vpack.c.b16 %v585, %v572
      %v638 = vpack.c.b16 %v586, %v573
      %v639 = vpack.c.b16 %v587, %v574
      %v640 = vpack.c.b16 %v588, %v575
      %v641 = vpack.c.b16 %v589, %v576
      %v642 = vpack.c.b16 %v590, %v577
      %v643 = vpack.c.b16 %v591, %v578
      %v644 = vpack.c.b16 %v592, %v579
      %v645 = vpack.c.b16 %v593, %v580
      %v894 = vunpack.c.l.b16 %v234
      %v895 = vunpack.c.l.b16 %v235
      %v896 = vunpack.c.l.b16 %v236
      %v897 = vunpack.c.l.b16 %v237
      %v898 = vunpack.c.l.b16 %v238
      %v899 = vunpack.c.l.b16 %v239
      %v900 = vunpack.c.l.b16 %v240
      %v901 = vunpack.c.l.b16 %v241
      %v902 = vunpack.c.l.b16 %v242
      %v903 = vunpack.c.l.b16 %v243
      %v904 = vunpack.c.l.b16 %v244
      %v905 = vunpack.c.l.b16 %v245
      %v906 = vunpack.c.l.b16 %v246
      %v907 = vunpack.c.l.b16 %v247
      %v908 = vunpack.c.l.b16 %v248
      %v909 = vunpack.c.l.b16 %v249
      %v910 = vunpack.c.l.b16 %v250
      %v911 = vunpack.c.l.b16 %v251
      %v912 = vunpack.c.l.b16 %v252
      %v913 = vunpack.c.l.b16 %v253
      %v914 = vunpack.c.l.b16 %v254
      %v915 = vunpack.c.l.b16 %v255
      %v916 = vunpack.c.l.b16 %v256
      %v917 = vunpack.c.l.b16 %v257
      %v918 = vunpack.c.l.b16 %v258
      %v919 = vunpack.c.l.b16 %v259
      %v920 = vunpack.c.l.b16 %v260
      %v921 = vunpack.c.l.b16 %v261
      %v922 = vunpack.c.l.b16 %v262
      %v923 = vunpack.c.l.b16 %v263
      %v924 = vunpack.c.l.b16 %v264
      %v925 = vunpack.c.l.b16 %v265
      %v926 = vunpack.c.l.b16 %v266
      %v927 = vunpack.c.l.b16 %v267
      %v928 = vunpack.c.l.b16 %v268
      %v929 = vunpack.c.l.b16 %v269
      %v930 = vunpack.c.l.b16 %v270
      %v931 = vunpack.c.l.b16 %v271
      %v932 = vunpack.c.l.b16 %v272
      %v933 = vunpack.c.l.b16 %v273
      %v934 = vunpack.c.l.b16 %v274
      %v935 = vunpack.c.l.b16 %v275
      %v936 = vunpack.c.l.b16 %v276
      %v937 = vunpack.c.l.b16 %v277
      %v938 = vunpack.c.l.b16 %v278
      %v939 = vunpack.c.l.b16 %v279
      %v940 = vunpack.c.l.b16 %v280
      %v941 = vunpack.c.l.b16 %v281
      %v942 = vunpack.c.l.b16 %v282
      %v943 = vunpack.c.l.b16 %v283
      %v944 = vunpack.c.l.b16 %v284
      %v945 = vunpack.c.l.b16 %v285
      %v946 = vunpack.c.l.b16 %v286
      %v947 = vunpack.c.l.b16 %v287
      %v948 = vunpack.c.l.b16 %v288
      %v949 = vunpack.c.l.b16 %v289
      %v950 = vunpack.c.l.b16 %v290
      %v951 = vunpack.c.l.b16 %v291
      %v952 = vunpack.c.l.b16 %v292
      %v953 = vunpack.c.l.b16 %v293
      %v954 = vunpack.c.l.b16 %v294
      %v955 = vunpack.c.l.b16 %v295
      %v956 = vunpack.c.l.b16 %v296
      %v957 = vunpack.c.l.b16 %v297
      %v958 = vunpack.c.l.b16 %v298
      %v959 = vunpack.c.l.b16 %v299
      %v960 = vunpack.c.l.b16 %v300
      %v961 = vunpack.c.l.b16 %v301
      %v962 = vunpack.c.l.b16 %v302
      %v963 = vunpack.c.l.b16 %v303
      %v964 = vunpack.c.l.b16 %v304
      %v965 = vunpack.c.l.b16 %v305
      %v966 = vunpack.c.l.b16 %v306
      %v967 = vunpack.c.l.b16 %v307
      %v968 = vunpack.c.l.b16 %v308
      %v969 = vunpack.c.l.b16 %v309
      %v970 = vunpack.c.l.b16 %v310
      %v971 = vunpack.c.l.b16 %v311
      %v972 = vunpack.c.l.b16 %v312
      %v973 = vunpack.c.l.b16 %v313
      %v974 = vunpack.c.l.b16 %v314
      %v975 = vunpack.c.l.b16 %v315
      %v976 = vunpack.c.l.b16 %v316
      %v977 = vunpack.c.l.b16 %v317
      %v978 = vunpack.c.l.b16 %v318
      %v979 = vunpack.c.l.b16 %v319
      %v980 = vunpack.c.l.b16 %v320
      %v981 = vunpack.c.l.b16 %v321
      %v982 = vunpack.c.l.b16 %v322
      %v983 = vunpack.c.l.b16 %v323
      %v984 = vunpack.c.l.b16 %v324
      %v985 = vunpack.c.l.b16 %v325
      %v986 = vunpack.c.l.b16 %v326
      %v987 = vunpack.c.l.b16 %v327
      %v988 = vunpack.c.l.b16 %v328
      %v989 = vunpack.c.l.b16 %v329
      %v990 = vunpack.c.l.b16 %v330
      %v991 = vunpack.c.l.b16 %v331
      %v992 = vunpack.c.l.b16 %v332
      %v993 = vunpack.c.l.b16 %v333
      %v994 = vunpack.c.l.b16 %v334
      %v995 = vunpack.c.l.b16 %v335
      %v996 = vunpack.c.l.b16 %v336
      %v997 = vunpack.c.l.b16 %v337
      %v998 = vunpack.c.l.b16 %v338
      %v999 = vunpack.c.l.b16 %v339
      %v1000 = vunpack.c.l.b16 %v340
      %v1001 = vunpack.c.l.b16 %v341
      %v1002 = vunpack.c.l.b16 %v342
      %v1003 = vunpack.c.l.b16 %v343
      %v1004 = vunpack.c.l.b16 %v344
      %v1005 = vunpack.c.l.b16 %v345
      %v1006 = vunpack.c.l.b16 %v346
      %v1007 = vunpack.c.l.b16 %v347
      %v1008 = vunpack.c.l.b16 %v348
      %v1009 = vunpack.c.l.b16 %v349
      %v1010 = vunpack.c.l.b16 %v350
      %v1011 = vunpack.c.l.b16 %v351
      %v1012 = vunpack.c.l.b16 %v352
      %v1013 = vunpack.c.l.b16 %v353
      %v1014 = vunpack.c.l.b16 %v354
      %v1015 = vunpack.c.l.b16 %v355
      %v1016 = vunpack.c.l.b16 %v356
      %v1017 = vunpack.c.l.b16 %v357
      %v1018 = vunpack.c.l.b16 %v358
      %v1019 = vunpack.c.l.b16 %v359
      %v1020 = vunpack.c.l.b16 %v360
      %v1021 = vunpack.c.l.b16 %v361
      %v1022 = vunpack.c.l.b16 %v362
      %v1023 = vunpack.c.l.b16 %v363
      %v1024 = vunpack.c.l.b16 %v364
      %v1025 = vunpack.c.l.b16 %v365
      %v1026 = vunpack.c.l.b16 %v366
      %v1027 = vunpack.c.l.b16 %v367
      %v1028 = vunpack.c.l.b16 %v368
      %v1029 = vunpack.c.l.b16 %v369
      %v1030 = vunpack.c.l.b16 %v370
      %v1031 = vunpack.c.l.b16 %v371
      %v1032 = vunpack.c.l.b16 %v372
      %v1033 = vunpack.c.l.b16 %v373
      %v1034 = vunpack.c.l.b16 %v374
      %v1035 = vunpack.c.l.b16 %v375
      %v1036 = vunpack.c.l.b16 %v376
      %v1037 = vunpack.c.l.b16 %v377
      %v1038 = vunpack.c.l.b16 %v378
      %v1039 = vunpack.c.l.b16 %v379
      %v1040 = vunpack.c.l.b16 %v380
      %v1041 = vunpack.c.l.b16 %v381
      %v1042 = vunpack.c.l.b16 %v382
      %v1043 = vunpack.c.l.b16 %v383
      %v1044 = vunpack.c.l.b16 %v384
      %v1045 = vunpack.c.l.b16 %v385
      %v1046 = vunpack.c.l.b16 %v386
      %v1047 = vunpack.c.l.b16 %v387
      %v1048 = vunpack.c.l.b16 %v388
      %v1049 = vunpack.c.l.b16 %v389
      %v1050 = vunpack.c.l.b16 %v390
      %v1051 = vunpack.c.l.b16 %v391
      %v1052 = vunpack.c.l.b16 %v392
      %v1053 = vunpack.c.l.b16 %v393
      %v1054 = vunpack.c.l.b16 %v394
      %v1055 = vunpack.c.l.b16 %v395
      %v1056 = vunpack.c.l.b16 %v396
      %v1057 = vunpack.c.l.b16 %v397
      %v1058 = vunpack.c.l.b16 %v398
      %v1059 = vunpack.c.l.b16 %v399
      %v1060 = vunpack.c.l.b16 %v400
      %v1061 = vunpack.c.l.b16 %v401
      %v1062 = vunpack.c.l.b16 %v402
      %v1063 = vunpack.c.l.b16 %v403
      %v1064 = vunpack.c.l.b16 %v404
      %v1065 = vunpack.c.l.b16 %v405
      %v1066 = vunpack.c.l.b16 %v406
      %v1067 = vunpack.c.l.b16 %v407
      %v1068 = vunpack.c.l.b16 %v408
      %v1069 = vunpack.c.l.b16 %v409
      %v1070 = vunpack.c.l.b16 %v410
      %v1071 = vunpack.c.l.b16 %v411
      %v1072 = vunpack.c.l.b16 %v412
      %v1073 = vunpack.c.l.b16 %v413
      %v1074 = vunpack.c.l.b16 %v414
      %v1075 = vunpack.c.l.b16 %v415
      %v1076 = vunpack.c.l.b16 %v416
      %v1077 = vunpack.c.l.b16 %v417
      %v1078 = vunpack.c.l.b16 %v418
      %v1079 = vunpack.c.l.b16 %v419
      %v1080 = vunpack.c.l.b16 %v420
      %v1081 = vunpack.c.l.b16 %v421
      %v1082 = vunpack.c.l.b16 %v422
      %v1083 = vunpack.c.l.b16 %v423
      %v1084 = vunpack.c.l.b16 %v424
      %v1085 = vunpack.c.l.b16 %v425
      %v1086 = vunpack.c.l.b16 %v426
      %v1087 = vunpack.c.l.b16 %v427
      %v1088 = vunpack.c.l.b16 %v428
      %v1089 = vunpack.c.l.b16 %v429
      %v1090 = vunpack.c.l.b16 %v430
      %v1091 = vunpack.c.l.b16 %v431
      %v1092 = vunpack.c.l.b16 %v432
      %v1093 = vunpack.c.l.b16 %v433
      %v1094 = vpack.c.b16 %v895, %v894
      %v1095 = vpack.c.b16 %v897, %v896
      %v1096 = vpack.c.b16 %v899, %v898
      %v1097 = vpack.c.b16 %v901, %v900
      %v1098 = vpack.c.b16 %v903, %v902
      %v1099 = vpack.c.b16 %v905, %v904
      %v1100 = vpack.c.b16 %v907, %v906
      %v1101 = vpack.c.b16 %v909, %v908
      %v1102 = vpack.c.b16 %v911, %v910
      %v1103 = vpack.c.b16 %v913, %v912
      %v1104 = vpack.c.b16 %v915, %v914
      %v1105 = vpack.c.b16 %v917, %v916
      %v1106 = vpack.c.b16 %v919, %v918
      %v1107 = vpack.c.b16 %v921, %v920
      %v1108 = vpack.c.b16 %v923, %v922
      %v1109 = vpack.c.b16 %v925, %v924
      %v1110 = vpack.c.b16 %v927, %v926
      %v1111 = vpack.c.b16 %v929, %v928
      %v1112 = vpack.c.b16 %v931, %v930
      %v1113 = vpack.c.b16 %v933, %v932
      %v1114 = vpack.c.b16 %v935, %v934
      %v1115 = vpack.c.b16 %v937, %v936
      %v1116 = vpack.c.b16 %v939, %v938
      %v1117 = vpack.c.b16 %v941, %v940
      %v1118 = vpack.c.b16 %v943, %v942
      %v1119 = vpack.c.b16 %v945, %v944
      %v1120 = vpack.c.b16 %v947, %v946
      %v1121 = vpack.c.b16 %v949, %v948
      %v1122 = vpack.c.b16 %v951, %v950
      %v1123 = vpack.c.b16 %v953, %v952
      %v1124 = vpack.c.b16 %v955, %v954
      %v1125 = vpack.c.b16 %v957, %v956
      %v1126 = vpack.c.b16 %v959, %v958
      %v1127 = vpack.c.b16 %v961, %v960
      %v1128 = vpack.c.b16 %v963, %v962
      %v1129 = vpack.c.b16 %v965, %v964
      %v1130 = vpack.c.b16 %v967, %v966
      %v1131 = vpack.c.b16 %v969, %v968
      %v1132 = vpack.c.b16 %v971, %v970
      %v1133 = vpack.c.b16 %v973, %v972
      %v1134 = vpack.c.b16 %v975, %v974
      %v1135 = vpack.c.b16 %v977, %v976
      %v1136 = vpack.c.b16 %v979, %v978
      %v1137 = vpack.c.b16 %v981, %v980
      %v1138 = vpack.c.b16 %v983, %v982
      %v1139 = vpack.c.b16 %v985, %v984
      %v1140 = vpack.c.b16 %v987, %v986
      %v1141 = vpack.c.b16 %v989, %v988
      %v1142 = vpack.c.b16 %v991, %v990
      %v1143 = vpack.c.b16 %v993, %v992
      %v1144 = vpack.c.b16 %v995, %v994
      %v1145 = vpack.c.b16 %v997, %v996
      %v1146 = vpack.c.b16 %v999, %v998
      %v1147 = vpack.c.b16 %v1001, %v1000
      %v1148 = vpack.c.b16 %v1003, %v1002
      %v1149 = vpack.c.b16 %v1005, %v1004
      %v1150 = vpack.c.b16 %v1007, %v1006
      %v1151 = vpack.c.b16 %v1009, %v1008
      %v1152 = vpack.c.b16 %v1011, %v1010
      %v1153 = vpack.c.b16 %v1013, %v1012
      %v1154 = vpack.c.b16 %v1015, %v1014
      %v1155 = vpack.c.b16 %v1017, %v1016
      %v1156 = vpack.c.b16 %v1019, %v1018
      %v1157 = vpack.c.b16 %v1021, %v1020
      %v1158 = vpack.c.b16 %v1023, %v1022
      %v1159 = vpack.c.b16 %v1025, %v1024
      %v1160 = vpack.c.b16 %v1027, %v1026
      %v1161 = vpack.c.b16 %v1029, %v1028
      %v1162 = vpack.c.b16 %v1031, %v1030
      %v1163 = vpack.c.b16 %v1033, %v1032
      %v1164 = vpack.c.b16 %v1035, %v1034
      %v1165 = vpack.c.b16 %v1037, %v1036
      %v1166 = vpack.c.b16 %v1039, %v1038
      %v1167 = vpack.c.b16 %v1041, %v1040
      %v1168 = vpack.c.b16 %v1043, %v1042
      %v1169 = vpack.c.b16 %v1045, %v1044
      %v1170 = vpack.c.b16 %v1047, %v1046
      %v1171 = vpack.c.b16 %v1049, %v1048
      %v1172 = vpack.c.b16 %v1051, %v1050
      %v1173 = vpack.c.b16 %v1053, %v1052
      %v1174 = vpack.c.b16 %v1055, %v1054
      %v1175 = vpack.c.b16 %v1057, %v1056
      %v1176 = vpack.c.b16 %v1059, %v1058
      %v1177 = vpack.c.b16 %v1061, %v1060
      %v1178 = vpack.c.b16 %v1063, %v1062
      %v1179 = vpack.c.b16 %v1065, %v1064
      %v1180 = vpack.c.b16 %v1067, %v1066
      %v1181 = vpack.c.b16 %v1069, %v1068
      %v1182 = vpack.c.b16 %v1071, %v1070
      %v1183 = vpack.c.b16 %v1073, %v1072
      %v1184 = vpack.c.b16 %v1075, %v1074
      %v1185 = vpack.c.b16 %v1077, %v1076
      %v1186 = vpack.c.b16 %v1079, %v1078
      %v1187 = vpack.c.b16 %v1081, %v1080
      %v1188 = vpack.c.b16 %v1083, %v1082
      %v1189 = vpack.c.b16 %v1085, %v1084
      %v1190 = vpack.c.b16 %v1087, %v1086
      %v1191 = vpack.c.b16 %v1089, %v1088
      %v1192 = vpack.c.b16 %v1091, %v1090
      %v1193 = vpack.c.b16 %v1093, %v1092
      %vm1294 = vcmask 523264
      %v1296 = vsel %vm1294, %v606, 0
      %v1299 = vsel %vm1294, %v619, 0
      %v1302 = vsel %vm1294, %v632, 0
      %v1305 = vsel %vm1294, %v645, 0
      %1307 = vmatprep.subr.bf16.mxu0 0
      %1308 = vmatpush1.bf16.msra.mxu0 %v1094
      %1309 = vmatprep.subr.bf16.mxu0 0
      %1310 = vmatpush1.bf16.msra.mxu0 %v1095
      %1311 = vmatprep.subr.bf16.mxu0 0
      %1312 = vmatpush1.bf16.msra.mxu0 %v1096
      %1313 = vmatprep.subr.bf16.mxu0 0
      %1314 = vmatpush1.bf16.msra.mxu0 %v1097
      %1315 = vmatprep.subr.bf16.mxu0 0
      %1316 = vmatpush1.bf16.msra.mxu0 %v1098
      %1317 = vmatprep.subr.bf16.mxu0 0
      %1318 = vmatpush1.bf16.msra.mxu0 %v1099
      %1319 = vmatprep.subr.bf16.mxu0 0
      %1320 = vmatpush1.bf16.msra.mxu0 %v1100
      %1321 = vmatprep.subr.bf16.mxu0 0
      %1322 = vmatpush1.bf16.msra.mxu0 %v1101
      %1323 = vmatprep.subr.bf16.mxu0 0
      %1324 = vmatpush1.bf16.msra.mxu0 %v1102
      %1325 = vmatprep.subr.bf16.mxu0 0
      %1326 = vmatpush1.bf16.msra.mxu0 %v1103
      %1327 = vmatprep.subr.bf16.mxu0 0
      %1328 = vmatpush1.bf16.msra.mxu0 %v1104
      %1329 = vmatprep.subr.bf16.mxu0 0
      %1330 = vmatpush1.bf16.msra.mxu0 %v1105
      %1331 = vmatprep.subr.bf16.mxu0 0
      %1332 = vmatpush1.bf16.msra.mxu0 %v1106
      %1333 = vmatprep.subr.bf16.mxu0 0
      %1334 = vmatpush1.bf16.msra.mxu0 %v1107
      %1335 = vmatprep.subr.bf16.mxu0 0
      %1336 = vmatpush1.bf16.msra.mxu0 %v1108
      %1337 = vmatprep.subr.bf16.mxu0 0
      %1338 = vmatpush1.bf16.msra.mxu0 %v1109
      %1339 = vmatprep.mubr.bf16.mxu0 %v595
      %1340 = vmatmul.mubr.bf16.gmra.mrb[0].mxu0 %v594
      %v1341 = vpop.f32.mrb[0].mxu0
      %v1342 = vadd.f32 0.0, %v1341
      %v1343 = vpop.f32.mrb[0].mxu0
      %v1344 = vpop.f32.mrb[0].mxu0
      %v1345 = vadd.f32 0.0, %v1344
      %v1346 = vpop.f32.mrb[0].mxu0
      %1347 = vmatprep.mubr.bf16.mxu0 %v608
      %1348 = vmatmul.mubr.bf16.gmra.mrb[0].mxu0 %v607
      %v1349 = vpop.f32.mrb[0].mxu0
      %v1350 = vadd.f32 0.0, %v1349
      %v1351 = vpop.f32.mrb[0].mxu0
      %v1352 = vpop.f32.mrb[0].mxu0
      %v1353 = vadd.f32 0.0, %v1352
      %v1354 = vpop.f32.mrb[0].mxu0
      %1355 = vmatprep.mubr.bf16.mxu0 %v621
      %1356 = vmatmul.mubr.bf16.gmra.mrb[0].mxu0 %v620
      %v1357 = vpop.f32.mrb[0].mxu0
      %v1358 = vadd.f32 0.0, %v1357
      %v1359 = vpop.f32.mrb[0].mxu0
      %v1360 = vpop.f32.mrb[0].mxu0
      %v1361 = vadd.f32 0.0, %v1360
      %v1362 = vpop.f32.mrb[0].mxu0
      %1363 = vmatprep.mubr.bf16.mxu0 %v634
      %1364 = vmatmul.mubr.bf16.gmra.mrb[0].mxu0 %v633
      %v1365 = vpop.f32.mrb[0].mxu0
      %v1366 = vadd.f32 0.0, %v1365
      %v1367 = vpop.f32.mrb[0].mxu0
      %v1368 = vpop.f32.mrb[0].mxu0
      %v1369 = vadd.f32 0.0, %v1368
      %v1370 = vpop.f32.mrb[0].mxu0
      %1371 = vdwg.mxu0
      %1372 = vmatprep.subr.bf16.mxu0 0
      %1373 = vmatpush1.bf16.msra.mxu0 %v1110
      %1374 = vmatprep.subr.bf16.mxu0 0
      %1375 = vmatpush1.bf16.msra.mxu0 %v1111
      %1376 = vmatprep.subr.bf16.mxu0 0
      %1377 = vmatpush1.bf16.msra.mxu0 %v1112
      %1378 = vmatprep.subr.bf16.mxu0 0
      %1379 = vmatpush1.bf16.msra.mxu0 %v1113
      %1380 = vmatprep.subr.bf16.mxu0 0
      %1381 = vmatpush1.bf16.msra.mxu0 %v1114
      %1382 = vmatprep.subr.bf16.mxu0 0
      %1383 = vmatpush1.bf16.msra.mxu0 %v1115
      %1384 = vmatprep.subr.bf16.mxu0 0
      %1385 = vmatpush1.bf16.msra.mxu0 %v1116
      %1386 = vmatprep.subr.bf16.mxu0 0
      %1387 = vmatpush1.bf16.msra.mxu0 %v1117
      %1388 = vmatprep.subr.bf16.mxu0 0
      %1389 = vmatpush1.bf16.msra.mxu0 %v1118
      %1390 = vmatprep.subr.bf16.mxu0 0
      %1391 = vmatpush1.bf16.msra.mxu0 %v1119
      %1392 = vmatprep.subr.bf16.mxu0 0
      %1393 = vmatpush1.bf16.msra.mxu0 %v1120
      %1394 = vmatprep.subr.bf16.mxu0 0
      %1395 = vmatpush1.bf16.msra.mxu0 %v1121
      %1396 = vmatprep.subr.bf16.mxu0 0
      %1397 = vmatpush1.bf16.msra.mxu0 %v1122
      %1398 = vmatprep.subr.bf16.mxu0 0
      %1399 = vmatpush1.bf16.msra.mxu0 %v1123
      %1400 = vmatprep.subr.bf16.mxu0 0
      %1401 = vmatpush1.bf16.msra.mxu0 %v1124
      %1402 = vmatprep.subr.bf16.mxu0 0
      %1403 = vmatpush1.bf16.msra.mxu0 %v1125
      %1404 = vmatprep.mubr.bf16.mxu0 %v597
      %1405 = vmatmul.mubr.bf16.gmra.mrb[0].mxu0 %v596
      %v1406 = vpop.f32.mrb[0].mxu0
      %v1407 = vadd.f32 %v1342, %v1406
      %v1408 = vpop.f32.mrb[0].mxu0
      %v1409 = vpop.f32.mrb[0].mxu0
      %v1410 = vadd.f32 %v1345, %v1409
      %v1411 = vpop.f32.mrb[0].mxu0
      %1412 = vmatprep.mubr.bf16.mxu0 %v610
      %1413 = vmatmul.mubr.bf16.gmra.mrb[0].mxu0 %v609
      %v1414 = vpop.f32.mrb[0].mxu0
      %v1415 = vadd.f32 %v1350, %v1414
      %v1416 = vpop.f32.mrb[0].mxu0
      %v1417 = vpop.f32.mrb[0].mxu0
      %v1418 = vadd.f32 %v1353, %v1417
      %v1419 = vpop.f32.mrb[0].mxu0
      %1420 = vmatprep.mubr.bf16.mxu0 %v623
      %1421 = vmatmul.mubr.bf16.gmra.mrb[0].mxu0 %v622
      %v1422 = vpop.f32.mrb[0].mxu0
      %v1423 = vadd.f32 %v1358, %v1422
      %v1424 = vpop.f32.mrb[0].mxu0
      %v1425 = vpop.f32.mrb[0].mxu0
      %v1426 = vadd.f32 %v1361, %v1425
      %v1427 = vpop.f32.mrb[0].mxu0
      %1428 = vmatprep.mubr.bf16.mxu0 %v636
      %1429 = vmatmul.mubr.bf16.gmra.mrb[0].mxu0 %v635
      %v1430 = vpop.f32.mrb[0].mxu0
      %v1431 = vadd.f32 %v1366, %v1430
      %v1432 = vpop.f32.mrb[0].mxu0
      %v1433 = vpop.f32.mrb[0].mxu0
      %v1434 = vadd.f32 %v1369, %v1433
      %v1435 = vpop.f32.mrb[0].mxu0
      %1436 = vdwg.mxu0
      %1437 = vmatprep.subr.bf16.mxu0 0
      %1438 = vmatpush1.bf16.msra.mxu0 %v1126
      %1439 = vmatprep.subr.bf16.mxu0 0
      %1440 = vmatpush1.bf16.msra.mxu0 %v1127
      %1441 = vmatprep.subr.bf16.mxu0 0
      %1442 = vmatpush1.bf16.msra.mxu0 %v1128
      %1443 = vmatprep.subr.bf16.mxu0 0
      %1444 = vmatpush1.bf16.msra.mxu0 %v1129
      %1445 = vmatprep.subr.bf16.mxu0 0
      %1446 = vmatpush1.bf16.msra.mxu0 %v1130
      %1447 = vmatprep.subr.bf16.mxu0 0
      %1448 = vmatpush1.bf16.msra.mxu0 %v1131
      %1449 = vmatprep.subr.bf16.mxu0 0
      %1450 = vmatpush1.bf16.msra.mxu0 %v1132
      %1451 = vmatprep.subr.bf16.mxu0 0
      %1452 = vmatpush1.bf16.msra.mxu0 %v1133
      %1453 = vmatprep.subr.bf16.mxu0 0
      %1454 = vmatpush1.bf16.msra.mxu0 %v1134
      %1455 = vmatprep.subr.bf16.mxu0 0
      %1456 = vmatpush1.bf16.msra.mxu0 %v1135
      %1457 = vmatprep.subr.bf16.mxu0 0
      %1458 = vmatpush1.bf16.msra.mxu0 %v1136
      %1459 = vmatprep.subr.bf16.mxu0 0
      %1460 = vmatpush1.bf16.msra.mxu0 %v1137
      %1461 = vmatprep.subr.bf16.mxu0 0
      %1462 = vmatpush1.bf16.msra.mxu0 %v1138
      %1463 = vmatprep.subr.bf16.mxu0 0
      %1464 = vmatpush1.bf16.msra.mxu0 %v1139
      %1465 = vmatprep.subr.bf16.mxu0 0
      %1466 = vmatpush1.bf16.msra.mxu0 %v1140
      %1467 = vmatprep.subr.bf16.mxu0 0
      %1468 = vmatpush1.bf16.msra.mxu0 %v1141
      %1469 = vmatprep.mubr.bf16.mxu0 %v599
      %1470 = vmatmul.mubr.bf16.gmra.mrb[0].mxu0 %v598
      %v1471 = vpop.f32.mrb[0].mxu0
      %v1472 = vadd.f32 %v1407, %v1471
      %v1473 = vpop.f32.mrb[0].mxu0
      %v1474 = vpop.f32.mrb[0].mxu0
      %v1475 = vadd.f32 %v1410, %v1474
      %v1476 = vpop.f32.mrb[0].mxu0
      %1477 = vmatprep.mubr.bf16.mxu0 %v612
      %1478 = vmatmul.mubr.bf16.gmra.mrb[0].mxu0 %v611
      %v1479 = vpop.f32.mrb[0].mxu0
      %v1480 = vadd.f32 %v1415, %v1479
      %v1481 = vpop.f32.mrb[0].mxu0
      %v1482 = vpop.f32.mrb[0].mxu0
      %v1483 = vadd.f32 %v1418, %v1482
      %v1484 = vpop.f32.mrb[0].mxu0
      %1485 = vmatprep.mubr.bf16.mxu0 %v625
      %1486 = vmatmul.mubr.bf16.gmra.mrb[0].mxu0 %v624
      %v1487 = vpop.f32.mrb[0].mxu0
      %v1488 = vadd.f32 %v1423, %v1487
      %v1489 = vpop.f32.mrb[0].mxu0
      %v1490 = vpop.f32.mrb[0].mxu0
      %v1491 = vadd.f32 %v1426, %v1490
      %v1492 = vpop.f32.mrb[0].mxu0
      %1493 = vmatprep.mubr.bf16.mxu0 %v638
      %1494 = vmatmul.mubr.bf16.gmra.mrb[0].mxu0 %v637
      %v1495 = vpop.f32.mrb[0].mxu0
      %v1496 = vadd.f32 %v1431, %v1495
      %v1497 = vpop.f32.mrb[0].mxu0
      %v1498 = vpop.f32.mrb[0].mxu0
      %v1499 = vadd.f32 %v1434, %v1498
      %v1500 = vpop.f32.mrb[0].mxu0
      %1501 = vdwg.mxu0
      %1502 = vmatprep.subr.bf16.mxu0 0
      %1503 = vmatpush1.bf16.msra.mxu0 %v1142
      %1504 = vmatprep.subr.bf16.mxu0 0
      %1505 = vmatpush1.bf16.msra.mxu0 %v1143
      %1506 = vmatprep.subr.bf16.mxu0 0
      %1507 = vmatpush1.bf16.msra.mxu0 %v1144
      %1508 = vmatprep.subr.bf16.mxu0 0
      %1509 = vmatpush1.bf16.msra.mxu0 %v1145
      %1510 = vmatprep.subr.bf16.mxu0 0
      %1511 = vmatpush1.bf16.msra.mxu0 %v1146
      %1512 = vmatprep.subr.bf16.mxu0 0
      %1513 = vmatpush1.bf16.msra.mxu0 %v1147
      %1514 = vmatprep.subr.bf16.mxu0 0
      %1515 = vmatpush1.bf16.msra.mxu0 %v1148
      %1516 = vmatprep.subr.bf16.mxu0 0
      %1517 = vmatpush1.bf16.msra.mxu0 %v1149
      %1518 = vmatprep.subr.bf16.mxu0 0
      %1519 = vmatpush1.bf16.msra.mxu0 %v1150
      %1520 = vmatprep.subr.bf16.mxu0 0
      %1521 = vmatpush1.bf16.msra.mxu0 %v1151
      %1522 = vmatprep.subr.bf16.mxu0 0
      %1523 = vmatpush1.bf16.msra.mxu0 %v1152
      %1524 = vmatprep.subr.bf16.mxu0 0
      %1525 = vmatpush1.bf16.msra.mxu0 %v1153
      %1526 = vmatprep.subr.bf16.mxu0 0
      %1527 = vmatpush1.bf16.msra.mxu0 %v1154
      %1528 = vmatprep.subr.bf16.mxu0 0
      %1529 = vmatpush1.bf16.msra.mxu0 %v1155
      %1530 = vmatprep.subr.bf16.mxu0 0
      %1531 = vmatpush1.bf16.msra.mxu0 %v1156
      %1532 = vmatprep.subr.bf16.mxu0 0
      %1533 = vmatpush1.bf16.msra.mxu0 %v1157
      %1534 = vmatprep.mubr.bf16.mxu0 %v601
      %1535 = vmatmul.mubr.bf16.gmra.mrb[0].mxu0 %v600
      %v1536 = vpop.f32.mrb[0].mxu0
      %v1537 = vadd.f32 %v1472, %v1536
      %v1538 = vpop.f32.mrb[0].mxu0
      %v1539 = vpop.f32.mrb[0].mxu0
      %v1540 = vadd.f32 %v1475, %v1539
      %v1541 = vpop.f32.mrb[0].mxu0
      %1542 = vmatprep.mubr.bf16.mxu0 %v614
      %1543 = vmatmul.mubr.bf16.gmra.mrb[0].mxu0 %v613
      %v1544 = vpop.f32.mrb[0].mxu0
      %v1545 = vadd.f32 %v1480, %v1544
      %v1546 = vpop.f32.mrb[0].mxu0
      %v1547 = vpop.f32.mrb[0].mxu0
      %v1548 = vadd.f32 %v1483, %v1547
      %v1549 = vpop.f32.mrb[0].mxu0
      %1550 = vmatprep.mubr.bf16.mxu0 %v627
      %1551 = vmatmul.mubr.bf16.gmra.mrb[0].mxu0 %v626
      %v1552 = vpop.f32.mrb[0].mxu0
      %v1553 = vadd.f32 %v1488, %v1552
      %v1554 = vpop.f32.mrb[0].mxu0
      %v1555 = vpop.f32.mrb[0].mxu0
      %v1556 = vadd.f32 %v1491, %v1555
      %v1557 = vpop.f32.mrb[0].mxu0
      %1558 = vmatprep.mubr.bf16.mxu0 %v640
      %1559 = vmatmul.mubr.bf16.gmra.mrb[0].mxu0 %v639
      %v1560 = vpop.f32.mrb[0].mxu0
      %v1561 = vadd.f32 %v1496, %v1560
      %v1562 = vpop.f32.mrb[0].mxu0
      %v1563 = vpop.f32.mrb[0].mxu0
      %v1564 = vadd.f32 %v1499, %v1563
      %v1565 = vpop.f32.mrb[0].mxu0
      %1566 = vdwg.mxu0
      %1567 = vmatprep.subr.bf16.mxu0 0
      %1568 = vmatpush1.bf16.msra.mxu0 %v1158
      %1569 = vmatprep.subr.bf16.mxu0 0
      %1570 = vmatpush1.bf16.msra.mxu0 %v1159
      %1571 = vmatprep.subr.bf16.mxu0 0
      %1572 = vmatpush1.bf16.msra.mxu0 %v1160
      %1573 = vmatprep.subr.bf16.mxu0 0
      %1574 = vmatpush1.bf16.msra.mxu0 %v1161
      %1575 = vmatprep.subr.bf16.mxu0 0
      %1576 = vmatpush1.bf16.msra.mxu0 %v1162
      %1577 = vmatprep.subr.bf16.mxu0 0
      %1578 = vmatpush1.bf16.msra.mxu0 %v1163
      %1579 = vmatprep.subr.bf16.mxu0 0
      %1580 = vmatpush1.bf16.msra.mxu0 %v1164
      %1581 = vmatprep.subr.bf16.mxu0 0
      %1582 = vmatpush1.bf16.msra.mxu0 %v1165
      %1583 = vmatprep.subr.bf16.mxu0 0
      %1584 = vmatpush1.bf16.msra.mxu0 %v1166
      %1585 = vmatprep.subr.bf16.mxu0 0
      %1586 = vmatpush1.bf16.msra.mxu0 %v1167
      %1587 = vmatprep.subr.bf16.mxu0 0
      %1588 = vmatpush1.bf16.msra.mxu0 %v1168
      %1589 = vmatprep.subr.bf16.mxu0 0
      %1590 = vmatpush1.bf16.msra.mxu0 %v1169
      %1591 = vmatprep.subr.bf16.mxu0 0
      %1592 = vmatpush1.bf16.msra.mxu0 %v1170
      %1593 = vmatprep.subr.bf16.mxu0 0
      %1594 = vmatpush1.bf16.msra.mxu0 %v1171
      %1595 = vmatprep.subr.bf16.mxu0 0
      %1596 = vmatpush1.bf16.msra.mxu0 %v1172
      %1597 = vmatprep.subr.bf16.mxu0 0
      %1598 = vmatpush1.bf16.msra.mxu0 %v1173
      %1599 = vmatprep.mubr.bf16.mxu0 %v603
      %1600 = vmatmul.mubr.bf16.gmra.mrb[0].mxu0 %v602
      %v1601 = vpop.f32.mrb[0].mxu0
      %v1602 = vadd.f32 %v1537, %v1601
      %v1603 = vpop.f32.mrb[0].mxu0
      %v1604 = vpop.f32.mrb[0].mxu0
      %v1605 = vadd.f32 %v1540, %v1604
      %v1606 = vpop.f32.mrb[0].mxu0
      %1607 = vmatprep.mubr.bf16.mxu0 %v616
      %1608 = vmatmul.mubr.bf16.gmra.mrb[0].mxu0 %v615
      %v1609 = vpop.f32.mrb[0].mxu0
      %v1610 = vadd.f32 %v1545, %v1609
      %v1611 = vpop.f32.mrb[0].mxu0
      %v1612 = vpop.f32.mrb[0].mxu0
      %v1613 = vadd.f32 %v1548, %v1612
      %v1614 = vpop.f32.mrb[0].mxu0
      %1615 = vmatprep.mubr.bf16.mxu0 %v629
      %1616 = vmatmul.mubr.bf16.gmra.mrb[0].mxu0 %v628
      %v1617 = vpop.f32.mrb[0].mxu0
      %v1618 = vadd.f32 %v1553, %v1617
      %v1619 = vpop.f32.mrb[0].mxu0
      %v1620 = vpop.f32.mrb[0].mxu0
      %v1621 = vadd.f32 %v1556, %v1620
      %v1622 = vpop.f32.mrb[0].mxu0
      %1623 = vmatprep.mubr.bf16.mxu0 %v642
      %1624 = vmatmul.mubr.bf16.gmra.mrb[0].mxu0 %v641
      %v1625 = vpop.f32.mrb[0].mxu0
      %v1626 = vadd.f32 %v1561, %v1625
      %v1627 = vpop.f32.mrb[0].mxu0
      %v1628 = vpop.f32.mrb[0].mxu0
      %v1629 = vadd.f32 %v1564, %v1628
      %v1630 = vpop.f32.mrb[0].mxu0
      %1631 = vdwg.mxu0
      %1632 = vmatprep.subr.bf16.mxu0 0
      %1633 = vmatpush1.bf16.msra.mxu0 %v1174
      %1634 = vmatprep.subr.bf16.mxu0 0
      %1635 = vmatpush1.bf16.msra.mxu0 %v1175
      %1636 = vmatprep.subr.bf16.mxu0 0
      %1637 = vmatpush1.bf16.msra.mxu0 %v1176
      %1638 = vmatprep.subr.bf16.mxu0 0
      %1639 = vmatpush1.bf16.msra.mxu0 %v1177
      %1640 = vmatprep.subr.bf16.mxu0 0
      %1641 = vmatpush1.bf16.msra.mxu0 %v1178
      %1642 = vmatprep.subr.bf16.mxu0 0
      %1643 = vmatpush1.bf16.msra.mxu0 %v1179
      %1644 = vmatprep.subr.bf16.mxu0 0
      %1645 = vmatpush1.bf16.msra.mxu0 %v1180
      %1646 = vmatprep.subr.bf16.mxu0 0
      %1647 = vmatpush1.bf16.msra.mxu0 %v1181
      %1648 = vmatprep.subr.bf16.mxu0 0
      %1649 = vmatpush1.bf16.msra.mxu0 %v1182
      %1650 = vmatprep.subr.bf16.mxu0 0
      %1651 = vmatpush1.bf16.msra.mxu0 %v1183
      %1652 = vmatprep.subr.bf16.mxu0 0
      %1653 = vmatpush1.bf16.msra.mxu0 %v1184
      %1654 = vmatprep.subr.bf16.mxu0 0
      %1655 = vmatpush1.bf16.msra.mxu0 %v1185
      %1656 = vmatprep.subr.bf16.mxu0 0
      %1657 = vmatpush1.bf16.msra.mxu0 %v1186
      %1658 = vmatprep.subr.bf16.mxu0 0
      %1659 = vmatpush1.bf16.msra.mxu0 %v1187
      %1660 = vmatprep.subr.bf16.mxu0 0
      %1661 = vmatpush1.bf16.msra.mxu0 %v1188
      %1662 = vmatprep.subr.bf16.mxu0 0
      %1663 = vmatpush1.bf16.msra.mxu0 %v1189
      %1664 = vmatprep.mubr.bf16.mxu0 %v605
      %1665 = vmatmul.mubr.bf16.gmra.mrb[0].mxu0 %v604
      %v1666 = vpop.f32.mrb[0].mxu0
      %v1667 = vadd.f32 %v1602, %v1666
      %v1668 = vpop.f32.mrb[0].mxu0
      %v1669 = vpop.f32.mrb[0].mxu0
      %v1670 = vadd.f32 %v1605, %v1669
      %v1671 = vpop.f32.mrb[0].mxu0
      %1672 = vmatprep.mubr.bf16.mxu0 %v618
      %1673 = vmatmul.mubr.bf16.gmra.mrb[0].mxu0 %v617
      %v1674 = vpop.f32.mrb[0].mxu0
      %v1675 = vadd.f32 %v1610, %v1674
      %v1676 = vpop.f32.mrb[0].mxu0
      %v1677 = vpop.f32.mrb[0].mxu0
      %v1678 = vadd.f32 %v1613, %v1677
      %v1679 = vpop.f32.mrb[0].mxu0
      %1680 = vmatprep.mubr.bf16.mxu0 %v631
      %1681 = vmatmul.mubr.bf16.gmra.mrb[0].mxu0 %v630
      %v1682 = vpop.f32.mrb[0].mxu0
      %v1683 = vadd.f32 %v1618, %v1682
      %v1684 = vpop.f32.mrb[0].mxu0
      %v1685 = vpop.f32.mrb[0].mxu0
      %v1686 = vadd.f32 %v1621, %v1685
      %v1687 = vpop.f32.mrb[0].mxu0
      %1688 = vmatprep.mubr.bf16.mxu0 %v644
      %1689 = vmatmul.mubr.bf16.gmra.mrb[0].mxu0 %v643
      %v1690 = vpop.f32.mrb[0].mxu0
      %v1691 = vadd.f32 %v1626, %v1690
      %v1692 = vpop.f32.mrb[0].mxu0
      %v1693 = vpop.f32.mrb[0].mxu0
      %v1694 = vadd.f32 %v1629, %v1693
      %v1695 = vpop.f32.mrb[0].mxu0
      %1696 = vdwg.mxu0
      %1697 = vmatprep.subr.bf16.mxu0 0
      %1698 = vmatpush1.bf16.msra.mxu0 %v1190
      %1699 = vmatprep.subr.bf16.mxu0 0
      %1700 = vmatpush1.bf16.msra.mxu0 %v1191
      %1701 = vmatprep.subr.bf16.mxu0 0
      %1702 = vmatpush1.bf16.msra.mxu0 %v1192
      %1703 = vmatprep.subr.bf16.mxu0 0
      %1704 = vmatpush1.bf16.msra.mxu0 %v1193
      %1705 = vmatprep.subr.bf16.mxu0 0
      %1706 = vmatpush1.bf16.msra.mxu0 0
      %1707 = vmatprep.subr.bf16.mxu0 0
      %1708 = vmatpush1.bf16.msra.mxu0 0
      %1709 = vmatprep.subr.bf16.mxu0 0
      %1710 = vmatpush1.bf16.msra.mxu0 0
      %1711 = vmatprep.subr.bf16.mxu0 0
      %1712 = vmatpush1.bf16.msra.mxu0 0
      %1713 = vmatprep.subr.bf16.mxu0 0
      %1714 = vmatpush1.bf16.msra.mxu0 0
      %1715 = vmatprep.subr.bf16.mxu0 0
      %1716 = vmatpush1.bf16.msra.mxu0 0
      %1717 = vmatprep.subr.bf16.mxu0 0
      %1718 = vmatpush1.bf16.msra.mxu0 0
      %1719 = vmatprep.subr.bf16.mxu0 0
      %1720 = vmatpush1.bf16.msra.mxu0 0
      %1721 = vmatprep.subr.bf16.mxu0 0
      %1722 = vmatpush1.bf16.msra.mxu0 0
      %1723 = vmatprep.subr.bf16.mxu0 0
      %1724 = vmatpush1.bf16.msra.mxu0 0
      %1725 = vmatprep.subr.bf16.mxu0 0
      %1726 = vmatpush1.bf16.msra.mxu0 0
      %1727 = vmatprep.subr.bf16.mxu0 0
      %1728 = vmatpush1.bf16.msra.mxu0 0
      %1729 = vmatprep.mubr.bf16.mxu0 0
      %1730 = vmatmul.mubr.bf16.gmra.mrb[0].mxu0 %v1296
      %v1731 = vpop.f32.mrb[0].mxu0
      %v1732 = vadd.f32 %v1667, %v1731
      %v1733 = vpop.f32.mrb[0].mxu0
      %v1734 = vpop.f32.mrb[0].mxu0
      %v1735 = vadd.f32 %v1670, %v1734
      %v1736 = vpop.f32.mrb[0].mxu0
      %1737 = vmatprep.mubr.bf16.mxu0 0
      %1738 = vmatmul.mubr.bf16.gmra.mrb[0].mxu0 %v1299
      %v1739 = vpop.f32.mrb[0].mxu0
      %v1740 = vadd.f32 %v1675, %v1739
      %v1741 = vpop.f32.mrb[0].mxu0
      %v1742 = vpop.f32.mrb[0].mxu0
      %v1743 = vadd.f32 %v1678, %v1742
      %v1744 = vpop.f32.mrb[0].mxu0
      %1745 = vmatprep.mubr.bf16.mxu0 0
      %1746 = vmatmul.mubr.bf16.gmra.mrb[0].mxu0 %v1302
      %v1747 = vpop.f32.mrb[0].mxu0
      %v1748 = vadd.f32 %v1683, %v1747
      %v1749 = vpop.f32.mrb[0].mxu0
      %v1750 = vpop.f32.mrb[0].mxu0
      %v1751 = vadd.f32 %v1686, %v1750
      %v1752 = vpop.f32.mrb[0].mxu0
      %1753 = vmatprep.mubr.bf16.mxu0 0
      %1754 = vmatmul.mubr.bf16.gmra.mrb[0].mxu0 %v1305
      %v1755 = vpop.f32.mrb[0].mxu0
      %v1756 = vadd.f32 %v1691, %v1755
      %v1757 = vpop.f32.mrb[0].mxu0
      %v1758 = vpop.f32.mrb[0].mxu0
      %v1759 = vadd.f32 %v1694, %v1758
      %v1760 = vpop.f32.mrb[0].mxu0
      %1761 = vdwg.mxu0
      %1770 = vrot.lane.b32.xlu0 %v1732, 96
      %v1771 = vpop.permute.xlu0 %1770
      %1772 = vrot.lane.b32.xlu0 %v1735, 96
      %v1773 = vpop.permute.xlu0 %1772
      %1774 = vrot.lane.b32.xlu0 %v1740, 96
      %v1775 = vpop.permute.xlu0 %1774
      %1776 = vrot.lane.b32.xlu0 %v1743, 96
      %v1777 = vpop.permute.xlu0 %1776
      %1778 = vrot.lane.b32.xlu0 %v1748, 96
      %v1779 = vpop.permute.xlu0 %1778
      %1780 = vrot.lane.b32.xlu0 %v1751, 96
      %v1781 = vpop.permute.xlu0 %1780
      %1782 = vrot.lane.b32.xlu0 %v1756, 96
      %v1783 = vpop.permute.xlu0 %1782
      %1784 = vrot.lane.b32.xlu0 %v1759, 96
      %v1785 = vpop.permute.xlu0 %1784
      %v1794 = vmax.f32 %v1732, %v1771
      %v1795 = vmax.f32 %v1735, %v1773
      %v1796 = vmax.f32 %v1740, %v1775
      %v1797 = vmax.f32 %v1743, %v1777
      %v1798 = vmax.f32 %v1748, %v1779
      %v1799 = vmax.f32 %v1751, %v1781
      %v1800 = vmax.f32 %v1756, %v1783
      %v1801 = vmax.f32 %v1759, %v1785
      %1810 = vrot.lane.b32.xlu0 %v1794, 64
      %v1811 = vpop.permute.xlu0 %1810
      %1812 = vrot.lane.b32.xlu0 %v1795, 64
      %v1813 = vpop.permute.xlu0 %1812
      %1814 = vrot.lane.b32.xlu0 %v1796, 64
      %v1815 = vpop.permute.xlu0 %1814
      %1816 = vrot.lane.b32.xlu0 %v1797, 64
      %v1817 = vpop.permute.xlu0 %1816
      %1818 = vrot.lane.b32.xlu0 %v1798, 64
      %v1819 = vpop.permute.xlu0 %1818
      %1820 = vrot.lane.b32.xlu0 %v1799, 64
      %v1821 = vpop.permute.xlu0 %1820
      %1822 = vrot.lane.b32.xlu0 %v1800, 64
      %v1823 = vpop.permute.xlu0 %1822
      %1824 = vrot.lane.b32.xlu0 %v1801, 64
      %v1825 = vpop.permute.xlu0 %1824
      %v1834 = vmax.f32 %v1794, %v1811
      %v1835 = vmax.f32 %v1795, %v1813
      %v1836 = vmax.f32 %v1796, %v1815
      %v1837 = vmax.f32 %v1797, %v1817
      %v1838 = vmax.f32 %v1798, %v1819
      %v1839 = vmax.f32 %v1799, %v1821
      %v1840 = vmax.f32 %v1800, %v1823
      %v1841 = vmax.f32 %v1801, %v1825
      %v1842 = vld [vmem:[%s2] sm:$0x1]
      %v1844 = vlaneseq
      %v1845 = vshrl.u32 %v1844, 7
      %v1846 = vsub.s32 0, %v1845
      %v1847 = vrot.slane %v1842, %v1846
      %v1849 = vadd.f32 %v1834, %v1847
      %v1850 = vadd.f32 %v1835, %v1847
      %v1851 = vadd.f32 %v1836, %v1847
      %v1852 = vadd.f32 %v1837, %v1847
      %v1853 = vadd.f32 %v1838, %v1847
      %v1854 = vadd.f32 %v1839, %v1847
      %v1855 = vadd.f32 %v1840, %v1847
      %v1856 = vadd.f32 %v1841, %v1847
      %v1857 = vmax.f32 %v1849, 0.0
      %v1858 = vmax.f32 %v1850, 0.0
      %v1859 = vmax.f32 %v1851, 0.0
      %v1860 = vmax.f32 %v1852, 0.0
      %v1861 = vmax.f32 %v1853, 0.0
      %v1862 = vmax.f32 %v1854, 0.0
      %v1863 = vmax.f32 %v1855, 0.0
      %v1864 = vmax.f32 %v1856, 0.0
      %v1865 = vpack.c.bf16 %v1858, %v1857
      %v1866 = vpack.c.bf16 %v1860, %v1859
      %v1867 = vpack.c.bf16 %v1862, %v1861
      %v1868 = vpack.c.bf16 %v1864, %v1863
      %v1873 = vunpack.c.l.b16 %v1865
      %v1874 = vunpack.c.h.b16 %v1865
      %v1875 = vunpack.c.l.b16 %v1866
      %v1876 = vunpack.c.h.b16 %v1866
      %v1877 = vunpack.c.l.b16 %v1867
      %v1878 = vunpack.c.h.b16 %v1867
      %v1879 = vunpack.c.l.b16 %v1868
      %v1880 = vunpack.c.h.b16 %v1868
      %v1881 = vpack.c.b16 %v1873, %v1873
      %v1882 = vpack.c.b16 %v1874, %v1874
      %v1883 = vpack.c.b16 %v1875, %v1875
      %v1884 = vpack.c.b16 %v1876, %v1876
      %v1885 = vpack.c.b16 %v1877, %v1877
      %v1886 = vpack.c.b16 %v1878, %v1878
      %v1887 = vpack.c.b16 %v1879, %v1879
      %v1888 = vpack.c.b16 %v1880, %v1880
      %vm1897 = vcmask 257024
      %1898 = vst.msk [vmem:[%s175] sm:$0xf] %vm1897, %v1881
      %1899 = vst.msk [vmem:[%s175 + $0x4] sm:$0xf] %vm1897, %v1882
      %1900 = vst.msk [vmem:[%s175 + $0x8] sm:$0xf] %vm1897, %v1883
      %1901 = vst.msk [vmem:[%s175 + $0xc] sm:$0xf] %vm1897, %v1884
      %1902 = vst.msk [vmem:[%s175 + $0x10] sm:$0xf] %vm1897, %v1885
      %1903 = vst.msk [vmem:[%s175 + $0x14] sm:$0xf] %vm1897, %v1886
      %1904 = vst.msk [vmem:[%s175 + $0x18] sm:$0xf] %vm1897, %v1887
      %1905 = vst.msk [vmem:[%s175 + $0x1c] sm:$0xf] %vm1897, %v1888
      %s1906 = smul.u32 8, %s14
      %p1907 = scmp.lt.s32.totalorder %s1906, 15
      %s1908 = scalar_select %p1907, %s1906, 15
      %s1909 = smul.addr %s1908, 4
      %s1910 = scalar_lea.vmem %s3, %s1909
      // Predicated region
      $region33: #{cnn_forward.4} parent=31 // pred_check
        %p1911 = pneg %p100
      $region34: #{cnn_forward.4} parent=31 // pred_check_branch
        %1913 = sbr.rel (%p1911) target = $region36
      $region35: #{cnn_forward.4} parent=31 // pred_region
        %s1914 = smul.u32 8, %s14
      $region36: #{cnn_forward.4} parent=31 // pred_fallthru
        _
    $region32: #{cnn_forward.4} parent=5 // pred_fallthru
      _
    %p1915 = scmp.le.s32.totalorder 2, %s9
    // Predicated region
    $region37: #{cnn_forward.4} parent=5 // pred_check
      %p1916 = pneg %p1915
    $region38: #{cnn_forward.4} parent=5 // pred_check_branch
      %1918 = sbr.rel (%p1916) target = $region40
    $region39: #{cnn_forward.4} parent=5 // pred_region
      %s1919 = ssub.s32 %s9, 2
      // Predicated region
      $region41: #{cnn_forward.4} parent=39 // pred_check
        %p1920 = pneg %p106
      $region42: #{cnn_forward.4} parent=39 // pred_check_branch
        %1922 = sbr.rel (%p1920) target = $region44
      $region43: #{cnn_forward.4} parent=39 // pred_region
        %s1923 = smul.u32 8, %s15
        %p1924 = scmp.lt.s32.totalorder %s1923, 15
        %s1925 = scalar_select %p1924, %s1923, 15
        %s1926 = smul.addr %s1925, 4
        %s1927 = scalar_lea.vmem %s3, %s1926
      $region44: #{cnn_forward.4} parent=39 // pred_fallthru
        _
    $region40: #{cnn_forward.4} parent=5 // pred_fallthru
      _
  $region6: #{cnn_forward.4} parent=0 // loop_footer
    %s13 = sadd.s32 1, %s9
  $region7: #{cnn_forward.4} parent=0 // loop_footer_branch
    %8 = sbr.rel target = $region3
  $region8: #{cnn_forward.4} parent=0 // loop_exit
    _

// kernel: cnn_forward.5
$region0: #{cnn_forward.5}
  #allocation0 [shape = 'u32[]', space=smem, size = 0x4, offset = 0x4, fixed_abs, tag = 'smem constant byte address 0x4 - core index']
  #allocation1 [shape = 'u32[144,128]{1,0:T(1,128)}', space=vmem, size = 0x12000, scoped, tag = 'internal scratch']
  %s0 = inlined_call_operand.vmem [shape: bf16[16,1568], index: 0, kind: input, shape index: {}]
  %s1 = inlined_call_operand.vmem [shape: bf16[1568,10], index: 1, kind: input, shape index: {}]
  %s2 = inlined_call_operand.vmem [shape: f32[1,10], index: 2, kind: input, shape index: {}]
  %s3 = inlined_call_operand.vmem [shape: f32[16,10], index: 3, kind: output, shape index: {}]
  %s4 = sld [smem:[#allocation0]]
  $region22: #{cnn_forward.5} parent=0
    _
  %s6 = ssub.s32 1, %s4
  %s7 = scalar_select 0, %s6, %s4
  // Predicated region
  $region2: #{cnn_forward.5} parent=0 // pred_check
    _
  $region3: #{cnn_forward.5} parent=0 // pred_check_branch
    %9 = sbr.rel (0) target = $region5
  $region4: #{cnn_forward.5} parent=0 // pred_region
    _
  $region5: #{cnn_forward.5} parent=0 // pred_fallthru
    _
  // Predicated region
  $region6: #{cnn_forward.5} parent=0 // pred_check
    _
  $region7: #{cnn_forward.5} parent=0 // pred_check_branch
    %11 = sbr.rel (0) target = $region9
  $region8: #{cnn_forward.5} parent=0 // pred_region
    _
  $region9: #{cnn_forward.5} parent=0 // pred_fallthru
    _
  // Predicated region
  $region10: #{cnn_forward.5} parent=0 // pred_check
    _
  $region11: #{cnn_forward.5} parent=0 // pred_check_branch
    %13 = sbr.rel (0) target = $region13
  $region12: #{cnn_forward.5} parent=0 // pred_region
    _
  $region13: #{cnn_forward.5} parent=0 // pred_fallthru
    _
  %v15 = vld [vmem:[%s0] sm:$0xff]
  %v16 = vld [vmem:[%s0 + $0x8] sm:$0xff]
  %v17 = vld [vmem:[%s0 + $0x10] sm:$0xff]
  %v18 = vld [vmem:[%s0 + $0x18] sm:$0xff]
  %v19 = vld [vmem:[%s0 + $0x20] sm:$0xff]
  %v20 = vld [vmem:[%s0 + $0x28] sm:$0xff]
  %v21 = vld [vmem:[%s0 + $0x30] sm:$0xf]
  %v22 = vld [vmem:[%s0 + $0x34] sm:$0xff]
  %v23 = vld [vmem:[%s0 + $0x3c] sm:$0xff]
  %v24 = vld [vmem:[%s0 + $0x44] sm:$0xff]
  %v25 = vld [vmem:[%s0 + $0x4c] sm:$0xff]
  %v26 = vld [vmem:[%s0 + $0x54] sm:$0xff]
  %v27 = vld [vmem:[%s0 + $0x5c] sm:$0xff]
  %v28 = vld [vmem:[%s0 + $0x64] sm:$0xf]
  %v29 = vld [vmem:[%s1] sm:$0xf]
  %v30 = vld [vmem:[%s1 + $0x4] sm:$0xf]
  %v31 = vld [vmem:[%s1 + $0x8] sm:$0xf]
  %v32 = vld [vmem:[%s1 + $0xc] sm:$0xf]
  %v33 = vld [vmem:[%s1 + $0x10] sm:$0xf]
  %v34 = vld [vmem:[%s1 + $0x14] sm:$0xf]
  %v35 = vld [vmem:[%s1 + $0x18] sm:$0xf]
  %v36 = vld [vmem:[%s1 + $0x1c] sm:$0xf]
  %v37 = vld [vmem:[%s1 + $0x20] sm:$0xf]
  %v38 = vld [vmem:[%s1 + $0x24] sm:$0xf]
  %v39 = vld [vmem:[%s1 + $0x28] sm:$0xf]
  %v40 = vld [vmem:[%s1 + $0x2c] sm:$0xf]
  %v41 = vld [vmem:[%s1 + $0x30] sm:$0xf]
  %v42 = vld [vmem:[%s1 + $0x34] sm:$0xf]
  %v43 = vld [vmem:[%s1 + $0x38] sm:$0xf]
  %v44 = vld [vmem:[%s1 + $0x3c] sm:$0xf]
  %v45 = vld [vmem:[%s1 + $0x40] sm:$0xf]
  %v46 = vld [vmem:[%s1 + $0x44] sm:$0xf]
  %v47 = vld [vmem:[%s1 + $0x48] sm:$0xf]
  %v48 = vld [vmem:[%s1 + $0x4c] sm:$0xf]
  %v49 = vld [vmem:[%s1 + $0x50] sm:$0xf]
  %v50 = vld [vmem:[%s1 + $0x54] sm:$0xf]
  %v51 = vld [vmem:[%s1 + $0x58] sm:$0xf]
  %v52 = vld [vmem:[%s1 + $0x5c] sm:$0xf]
  %v53 = vld [vmem:[%s1 + $0x60] sm:$0xf]
  %v54 = vld [vmem:[%s1 + $0x64] sm:$0xf]
  %v55 = vld [vmem:[%s1 + $0x68] sm:$0xf]
  %v56 = vld [vmem:[%s1 + $0x6c] sm:$0xf]
  %v57 = vld [vmem:[%s1 + $0x70] sm:$0xf]
  %v58 = vld [vmem:[%s1 + $0x74] sm:$0xf]
  %v59 = vld [vmem:[%s1 + $0x78] sm:$0xf]
  %v60 = vld [vmem:[%s1 + $0x7c] sm:$0xf]
  %v61 = vld [vmem:[%s1 + $0x80] sm:$0xf]
  %v62 = vld [vmem:[%s1 + $0x84] sm:$0xf]
  %v63 = vld [vmem:[%s1 + $0x88] sm:$0xf]
  %v64 = vld [vmem:[%s1 + $0x8c] sm:$0xf]
  %v65 = vld [vmem:[%s1 + $0x90] sm:$0xf]
  %v66 = vld [vmem:[%s1 + $0x94] sm:$0xf]
  %v67 = vld [vmem:[%s1 + $0x98] sm:$0xf]
  %v68 = vld [vmem:[%s1 + $0x9c] sm:$0xf]
  %v69 = vld [vmem:[%s1 + $0xa0] sm:$0xf]
  %v70 = vld [vmem:[%s1 + $0xa4] sm:$0xf]
  %v71 = vld [vmem:[%s1 + $0xa8] sm:$0xf]
  %v72 = vld [vmem:[%s1 + $0xac] sm:$0xf]
  %v73 = vld [vmem:[%s1 + $0xb0] sm:$0xf]
  %v74 = vld [vmem:[%s1 + $0xb4] sm:$0xf]
  %v75 = vld [vmem:[%s1 + $0xb8] sm:$0xf]
  %v76 = vld [vmem:[%s1 + $0xbc] sm:$0xf]
  %v77 = vld [vmem:[%s1 + $0xc0] sm:$0xf]
  %v78 = vld [vmem:[%s1 + $0xc4] sm:$0xf]
  %v79 = vld [vmem:[%s1 + $0xc8] sm:$0xf]
  %v80 = vld [vmem:[%s1 + $0xcc] sm:$0xf]
  %v81 = vld [vmem:[%s1 + $0xd0] sm:$0xf]
  %v82 = vld [vmem:[%s1 + $0xd4] sm:$0xf]
  %v83 = vld [vmem:[%s1 + $0xd8] sm:$0xf]
  %v84 = vld [vmem:[%s1 + $0xdc] sm:$0xf]
  %v85 = vld [vmem:[%s1 + $0xe0] sm:$0xf]
  %v86 = vld [vmem:[%s1 + $0xe4] sm:$0xf]
  %v87 = vld [vmem:[%s1 + $0xe8] sm:$0xf]
  %v88 = vld [vmem:[%s1 + $0xec] sm:$0xf]
  %v89 = vld [vmem:[%s1 + $0xf0] sm:$0xf]
  %v90 = vld [vmem:[%s1 + $0xf4] sm:$0xf]
  %v91 = vld [vmem:[%s1 + $0xf8] sm:$0xf]
  %v92 = vld [vmem:[%s1 + $0xfc] sm:$0xf]
  %v93 = vld [vmem:[%s1 + $0x100] sm:$0xf]
  %v94 = vld [vmem:[%s1 + $0x104] sm:$0xf]
  %v95 = vld [vmem:[%s1 + $0x108] sm:$0xf]
  %v96 = vld [vmem:[%s1 + $0x10c] sm:$0xf]
  %v97 = vld [vmem:[%s1 + $0x110] sm:$0xf]
  %v98 = vld [vmem:[%s1 + $0x114] sm:$0xf]
  %v99 = vld [vmem:[%s1 + $0x118] sm:$0xf]
  %v100 = vld [vmem:[%s1 + $0x11c] sm:$0xf]
  %v101 = vld [vmem:[%s1 + $0x120] sm:$0xf]
  %v102 = vld [vmem:[%s1 + $0x124] sm:$0xf]
  %v103 = vld [vmem:[%s1 + $0x128] sm:$0xf]
  %v104 = vld [vmem:[%s1 + $0x12c] sm:$0xf]
  %v105 = vld [vmem:[%s1 + $0x130] sm:$0xf]
  %v106 = vld [vmem:[%s1 + $0x134] sm:$0xf]
  %v107 = vld [vmem:[%s1 + $0x138] sm:$0xf]
  %v108 = vld [vmem:[%s1 + $0x13c] sm:$0xf]
  %v109 = vld [vmem:[%s1 + $0x140] sm:$0xf]
  %v110 = vld [vmem:[%s1 + $0x144] sm:$0xf]
  %v111 = vld [vmem:[%s1 + $0x148] sm:$0xf]
  %v112 = vld [vmem:[%s1 + $0x14c] sm:$0xf]
  %v113 = vld [vmem:[%s1 + $0x150] sm:$0xf]
  %v114 = vld [vmem:[%s1 + $0x154] sm:$0xf]
  %v115 = vld [vmem:[%s1 + $0x158] sm:$0xf]
  %v116 = vld [vmem:[%s1 + $0x15c] sm:$0xf]
  %v117 = vld [vmem:[%s1 + $0x160] sm:$0xf]
  %v118 = vld [vmem:[%s1 + $0x164] sm:$0xf]
  %v119 = vld [vmem:[%s1 + $0x168] sm:$0xf]
  %v120 = vld [vmem:[%s1 + $0x16c] sm:$0xf]
  %v121 = vld [vmem:[%s1 + $0x170] sm:$0xf]
  %v122 = vld [vmem:[%s1 + $0x174] sm:$0xf]
  %v123 = vld [vmem:[%s1 + $0x178] sm:$0xf]
  %v124 = vld [vmem:[%s1 + $0x17c] sm:$0xf]
  %v125 = vld [vmem:[%s1 + $0x180] sm:$0xf]
  %v126 = vld [vmem:[%s1 + $0x184] sm:$0xf]
  %v127 = vld [vmem:[%s1 + $0x188] sm:$0xf]
  %v128 = vld [vmem:[%s1 + $0x18c] sm:$0xf]
  %v129 = vld [vmem:[%s1 + $0x190] sm:$0xf]
  %v130 = vld [vmem:[%s1 + $0x194] sm:$0xf]
  %v131 = vld [vmem:[%s1 + $0x198] sm:$0xf]
  %v132 = vld [vmem:[%s1 + $0x19c] sm:$0xf]
  %v133 = vld [vmem:[%s1 + $0x1a0] sm:$0xf]
  %v134 = vld [vmem:[%s1 + $0x1a4] sm:$0xf]
  %v135 = vld [vmem:[%s1 + $0x1a8] sm:$0xf]
  %v136 = vld [vmem:[%s1 + $0x1ac] sm:$0xf]
  %v137 = vld [vmem:[%s1 + $0x1b0] sm:$0xf]
  %v138 = vld [vmem:[%s1 + $0x1b4] sm:$0xf]
  %v139 = vld [vmem:[%s1 + $0x1b8] sm:$0xf]
  %v140 = vld [vmem:[%s1 + $0x1bc] sm:$0xf]
  %v141 = vld [vmem:[%s1 + $0x1c0] sm:$0xf]
  %v142 = vld [vmem:[%s1 + $0x1c4] sm:$0xf]
  %v143 = vld [vmem:[%s1 + $0x1c8] sm:$0xf]
  %v144 = vld [vmem:[%s1 + $0x1cc] sm:$0xf]
  %v145 = vld [vmem:[%s1 + $0x1d0] sm:$0xf]
  %v146 = vld [vmem:[%s1 + $0x1d4] sm:$0xf]
  %v147 = vld [vmem:[%s1 + $0x1d8] sm:$0xf]
  %v148 = vld [vmem:[%s1 + $0x1dc] sm:$0xf]
  %v149 = vld [vmem:[%s1 + $0x1e0] sm:$0xf]
  %v150 = vld [vmem:[%s1 + $0x1e4] sm:$0xf]
  %v151 = vld [vmem:[%s1 + $0x1e8] sm:$0xf]
  %v152 = vld [vmem:[%s1 + $0x1ec] sm:$0xf]
  %v153 = vld [vmem:[%s1 + $0x1f0] sm:$0xf]
  %v154 = vld [vmem:[%s1 + $0x1f4] sm:$0xf]
  %v155 = vld [vmem:[%s1 + $0x1f8] sm:$0xf]
  %v156 = vld [vmem:[%s1 + $0x1fc] sm:$0xf]
  %v157 = vld [vmem:[%s1 + $0x200] sm:$0xf]
  %v158 = vld [vmem:[%s1 + $0x204] sm:$0xf]
  %v159 = vld [vmem:[%s1 + $0x208] sm:$0xf]
  %v160 = vld [vmem:[%s1 + $0x20c] sm:$0xf]
  %v161 = vld [vmem:[%s1 + $0x210] sm:$0xf]
  %v162 = vld [vmem:[%s1 + $0x214] sm:$0xf]
  %v163 = vld [vmem:[%s1 + $0x218] sm:$0xf]
  %v164 = vld [vmem:[%s1 + $0x21c] sm:$0xf]
  %v165 = vld [vmem:[%s1 + $0x220] sm:$0xf]
  %v166 = vld [vmem:[%s1 + $0x224] sm:$0xf]
  %v167 = vld [vmem:[%s1 + $0x228] sm:$0xf]
  %v168 = vld [vmem:[%s1 + $0x22c] sm:$0xf]
  %v169 = vld [vmem:[%s1 + $0x230] sm:$0xf]
  %v170 = vld [vmem:[%s1 + $0x234] sm:$0xf]
  %v171 = vld [vmem:[%s1 + $0x238] sm:$0xf]
  %v172 = vld [vmem:[%s1 + $0x23c] sm:$0xf]
  %v173 = vld [vmem:[%s1 + $0x240] sm:$0xf]
  %v174 = vld [vmem:[%s1 + $0x244] sm:$0xf]
  %v175 = vld [vmem:[%s1 + $0x248] sm:$0xf]
  %v176 = vld [vmem:[%s1 + $0x24c] sm:$0xf]
  %v177 = vld [vmem:[%s1 + $0x250] sm:$0xf]
  %v178 = vld [vmem:[%s1 + $0x254] sm:$0xf]
  %v179 = vld [vmem:[%s1 + $0x258] sm:$0xf]
  %v180 = vld [vmem:[%s1 + $0x25c] sm:$0xf]
  %v181 = vld [vmem:[%s1 + $0x260] sm:$0xf]
  %v182 = vld [vmem:[%s1 + $0x264] sm:$0xf]
  %v183 = vld [vmem:[%s1 + $0x268] sm:$0xf]
  %v184 = vld [vmem:[%s1 + $0x26c] sm:$0xf]
  %v185 = vld [vmem:[%s1 + $0x270] sm:$0xf]
  %v186 = vld [vmem:[%s1 + $0x274] sm:$0xf]
  %v187 = vld [vmem:[%s1 + $0x278] sm:$0xf]
  %v188 = vld [vmem:[%s1 + $0x27c] sm:$0xf]
  %v189 = vld [vmem:[%s1 + $0x280] sm:$0xf]
  %v190 = vld [vmem:[%s1 + $0x284] sm:$0xf]
  %v191 = vld [vmem:[%s1 + $0x288] sm:$0xf]
  %v192 = vld [vmem:[%s1 + $0x28c] sm:$0xf]
  %v193 = vld [vmem:[%s1 + $0x290] sm:$0xf]
  %v194 = vld [vmem:[%s1 + $0x294] sm:$0xf]
  %v195 = vld [vmem:[%s1 + $0x298] sm:$0xf]
  %v196 = vld [vmem:[%s1 + $0x29c] sm:$0xf]
  %v197 = vld [vmem:[%s1 + $0x2a0] sm:$0xf]
  %v198 = vld [vmem:[%s1 + $0x2a4] sm:$0xf]
  %v199 = vld [vmem:[%s1 + $0x2a8] sm:$0xf]
  %v200 = vld [vmem:[%s1 + $0x2ac] sm:$0xf]
  %v201 = vld [vmem:[%s1 + $0x2b0] sm:$0xf]
  %v202 = vld [vmem:[%s1 + $0x2b4] sm:$0xf]
  %v203 = vld [vmem:[%s1 + $0x2b8] sm:$0xf]
  %v204 = vld [vmem:[%s1 + $0x2bc] sm:$0xf]
  %v205 = vld [vmem:[%s1 + $0x2c0] sm:$0xf]
  %v206 = vld [vmem:[%s1 + $0x2c4] sm:$0xf]
  %v207 = vld [vmem:[%s1 + $0x2c8] sm:$0xf]
  %v208 = vld [vmem:[%s1 + $0x2cc] sm:$0xf]
  %v209 = vld [vmem:[%s1 + $0x2d0] sm:$0xf]
  %v210 = vld [vmem:[%s1 + $0x2d4] sm:$0xf]
  %v211 = vld [vmem:[%s1 + $0x2d8] sm:$0xf]
  %v212 = vld [vmem:[%s1 + $0x2dc] sm:$0xf]
  %v213 = vld [vmem:[%s1 + $0x2e0] sm:$0xf]
  %v214 = vld [vmem:[%s1 + $0x2e4] sm:$0xf]
  %v215 = vld [vmem:[%s1 + $0x2e8] sm:$0xf]
  %v216 = vld [vmem:[%s1 + $0x2ec] sm:$0xf]
  %v217 = vld [vmem:[%s1 + $0x2f0] sm:$0xf]
  %v218 = vld [vmem:[%s1 + $0x2f4] sm:$0xf]
  %v219 = vld [vmem:[%s1 + $0x2f8] sm:$0xf]
  %v220 = vld [vmem:[%s1 + $0x2fc] sm:$0xf]
  %v221 = vld [vmem:[%s1 + $0x300] sm:$0xf]
  %v222 = vld [vmem:[%s1 + $0x304] sm:$0xf]
  %v223 = vld [vmem:[%s1 + $0x308] sm:$0xf]
  %v224 = vld [vmem:[%s1 + $0x30c] sm:$0xf]
  %v225 = vld [vmem:[%s2] sm:$0x1]
  %v227 = vlaneseq
  %v228 = vshrl.u32 %v227, 7
  %v229 = vsub.s32 0, %v228
  %v230 = vrot.slane %v225, %v229
  %v246 = vunpack.c.l.b16 %v15
  %v247 = vunpack.c.h.b16 %v15
  %v248 = vunpack.c.l.b16 %v16
  %v249 = vunpack.c.h.b16 %v16
  %v250 = vunpack.c.l.b16 %v17
  %v251 = vunpack.c.h.b16 %v17
  %v252 = vunpack.c.l.b16 %v18
  %v253 = vunpack.c.h.b16 %v18
  %v254 = vunpack.c.l.b16 %v19
  %v255 = vunpack.c.h.b16 %v19
  %v256 = vunpack.c.l.b16 %v20
  %v257 = vunpack.c.h.b16 %v20
  %v258 = vunpack.c.l.b16 %v21
  %v259 = vunpack.c.l.b16 %v22
  %v260 = vunpack.c.h.b16 %v22
  %v261 = vunpack.c.l.b16 %v23
  %v262 = vunpack.c.h.b16 %v23
  %v263 = vunpack.c.l.b16 %v24
  %v264 = vunpack.c.h.b16 %v24
  %v265 = vunpack.c.l.b16 %v25
  %v266 = vunpack.c.h.b16 %v25
  %v267 = vunpack.c.l.b16 %v26
  %v268 = vunpack.c.h.b16 %v26
  %v269 = vunpack.c.l.b16 %v27
  %v270 = vunpack.c.h.b16 %v27
  %v271 = vunpack.c.l.b16 %v28
  %v272 = vpack.c.b16 %v259, %v246
  %v273 = vpack.c.b16 %v260, %v247
  %v274 = vpack.c.b16 %v261, %v248
  %v275 = vpack.c.b16 %v262, %v249
  %v276 = vpack.c.b16 %v263, %v250
  %v277 = vpack.c.b16 %v264, %v251
  %v278 = vpack.c.b16 %v265, %v252
  %v279 = vpack.c.b16 %v266, %v253
  %v280 = vpack.c.b16 %v267, %v254
  %v281 = vpack.c.b16 %v268, %v255
  %v282 = vpack.c.b16 %v269, %v256
  %v283 = vpack.c.b16 %v270, %v257
  %v284 = vpack.c.b16 %v271, %v258
  %v493 = vunpack.c.l.b16 %v29
  %v494 = vunpack.c.l.b16 %v30
  %v495 = vunpack.c.l.b16 %v31
  %v496 = vunpack.c.l.b16 %v32
  %v497 = vunpack.c.l.b16 %v33
  %v498 = vunpack.c.l.b16 %v34
  %v499 = vunpack.c.l.b16 %v35
  %v500 = vunpack.c.l.b16 %v36
  %v501 = vunpack.c.l.b16 %v37
  %v502 = vunpack.c.l.b16 %v38
  %v503 = vunpack.c.l.b16 %v39
  %v504 = vunpack.c.l.b16 %v40
  %v505 = vunpack.c.l.b16 %v41
  %v506 = vunpack.c.l.b16 %v42
  %v507 = vunpack.c.l.b16 %v43
  %v508 = vunpack.c.l.b16 %v44
  %v509 = vunpack.c.l.b16 %v45
  %v510 = vunpack.c.l.b16 %v46
  %v511 = vunpack.c.l.b16 %v47
  %v512 = vunpack.c.l.b16 %v48
  %v513 = vunpack.c.l.b16 %v49
  %v514 = vunpack.c.l.b16 %v50
  %v515 = vunpack.c.l.b16 %v51
  %v516 = vunpack.c.l.b16 %v52
  %v517 = vunpack.c.l.b16 %v53
  %v518 = vunpack.c.l.b16 %v54
  %v519 = vunpack.c.l.b16 %v55
  %v520 = vunpack.c.l.b16 %v56
  %v521 = vunpack.c.l.b16 %v57
  %v522 = vunpack.c.l.b16 %v58
  %v523 = vunpack.c.l.b16 %v59
  %v524 = vunpack.c.l.b16 %v60
  %v525 = vunpack.c.l.b16 %v61
  %v526 = vunpack.c.l.b16 %v62
  %v527 = vunpack.c.l.b16 %v63
  %v528 = vunpack.c.l.b16 %v64
  %v529 = vunpack.c.l.b16 %v65
  %v530 = vunpack.c.l.b16 %v66
  %v531 = vunpack.c.l.b16 %v67
  %v532 = vunpack.c.l.b16 %v68
  %v533 = vunpack.c.l.b16 %v69
  %v534 = vunpack.c.l.b16 %v70
  %v535 = vunpack.c.l.b16 %v71
  %v536 = vunpack.c.l.b16 %v72
  %v537 = vunpack.c.l.b16 %v73
  %v538 = vunpack.c.l.b16 %v74
  %v539 = vunpack.c.l.b16 %v75
  %v540 = vunpack.c.l.b16 %v76
  %v541 = vunpack.c.l.b16 %v77
  %v542 = vunpack.c.l.b16 %v78
  %v543 = vunpack.c.l.b16 %v79
  %v544 = vunpack.c.l.b16 %v80
  %v545 = vunpack.c.l.b16 %v81
  %v546 = vunpack.c.l.b16 %v82
  %v547 = vunpack.c.l.b16 %v83
  %v548 = vunpack.c.l.b16 %v84
  %v549 = vunpack.c.l.b16 %v85
  %v550 = vunpack.c.l.b16 %v86
  %v551 = vunpack.c.l.b16 %v87
  %v552 = vunpack.c.l.b16 %v88
  %v553 = vunpack.c.l.b16 %v89
  %v554 = vunpack.c.l.b16 %v90
  %v555 = vunpack.c.l.b16 %v91
  %v556 = vunpack.c.l.b16 %v92
  %v557 = vunpack.c.l.b16 %v93
  %v558 = vunpack.c.l.b16 %v94
  %v559 = vunpack.c.l.b16 %v95
  %v560 = vunpack.c.l.b16 %v96
  %v561 = vunpack.c.l.b16 %v97
  %v562 = vunpack.c.l.b16 %v98
  %v563 = vunpack.c.l.b16 %v99
  %v564 = vunpack.c.l.b16 %v100
  %v565 = vunpack.c.l.b16 %v101
  %v566 = vunpack.c.l.b16 %v102
  %v567 = vunpack.c.l.b16 %v103
  %v568 = vunpack.c.l.b16 %v104
  %v569 = vunpack.c.l.b16 %v105
  %v570 = vunpack.c.l.b16 %v106
  %v571 = vunpack.c.l.b16 %v107
  %v572 = vunpack.c.l.b16 %v108
  %v573 = vunpack.c.l.b16 %v109
  %v574 = vunpack.c.l.b16 %v110
  %v575 = vunpack.c.l.b16 %v111
  %v576 = vunpack.c.l.b16 %v112
  %v577 = vunpack.c.l.b16 %v113
  %v578 = vunpack.c.l.b16 %v114
  %v579 = vunpack.c.l.b16 %v115
  %v580 = vunpack.c.l.b16 %v116
  %v581 = vunpack.c.l.b16 %v117
  %v582 = vunpack.c.l.b16 %v118
  %v583 = vunpack.c.l.b16 %v119
  %v584 = vunpack.c.l.b16 %v120
  %v585 = vunpack.c.l.b16 %v121
  %v586 = vunpack.c.l.b16 %v122
  %v587 = vunpack.c.l.b16 %v123
  %v588 = vunpack.c.l.b16 %v124
  %v589 = vunpack.c.l.b16 %v125
  %v590 = vunpack.c.l.b16 %v126
  %v591 = vunpack.c.l.b16 %v127
  %v592 = vunpack.c.l.b16 %v128
  %v593 = vunpack.c.l.b16 %v129
  %v594 = vunpack.c.l.b16 %v130
  %v595 = vunpack.c.l.b16 %v131
  %v596 = vunpack.c.l.b16 %v132
  %v597 = vunpack.c.l.b16 %v133
  %v598 = vunpack.c.l.b16 %v134
  %v599 = vunpack.c.l.b16 %v135
  %v600 = vunpack.c.l.b16 %v136
  %v601 = vunpack.c.l.b16 %v137
  %v602 = vunpack.c.l.b16 %v138
  %v603 = vunpack.c.l.b16 %v139
  %v604 = vunpack.c.l.b16 %v140
  %v605 = vunpack.c.l.b16 %v141
  %v606 = vunpack.c.l.b16 %v142
  %v607 = vunpack.c.l.b16 %v143
  %v608 = vunpack.c.l.b16 %v144
  %v609 = vunpack.c.l.b16 %v145
  %v610 = vunpack.c.l.b16 %v146
  %v611 = vunpack.c.l.b16 %v147
  %v612 = vunpack.c.l.b16 %v148
  %v613 = vunpack.c.l.b16 %v149
  %v614 = vunpack.c.l.b16 %v150
  %v615 = vunpack.c.l.b16 %v151
  %v616 = vunpack.c.l.b16 %v152
  %v617 = vunpack.c.l.b16 %v153
  %v618 = vunpack.c.l.b16 %v154
  %v619 = vunpack.c.l.b16 %v155
  %v620 = vunpack.c.l.b16 %v156
  %v621 = vunpack.c.l.b16 %v157
  %v622 = vunpack.c.l.b16 %v158
  %v623 = vunpack.c.l.b16 %v159
  %v624 = vunpack.c.l.b16 %v160
  %v625 = vunpack.c.l.b16 %v161
  %v626 = vunpack.c.l.b16 %v162
  %v627 = vunpack.c.l.b16 %v163
  %v628 = vunpack.c.l.b16 %v164
  %v629 = vunpack.c.l.b16 %v165
  %v630 = vunpack.c.l.b16 %v166
  %v631 = vunpack.c.l.b16 %v167
  %v632 = vunpack.c.l.b16 %v168
  %v633 = vunpack.c.l.b16 %v169
  %v634 = vunpack.c.l.b16 %v170
  %v635 = vunpack.c.l.b16 %v171
  %v636 = vunpack.c.l.b16 %v172
  %v637 = vunpack.c.l.b16 %v173
  %v638 = vunpack.c.l.b16 %v174
  %v639 = vunpack.c.l.b16 %v175
  %v640 = vunpack.c.l.b16 %v176
  %v641 = vunpack.c.l.b16 %v177
  %v642 = vunpack.c.l.b16 %v178
  %v643 = vunpack.c.l.b16 %v179
  %v644 = vunpack.c.l.b16 %v180
  %v645 = vunpack.c.l.b16 %v181
  %v646 = vunpack.c.l.b16 %v182
  %v647 = vunpack.c.l.b16 %v183
  %v648 = vunpack.c.l.b16 %v184
  %v649 = vunpack.c.l.b16 %v185
  %v650 = vunpack.c.l.b16 %v186
  %v651 = vunpack.c.l.b16 %v187
  %v652 = vunpack.c.l.b16 %v188
  %v653 = vunpack.c.l.b16 %v189
  %v654 = vunpack.c.l.b16 %v190
  %v655 = vunpack.c.l.b16 %v191
  %v656 = vunpack.c.l.b16 %v192
  %v657 = vunpack.c.l.b16 %v193
  %v658 = vunpack.c.l.b16 %v194
  %v659 = vunpack.c.l.b16 %v195
  %v660 = vunpack.c.l.b16 %v196
  %v661 = vunpack.c.l.b16 %v197
  %v662 = vunpack.c.l.b16 %v198
  %v663 = vunpack.c.l.b16 %v199
  %v664 = vunpack.c.l.b16 %v200
  %v665 = vunpack.c.l.b16 %v201
  %v666 = vunpack.c.l.b16 %v202
  %v667 = vunpack.c.l.b16 %v203
  %v668 = vunpack.c.l.b16 %v204
  %v669 = vunpack.c.l.b16 %v205
  %v670 = vunpack.c.l.b16 %v206
  %v671 = vunpack.c.l.b16 %v207
  %v672 = vunpack.c.l.b16 %v208
  %v673 = vunpack.c.l.b16 %v209
  %v674 = vunpack.c.l.b16 %v210
  %v675 = vunpack.c.l.b16 %v211
  %v676 = vunpack.c.l.b16 %v212
  %v677 = vunpack.c.l.b16 %v213
  %v678 = vunpack.c.l.b16 %v214
  %v679 = vunpack.c.l.b16 %v215
  %v680 = vunpack.c.l.b16 %v216
  %v681 = vunpack.c.l.b16 %v217
  %v682 = vunpack.c.l.b16 %v218
  %v683 = vunpack.c.l.b16 %v219
  %v684 = vunpack.c.l.b16 %v220
  %v685 = vunpack.c.l.b16 %v221
  %v686 = vunpack.c.l.b16 %v222
  %v687 = vunpack.c.l.b16 %v223
  %v688 = vunpack.c.l.b16 %v224
  %v689 = vpack.c.b16 %v494, %v493
  %v690 = vpack.c.b16 %v496, %v495
  %v691 = vpack.c.b16 %v498, %v497
  %v692 = vpack.c.b16 %v500, %v499
  %v693 = vpack.c.b16 %v502, %v501
  %v694 = vpack.c.b16 %v504, %v503
  %v695 = vpack.c.b16 %v506, %v505
  %v696 = vpack.c.b16 %v508, %v507
  %v697 = vpack.c.b16 %v510, %v509
  %v698 = vpack.c.b16 %v512, %v511
  %v699 = vpack.c.b16 %v514, %v513
  %v700 = vpack.c.b16 %v516, %v515
  %v701 = vpack.c.b16 %v518, %v517
  %v702 = vpack.c.b16 %v520, %v519
  %v703 = vpack.c.b16 %v522, %v521
  %v704 = vpack.c.b16 %v524, %v523
  %v705 = vpack.c.b16 %v526, %v525
  %v706 = vpack.c.b16 %v528, %v527
  %v707 = vpack.c.b16 %v530, %v529
  %v708 = vpack.c.b16 %v532, %v531
  %v709 = vpack.c.b16 %v534, %v533
  %v710 = vpack.c.b16 %v536, %v535
  %v711 = vpack.c.b16 %v538, %v537
  %v712 = vpack.c.b16 %v540, %v539
  %v713 = vpack.c.b16 %v542, %v541
  %v714 = vpack.c.b16 %v544, %v543
  %v715 = vpack.c.b16 %v546, %v545
  %v716 = vpack.c.b16 %v548, %v547
  %v717 = vpack.c.b16 %v550, %v549
  %v718 = vpack.c.b16 %v552, %v551
  %v719 = vpack.c.b16 %v554, %v553
  %v720 = vpack.c.b16 %v556, %v555
  %v721 = vpack.c.b16 %v558, %v557
  %v722 = vpack.c.b16 %v560, %v559
  %v723 = vpack.c.b16 %v562, %v561
  %v724 = vpack.c.b16 %v564, %v563
  %v725 = vpack.c.b16 %v566, %v565
  %v726 = vpack.c.b16 %v568, %v567
  %v727 = vpack.c.b16 %v570, %v569
  %v728 = vpack.c.b16 %v572, %v571
  %v729 = vpack.c.b16 %v574, %v573
  %v730 = vpack.c.b16 %v576, %v575
  %v731 = vpack.c.b16 %v578, %v577
  %v732 = vpack.c.b16 %v580, %v579
  %v733 = vpack.c.b16 %v582, %v581
  %v734 = vpack.c.b16 %v584, %v583
  %v735 = vpack.c.b16 %v586, %v585
  %v736 = vpack.c.b16 %v588, %v587
  %v737 = vpack.c.b16 %v590, %v589
  %v738 = vpack.c.b16 %v592, %v591
  %v739 = vpack.c.b16 %v594, %v593
  %v740 = vpack.c.b16 %v596, %v595
  %v741 = vpack.c.b16 %v598, %v597
  %v742 = vpack.c.b16 %v600, %v599
  %v743 = vpack.c.b16 %v602, %v601
  %v744 = vpack.c.b16 %v604, %v603
  %v745 = vpack.c.b16 %v606, %v605
  %v746 = vpack.c.b16 %v608, %v607
  %v747 = vpack.c.b16 %v610, %v609
  %v748 = vpack.c.b16 %v612, %v611
  %v749 = vpack.c.b16 %v614, %v613
  %v750 = vpack.c.b16 %v616, %v615
  %v751 = vpack.c.b16 %v618, %v617
  %v752 = vpack.c.b16 %v620, %v619
  %v753 = vpack.c.b16 %v622, %v621
  %v754 = vpack.c.b16 %v624, %v623
  %v755 = vpack.c.b16 %v626, %v625
  %v756 = vpack.c.b16 %v628, %v627
  %v757 = vpack.c.b16 %v630, %v629
  %v758 = vpack.c.b16 %v632, %v631
  %v759 = vpack.c.b16 %v634, %v633
  %v760 = vpack.c.b16 %v636, %v635
  %v761 = vpack.c.b16 %v638, %v637
  %v762 = vpack.c.b16 %v640, %v639
  %v763 = vpack.c.b16 %v642, %v641
  %v764 = vpack.c.b16 %v644, %v643
  %v765 = vpack.c.b16 %v646, %v645
  %v766 = vpack.c.b16 %v648, %v647
  %v767 = vpack.c.b16 %v650, %v649
  %v768 = vpack.c.b16 %v652, %v651
  %v769 = vpack.c.b16 %v654, %v653
  %v770 = vpack.c.b16 %v656, %v655
  %v771 = vpack.c.b16 %v658, %v657
  %v772 = vpack.c.b16 %v660, %v659
  %v773 = vpack.c.b16 %v662, %v661
  %v774 = vpack.c.b16 %v664, %v663
  %v775 = vpack.c.b16 %v666, %v665
  %v776 = vpack.c.b16 %v668, %v667
  %v777 = vpack.c.b16 %v670, %v669
  %v778 = vpack.c.b16 %v672, %v671
  %v779 = vpack.c.b16 %v674, %v673
  %v780 = vpack.c.b16 %v676, %v675
  %v781 = vpack.c.b16 %v678, %v677
  %v782 = vpack.c.b16 %v680, %v679
  %v783 = vpack.c.b16 %v682, %v681
  %v784 = vpack.c.b16 %v684, %v683
  %v785 = vpack.c.b16 %v686, %v685
  %v786 = vpack.c.b16 %v688, %v687
  %vm885 = vcmask 261120
  %v887 = vsel %vm885, %v284, 0
  %889 = vmatprep.subr.bf16.mxu0 0
  %890 = vmatpush1.bf16.msra.mxu0 %v689
  %891 = vmatprep.subr.bf16.mxu0 0
  %892 = vmatpush1.bf16.msra.mxu0 %v690
  %893 = vmatprep.subr.bf16.mxu0 0
  %894 = vmatpush1.bf16.msra.mxu0 %v691
  %895 = vmatprep.subr.bf16.mxu0 0
  %896 = vmatpush1.bf16.msra.mxu0 %v692
  %897 = vmatprep.subr.bf16.mxu0 0
  %898 = vmatpush1.bf16.msra.mxu0 %v693
  %899 = vmatprep.subr.bf16.mxu0 0
  %900 = vmatpush1.bf16.msra.mxu0 %v694
  %901 = vmatprep.subr.bf16.mxu0 0
  %902 = vmatpush1.bf16.msra.mxu0 %v695
  %903 = vmatprep.subr.bf16.mxu0 0
  %904 = vmatpush1.bf16.msra.mxu0 %v696
  %905 = vmatprep.subr.bf16.mxu0 0
  %906 = vmatpush1.bf16.msra.mxu0 %v697
  %907 = vmatprep.subr.bf16.mxu0 0
  %908 = vmatpush1.bf16.msra.mxu0 %v698
  %909 = vmatprep.subr.bf16.mxu0 0
  %910 = vmatpush1.bf16.msra.mxu0 %v699
  %911 = vmatprep.subr.bf16.mxu0 0
  %912 = vmatpush1.bf16.msra.mxu0 %v700
  %913 = vmatprep.subr.bf16.mxu0 0
  %914 = vmatpush1.bf16.msra.mxu0 %v701
  %915 = vmatprep.subr.bf16.mxu0 0
  %916 = vmatpush1.bf16.msra.mxu0 %v702
  %917 = vmatprep.subr.bf16.mxu0 0
  %918 = vmatpush1.bf16.msra.mxu0 %v703
  %919 = vmatprep.subr.bf16.mxu0 0
  %920 = vmatpush1.bf16.msra.mxu0 %v704
  %921 = vmatprep.mubr.bf16.mxu0 %v273
  %922 = vmatmul.mubr.bf16.gmra.mrb[0].mxu0 %v272
  %v923 = vpop.f32.mrb[0].mxu0
  %v924 = vadd.f32 %v230, %v923
  %v925 = vpop.f32.mrb[0].mxu0
  %v926 = vpop.f32.mrb[0].mxu0
  %v927 = vadd.f32 %v230, %v926
  %v928 = vpop.f32.mrb[0].mxu0
  %929 = vdwg.mxu0
  %930 = vmatprep.subr.bf16.mxu0 0
  %931 = vmatpush1.bf16.msra.mxu0 %v705
  %932 = vmatprep.subr.bf16.mxu0 0
  %933 = vmatpush1.bf16.msra.mxu0 %v706
  %934 = vmatprep.subr.bf16.mxu0 0
  %935 = vmatpush1.bf16.msra.mxu0 %v707
  %936 = vmatprep.subr.bf16.mxu0 0
  %937 = vmatpush1.bf16.msra.mxu0 %v708
  %938 = vmatprep.subr.bf16.mxu0 0
  %939 = vmatpush1.bf16.msra.mxu0 %v709
  %940 = vmatprep.subr.bf16.mxu0 0
  %941 = vmatpush1.bf16.msra.mxu0 %v710
  %942 = vmatprep.subr.bf16.mxu0 0
  %943 = vmatpush1.bf16.msra.mxu0 %v711
  %944 = vmatprep.subr.bf16.mxu0 0
  %945 = vmatpush1.bf16.msra.mxu0 %v712
  %946 = vmatprep.subr.bf16.mxu0 0
  %947 = vmatpush1.bf16.msra.mxu0 %v713
  %948 = vmatprep.subr.bf16.mxu0 0
  %949 = vmatpush1.bf16.msra.mxu0 %v714
  %950 = vmatprep.subr.bf16.mxu0 0
  %951 = vmatpush1.bf16.msra.mxu0 %v715
  %952 = vmatprep.subr.bf16.mxu0 0
  %953 = vmatpush1.bf16.msra.mxu0 %v716
  %954 = vmatprep.subr.bf16.mxu0 0
  %955 = vmatpush1.bf16.msra.mxu0 %v717
  %956 = vmatprep.subr.bf16.mxu0 0
  %957 = vmatpush1.bf16.msra.mxu0 %v718
  %958 = vmatprep.subr.bf16.mxu0 0
  %959 = vmatpush1.bf16.msra.mxu0 %v719
  %960 = vmatprep.subr.bf16.mxu0 0
  %961 = vmatpush1.bf16.msra.mxu0 %v720
  %962 = vmatprep.mubr.bf16.mxu0 %v275
  %963 = vmatmul.mubr.bf16.gmra.mrb[0].mxu0 %v274
  %v964 = vpop.f32.mrb[0].mxu0
  %v965 = vadd.f32 %v924, %v964
  %v966 = vpop.f32.mrb[0].mxu0
  %v967 = vpop.f32.mrb[0].mxu0
  %v968 = vadd.f32 %v927, %v967
  %v969 = vpop.f32.mrb[0].mxu0
  %970 = vdwg.mxu0
  %971 = vmatprep.subr.bf16.mxu0 0
  %972 = vmatpush1.bf16.msra.mxu0 %v721
  %973 = vmatprep.subr.bf16.mxu0 0
  %974 = vmatpush1.bf16.msra.mxu0 %v722
  %975 = vmatprep.subr.bf16.mxu0 0
  %976 = vmatpush1.bf16.msra.mxu0 %v723
  %977 = vmatprep.subr.bf16.mxu0 0
  %978 = vmatpush1.bf16.msra.mxu0 %v724
  %979 = vmatprep.subr.bf16.mxu0 0
  %980 = vmatpush1.bf16.msra.mxu0 %v725
  %981 = vmatprep.subr.bf16.mxu0 0
  %982 = vmatpush1.bf16.msra.mxu0 %v726
  %983 = vmatprep.subr.bf16.mxu0 0
  %984 = vmatpush1.bf16.msra.mxu0 %v727
  %985 = vmatprep.subr.bf16.mxu0 0
  %986 = vmatpush1.bf16.msra.mxu0 %v728
  %987 = vmatprep.subr.bf16.mxu0 0
  %988 = vmatpush1.bf16.msra.mxu0 %v729
  %989 = vmatprep.subr.bf16.mxu0 0
  %990 = vmatpush1.bf16.msra.mxu0 %v730
  %991 = vmatprep.subr.bf16.mxu0 0
  %992 = vmatpush1.bf16.msra.mxu0 %v731
  %993 = vmatprep.subr.bf16.mxu0 0
  %994 = vmatpush1.bf16.msra.mxu0 %v732
  %995 = vmatprep.subr.bf16.mxu0 0
  %996 = vmatpush1.bf16.msra.mxu0 %v733
  %997 = vmatprep.subr.bf16.mxu0 0
  %998 = vmatpush1.bf16.msra.mxu0 %v734
  %999 = vmatprep.subr.bf16.mxu0 0
  %1000 = vmatpush1.bf16.msra.mxu0 %v735
  %1001 = vmatprep.subr.bf16.mxu0 0
  %1002 = vmatpush1.bf16.msra.mxu0 %v736
  %1003 = vmatprep.mubr.bf16.mxu0 %v277
  %1004 = vmatmul.mubr.bf16.gmra.mrb[0].mxu0 %v276
  %v1005 = vpop.f32.mrb[0].mxu0
  %v1006 = vadd.f32 %v965, %v1005
  %v1007 = vpop.f32.mrb[0].mxu0
  %v1008 = vpop.f32.mrb[0].mxu0
  %v1009 = vadd.f32 %v968, %v1008
  %v1010 = vpop.f32.mrb[0].mxu0
  %1011 = vdwg.mxu0
  %1012 = vmatprep.subr.bf16.mxu0 0
  %1013 = vmatpush1.bf16.msra.mxu0 %v737
  %1014 = vmatprep.subr.bf16.mxu0 0
  %1015 = vmatpush1.bf16.msra.mxu0 %v738
  %1016 = vmatprep.subr.bf16.mxu0 0
  %1017 = vmatpush1.bf16.msra.mxu0 %v739
  %1018 = vmatprep.subr.bf16.mxu0 0
  %1019 = vmatpush1.bf16.msra.mxu0 %v740
  %1020 = vmatprep.subr.bf16.mxu0 0
  %1021 = vmatpush1.bf16.msra.mxu0 %v741
  %1022 = vmatprep.subr.bf16.mxu0 0
  %1023 = vmatpush1.bf16.msra.mxu0 %v742
  %1024 = vmatprep.subr.bf16.mxu0 0
  %1025 = vmatpush1.bf16.msra.mxu0 %v743
  %1026 = vmatprep.subr.bf16.mxu0 0
  %1027 = vmatpush1.bf16.msra.mxu0 %v744
  %1028 = vmatprep.subr.bf16.mxu0 0
  %1029 = vmatpush1.bf16.msra.mxu0 %v745
  %1030 = vmatprep.subr.bf16.mxu0 0
  %1031 = vmatpush1.bf16.msra.mxu0 %v746
  %1032 = vmatprep.subr.bf16.mxu0 0
  %1033 = vmatpush1.bf16.msra.mxu0 %v747
  %1034 = vmatprep.subr.bf16.mxu0 0
  %1035 = vmatpush1.bf16.msra.mxu0 %v748
  %1036 = vmatprep.subr.bf16.mxu0 0
  %1037 = vmatpush1.bf16.msra.mxu0 %v749
  %1038 = vmatprep.subr.bf16.mxu0 0
  %1039 = vmatpush1.bf16.msra.mxu0 %v750
  %1040 = vmatprep.subr.bf16.mxu0 0
  %1041 = vmatpush1.bf16.msra.mxu0 %v751
  %1042 = vmatprep.subr.bf16.mxu0 0
  %1043 = vmatpush1.bf16.msra.mxu0 %v752
  %1044 = vmatprep.mubr.bf16.mxu0 %v279
  %1045 = vmatmul.mubr.bf16.gmra.mrb[0].mxu0 %v278
  %v1046 = vpop.f32.mrb[0].mxu0
  %v1047 = vadd.f32 %v1006, %v1046
  %v1048 = vpop.f32.mrb[0].mxu0
  %v1049 = vpop.f32.mrb[0].mxu0
  %v1050 = vadd.f32 %v1009, %v1049
  %v1051 = vpop.f32.mrb[0].mxu0
  %1052 = vdwg.mxu0
  %1053 = vmatprep.subr.bf16.mxu0 0
  %1054 = vmatpush1.bf16.msra.mxu0 %v753
  %1055 = vmatprep.subr.bf16.mxu0 0
  %1056 = vmatpush1.bf16.msra.mxu0 %v754
  %1057 = vmatprep.subr.bf16.mxu0 0
  %1058 = vmatpush1.bf16.msra.mxu0 %v755
  %1059 = vmatprep.subr.bf16.mxu0 0
  %1060 = vmatpush1.bf16.msra.mxu0 %v756
  %1061 = vmatprep.subr.bf16.mxu0 0
  %1062 = vmatpush1.bf16.msra.mxu0 %v757
  %1063 = vmatprep.subr.bf16.mxu0 0
  %1064 = vmatpush1.bf16.msra.mxu0 %v758
  %1065 = vmatprep.subr.bf16.mxu0 0
  %1066 = vmatpush1.bf16.msra.mxu0 %v759
  %1067 = vmatprep.subr.bf16.mxu0 0
  %1068 = vmatpush1.bf16.msra.mxu0 %v760
  %1069 = vmatprep.subr.bf16.mxu0 0
  %1070 = vmatpush1.bf16.msra.mxu0 %v761
  %1071 = vmatprep.subr.bf16.mxu0 0
  %1072 = vmatpush1.bf16.msra.mxu0 %v762
  %1073 = vmatprep.subr.bf16.mxu0 0
  %1074 = vmatpush1.bf16.msra.mxu0 %v763
  %1075 = vmatprep.subr.bf16.mxu0 0
  %1076 = vmatpush1.bf16.msra.mxu0 %v764
  %1077 = vmatprep.subr.bf16.mxu0 0
  %1078 = vmatpush1.bf16.msra.mxu0 %v765
  %1079 = vmatprep.subr.bf16.mxu0 0
  %1080 = vmatpush1.bf16.msra.mxu0 %v766
  %1081 = vmatprep.subr.bf16.mxu0 0
  %1082 = vmatpush1.bf16.msra.mxu0 %v767
  %1083 = vmatprep.subr.bf16.mxu0 0
  %1084 = vmatpush1.bf16.msra.mxu0 %v768
  %1085 = vmatprep.mubr.bf16.mxu0 %v281
  %1086 = vmatmul.mubr.bf16.gmra.mrb[0].mxu0 %v280
  %v1087 = vpop.f32.mrb[0].mxu0
  %v1088 = vadd.f32 %v1047, %v1087
  %v1089 = vpop.f32.mrb[0].mxu0
  %v1090 = vpop.f32.mrb[0].mxu0
  %v1091 = vadd.f32 %v1050, %v1090
  %v1092 = vpop.f32.mrb[0].mxu0
  %1093 = vdwg.mxu0
  %1094 = vmatprep.subr.bf16.mxu0 0
  %1095 = vmatpush1.bf16.msra.mxu0 %v769
  %1096 = vmatprep.subr.bf16.mxu0 0
  %1097 = vmatpush1.bf16.msra.mxu0 %v770
  %1098 = vmatprep.subr.bf16.mxu0 0
  %1099 = vmatpush1.bf16.msra.mxu0 %v771
  %1100 = vmatprep.subr.bf16.mxu0 0
  %1101 = vmatpush1.bf16.msra.mxu0 %v772
  %1102 = vmatprep.subr.bf16.mxu0 0
  %1103 = vmatpush1.bf16.msra.mxu0 %v773
  %1104 = vmatprep.subr.bf16.mxu0 0
  %1105 = vmatpush1.bf16.msra.mxu0 %v774
  %1106 = vmatprep.subr.bf16.mxu0 0
  %1107 = vmatpush1.bf16.msra.mxu0 %v775
  %1108 = vmatprep.subr.bf16.mxu0 0
  %1109 = vmatpush1.bf16.msra.mxu0 %v776
  %1110 = vmatprep.subr.bf16.mxu0 0
  %1111 = vmatpush1.bf16.msra.mxu0 %v777
  %1112 = vmatprep.subr.bf16.mxu0 0
  %1113 = vmatpush1.bf16.msra.mxu0 %v778
  %1114 = vmatprep.subr.bf16.mxu0 0
  %1115 = vmatpush1.bf16.msra.mxu0 %v779
  %1116 = vmatprep.subr.bf16.mxu0 0
  %1117 = vmatpush1.bf16.msra.mxu0 %v780
  %1118 = vmatprep.subr.bf16.mxu0 0
  %1119 = vmatpush1.bf16.msra.mxu0 %v781
  %1120 = vmatprep.subr.bf16.mxu0 0
  %1121 = vmatpush1.bf16.msra.mxu0 %v782
  %1122 = vmatprep.subr.bf16.mxu0 0
  %1123 = vmatpush1.bf16.msra.mxu0 %v783
  %1124 = vmatprep.subr.bf16.mxu0 0
  %1125 = vmatpush1.bf16.msra.mxu0 %v784
  %1126 = vmatprep.mubr.bf16.mxu0 %v283
  %1127 = vmatmul.mubr.bf16.gmra.mrb[0].mxu0 %v282
  %v1128 = vpop.f32.mrb[0].mxu0
  %v1129 = vadd.f32 %v1088, %v1128
  %v1130 = vpop.f32.mrb[0].mxu0
  %v1131 = vpop.f32.mrb[0].mxu0
  %v1132 = vadd.f32 %v1091, %v1131
  %v1133 = vpop.f32.mrb[0].mxu0
  %1134 = vdwg.mxu0
  %1135 = vmatprep.subr.bf16.mxu0 0
  %1136 = vmatpush1.bf16.msra.mxu0 %v785
  %1137 = vmatprep.subr.bf16.mxu0 0
  %1138 = vmatpush1.bf16.msra.mxu0 %v786
  %1139 = vmatprep.subr.bf16.mxu0 0
  %1140 = vmatpush1.bf16.msra.mxu0 0
  %1141 = vmatprep.subr.bf16.mxu0 0
  %1142 = vmatpush1.bf16.msra.mxu0 0
  %1143 = vmatprep.subr.bf16.mxu0 0
  %1144 = vmatpush1.bf16.msra.mxu0 0
  %1145 = vmatprep.subr.bf16.mxu0 0
  %1146 = vmatpush1.bf16.msra.mxu0 0
  %1147 = vmatprep.subr.bf16.mxu0 0
  %1148 = vmatpush1.bf16.msra.mxu0 0
  %1149 = vmatprep.subr.bf16.mxu0 0
  %1150 = vmatpush1.bf16.msra.mxu0 0
  %1151 = vmatprep.subr.bf16.mxu0 0
  %1152 = vmatpush1.bf16.msra.mxu0 0
  %1153 = vmatprep.subr.bf16.mxu0 0
  %1154 = vmatpush1.bf16.msra.mxu0 0
  %1155 = vmatprep.subr.bf16.mxu0 0
  %1156 = vmatpush1.bf16.msra.mxu0 0
  %1157 = vmatprep.subr.bf16.mxu0 0
  %1158 = vmatpush1.bf16.msra.mxu0 0
  %1159 = vmatprep.subr.bf16.mxu0 0
  %1160 = vmatpush1.bf16.msra.mxu0 0
  %1161 = vmatprep.subr.bf16.mxu0 0
  %1162 = vmatpush1.bf16.msra.mxu0 0
  %1163 = vmatprep.subr.bf16.mxu0 0
  %1164 = vmatpush1.bf16.msra.mxu0 0
  %1165 = vmatprep.subr.bf16.mxu0 0
  %1166 = vmatpush1.bf16.msra.mxu0 0
  %1167 = vmatprep.mubr.bf16.mxu0 0
  %1168 = vmatmul.mubr.bf16.gmra.mrb[0].mxu0 %v887
  %v1169 = vpop.f32.mrb[0].mxu0
  %v1170 = vadd.f32 %v1129, %v1169
  %v1171 = vpop.f32.mrb[0].mxu0
  %v1172 = vpop.f32.mrb[0].mxu0
  %v1173 = vadd.f32 %v1132, %v1172
  %v1174 = vpop.f32.mrb[0].mxu0
  %1175 = vdwg.mxu0
  %vm1176 = vcmask 80896
  %1177 = vst.msk [vmem:[%s3] sm:$0xff] %vm1176, %v1170
  %1178 = vst.msk [vmem:[%s3 + $0x8] sm:$0xff] %vm1176, %v1173
  // Predicated region
  $region14: #{cnn_forward.5} parent=0 // pred_check
    _
  $region15: #{cnn_forward.5} parent=0 // pred_check_branch
    %1180 = sbr.rel (0) target = $region17
  $region16: #{cnn_forward.5} parent=0 // pred_region
    _
  $region17: #{cnn_forward.5} parent=0 // pred_fallthru
    _
  // Predicated region
  $region18: #{cnn_forward.5} parent=0 // pred_check
    _
  $region19: #{cnn_forward.5} parent=0 // pred_check_branch
    %1182 = sbr.rel (0) target = $region21
  $region20: #{cnn_forward.5} parent=0 // pred_region
    _
  $region21: #{cnn_forward.5} parent=0 // pred_fallthru
    _

</llo_original>
